<compile_context>
chip_gen: v7x
topology: tpu7x:2x2x1
jax: 0.10.0
libtpu: 0.0.40
codegen_flags: <defaults>
</compile_context>

<pallas_src>
import jax
import jax.numpy as jnp
from jax import lax
from jax.experimental import pallas as pl
from jax.experimental.pallas import tpu as pltpu

EPS = 1e-5
NEG_SLOPE = 0.2

IN_PAD = 128    # noise dim padded 100 -> 128 lanes
OUT_PAD = 896   # output dim padded 784 -> 896 = 7*128 lanes


def _leaky_relu(x):
    return jnp.where(x > 0, x, NEG_SLOPE * x)


def _batchnorm(x, gamma, beta):
    # Training-mode batch norm over the batch (sublane) axis, folded into a
    # single per-element scale/shift.
    mean = jnp.mean(x, axis=0, keepdims=True)
    var = jnp.maximum(jnp.mean(x * x, axis=0, keepdims=True) - mean * mean, 0.0)
    scale = gamma * lax.rsqrt(var + EPS)
    shift = beta - mean * scale
    return x * scale + shift


def _bf16_dot(h, w):
    # bf16 x bf16 MXU matmul with f32 accumulation.
    return jnp.dot(h.astype(jnp.bfloat16), w, preferred_element_type=jnp.float32)


def generator_kernel(
    x_ref,
    w1_ref, b1_ref, g1_ref, be1_ref,
    w2_ref, b2_ref, g2_ref, be2_ref,
    w3_hbm, b3_ref, g3_ref, be3_ref,
    w4_hbm, b4_ref,
    o_ref,
    w3_vmem, w4_vmem, dma_sems,
):
    # Kick off the big layer-3/4 weight fetches immediately so their DMA
    # overlaps the layer-1/2 matmul + BN work.
    w3_cp = pltpu.make_async_copy(w3_hbm, w3_vmem, dma_sems.at[0])
    w4_cp = pltpu.make_async_copy(w4_hbm, w4_vmem, dma_sems.at[1])
    w3_cp.start()
    w4_cp.start()

    x = x_ref[...]                                   # (B, 128) f32 (100 zero-padded)

    # Linear(100 -> 256) + LeakyReLU(0.2) + BatchNorm1d(256)
    h = _bf16_dot(x, w1_ref[...]) + b1_ref[...]
    h = _batchnorm(_leaky_relu(h), g1_ref[...], be1_ref[...])

    # Linear(256 -> 512) + LeakyReLU(0.2) + BatchNorm1d(512)
    h = _bf16_dot(h, w2_ref[...]) + b2_ref[...]
    h = _batchnorm(_leaky_relu(h), g2_ref[...], be2_ref[...])

    # Linear(512 -> 1024) + LeakyReLU(0.2) + BatchNorm1d(1024)
    w3_cp.wait()
    h = _bf16_dot(h, w3_vmem[...]) + b3_ref[...]
    h = _batchnorm(_leaky_relu(h), g3_ref[...], be3_ref[...])

    # Linear(1024 -> 784) + Tanh   (output lane-padded to 896 = 7*128)
    w4_cp.wait()
    h = _bf16_dot(h, w4_vmem[...]) + b4_ref[...]
    o_ref[...] = jnp.tanh(h)


def _full_spec(shape):
    return pl.BlockSpec(shape, lambda: (0,) * len(shape))


def generator_forward(x, params):
    """x: (B, 100) f32.  Returns (B, 1, 28, 28) f32."""
    B = x.shape[0]
    (w1, b1, g1, be1, w2, b2, g2, be2, w3, b3, g3, be3, w4, b4) = params

    # Only the tiny noise input is padded per call; all weight padding was done
    # once at parameter-init time (padded regions are exactly zero).
    x_p = jnp.pad(x, ((0, 0), (0, IN_PAD - x.shape[1])))

    inputs = (x_p,
              w1, b1, g1, be1,
              w2, b2, g2, be2,
              w3, b3, g3, be3,
              w4, b4)

    # w3 / w4 stay in HBM (pl.ANY) and are DMA'd manually inside the kernel.
    hbm_inputs = (9, 13)  # indices of w3, w4 in `inputs`
    in_specs = [
        pl.BlockSpec(memory_space=pl.ANY) if i in hbm_inputs else _full_spec(a.shape)
        for i, a in enumerate(inputs)
    ]

    out = pl.pallas_call(
        generator_kernel,
        out_shape=jax.ShapeDtypeStruct((B, OUT_PAD), jnp.float32),
        in_specs=in_specs,
        out_specs=_full_spec((B, OUT_PAD)),
        scratch_shapes=[
            pltpu.VMEM(w3.shape, jnp.bfloat16),          # (512, 1024)
            pltpu.VMEM(w4.shape, jnp.bfloat16),          # (1024, 896)
            pltpu.SemaphoreType.DMA((2,)),
        ],
        compiler_params=pltpu.CompilerParams(
            vmem_limit_bytes=32 * 1024 * 1024,           # fits v7x's 64 MiB VMEM
        ),
    )(*inputs)

    out = out[:, :784]
    return out.reshape(B, 1, 28, 28)


def init_params(key):
    """Deterministic synthetic parameters with nn.Linear-style scaling.

    Weights are pre-padded and stored in bf16; biases / BN params stay f32.
    """
    dims = [(100, 256), (256, 512), (512, 1024), (1024, 784)]
    params = []
    keys = jax.random.split(key, 8)
    ki = 0
    for li, (fi, fo) in enumerate(dims):
        bound = 1.0 / (fi ** 0.5)
        w = jax.random.uniform(keys[ki], (fi, fo), jnp.float32, -bound, bound); ki += 1
        b = jax.random.uniform(keys[ki], (1, fo), jnp.float32, -bound, bound); ki += 1
        if li == 0:   # pad noise dim 100 -> 128 (padded rows are exactly zero)
            w = jnp.pad(w, ((0, IN_PAD - fi), (0, 0)))
        if li == 3:   # pad output dim 784 -> 896 (padded cols are exactly zero)
            w = jnp.pad(w, ((0, 0), (0, OUT_PAD - fo)))
            b = jnp.pad(b, ((0, 0), (0, OUT_PAD - fo)))
        params += [w.astype(jnp.bfloat16), b]
        if li < 3:    # BatchNorm1d affine params (gamma=1, beta=0, PyTorch init)
            params += [jnp.ones((1, fo), jnp.float32), jnp.zeros((1, fo), jnp.float32)]
    return tuple(params)


def reference_forward(x, params):
    """Plain-JAX reference (same bf16-weight matmul path, f32 elsewhere)."""
    (w1, b1, g1, be1, w2, b2, g2, be2, w3, b3, g3, be3, w4, b4) = params

    def bn(h, g, be):
        m = jnp.mean(h, axis=0, keepdims=True)
        v = jnp.mean((h - m) ** 2, axis=0, keepdims=True)
        return (h - m) / jnp.sqrt(v + EPS) * g + be

    def lrelu(h):
        return jnp.where(h > 0, h, NEG_SLOPE * h)

    def dot(h, w):
        return jnp.dot(h.astype(jnp.bfloat16), w, preferred_element_type=jnp.float32)

    x_p = jnp.pad(x, ((0, 0), (0, IN_PAD - x.shape[1])))
    h = bn(lrelu(dot(x_p, w1) + b1), g1, be1)
    h = bn(lrelu(dot(h, w2) + b2), g2, be2)
    h = bn(lrelu(dot(h, w3) + b3), g3, be3)
    h = jnp.tanh(dot(h, w4) + b4)
    return h[:, :784].reshape(x.shape[0], 1, 28, 28)


if __name__ == "__main__":
    key = jax.random.PRNGKey(0)
    k_params, k_x = jax.random.split(key)
    params = init_params(k_params)

    B = 8   # small demo batch (BN needs B > 1); larger B amortizes weight traffic
    x = jax.random.normal(k_x, (B, 100), jnp.float32)

    out = generator_forward(x, params)
    out = jax.block_until_ready(out)

    assert out.shape == (B, 1, 28, 28), out.shape

    ref = reference_forward(x, params)
    err = float(jnp.max(jnp.abs(out - ref)))
    assert jnp.allclose(out, ref, atol=2e-2, rtol=2e-2), err

    print("KERNEL_OK")
</pallas_src>

<mosaic_0001>
module attributes {stable_mosaic.version = 11 : i64} {
  func.func @generator_kernel(%arg0: memref<8x128xf32, #tpu.memory_space<vmem>>, %arg1: memref<128x256xbf16, #tpu.memory_space<vmem>>, %arg2: memref<1x256xf32, #tpu.memory_space<vmem>>, %arg3: memref<1x256xf32, #tpu.memory_space<vmem>>, %arg4: memref<1x256xf32, #tpu.memory_space<vmem>>, %arg5: memref<256x512xbf16, #tpu.memory_space<vmem>>, %arg6: memref<1x512xf32, #tpu.memory_space<vmem>>, %arg7: memref<1x512xf32, #tpu.memory_space<vmem>>, %arg8: memref<1x512xf32, #tpu.memory_space<vmem>>, %arg9: memref<512x1024xbf16, #tpu.memory_space<any>>, %arg10: memref<1x1024xf32, #tpu.memory_space<vmem>>, %arg11: memref<1x1024xf32, #tpu.memory_space<vmem>>, %arg12: memref<1x1024xf32, #tpu.memory_space<vmem>>, %arg13: memref<1024x896xbf16, #tpu.memory_space<any>>, %arg14: memref<1x896xf32, #tpu.memory_space<vmem>>, %arg15: memref<8x896xf32, #tpu.memory_space<vmem>>, %arg16: memref<512x1024xbf16, #tpu.memory_space<vmem>>, %arg17: memref<1024x896xbf16, #tpu.memory_space<vmem>>, %arg18: memref<2x!tpu.dma_semaphore, #tpu.memory_space<semaphore_mem>>) attributes {dimension_semantics = [], scalar_prefetch = 0 : i64, scratch_operands = 3 : i64, tpu.core_type = #tpu.core_type<tc>} {
    %c0_i32 = arith.constant 0 : i32
    %0 = tpu.memref_slice %arg18[%c0_i32] : memref<2x!tpu.dma_semaphore, #tpu.memory_space<semaphore_mem>> -> memref<1x!tpu.dma_semaphore, #tpu.memory_space<semaphore_mem>>
    %1 = tpu.memref_squeeze %0 : memref<1x!tpu.dma_semaphore, #tpu.memory_space<semaphore_mem>> -> memref<!tpu.dma_semaphore, #tpu.memory_space<semaphore_mem>>
    tpu.enqueue_dma source(%arg9 : memref<512x1024xbf16, #tpu.memory_space<any>>) target(%arg16 : memref<512x1024xbf16, #tpu.memory_space<vmem>>) target_semaphore(%1 : memref<!tpu.dma_semaphore, #tpu.memory_space<semaphore_mem>>)
    %c1_i32 = arith.constant 1 : i32
    %2 = tpu.memref_slice %arg18[%c1_i32] : memref<2x!tpu.dma_semaphore, #tpu.memory_space<semaphore_mem>> -> memref<1x!tpu.dma_semaphore, #tpu.memory_space<semaphore_mem>>
    %3 = tpu.memref_squeeze %2 : memref<1x!tpu.dma_semaphore, #tpu.memory_space<semaphore_mem>> -> memref<!tpu.dma_semaphore, #tpu.memory_space<semaphore_mem>>
    tpu.enqueue_dma source(%arg13 : memref<1024x896xbf16, #tpu.memory_space<any>>) target(%arg17 : memref<1024x896xbf16, #tpu.memory_space<vmem>>) target_semaphore(%3 : memref<!tpu.dma_semaphore, #tpu.memory_space<semaphore_mem>>)
    %c0 = arith.constant 0 : index
    %c0_0 = arith.constant 0 : index
    %4 = vector.load %arg0[%c0, %c0_0] : memref<8x128xf32, #tpu.memory_space<vmem>>, vector<8x128xf32>
    %c0_1 = arith.constant 0 : index
    %c0_2 = arith.constant 0 : index
    %5 = vector.load %arg1[%c0_1, %c0_2] : memref<128x256xbf16, #tpu.memory_space<vmem>>, vector<128x256xbf16>
    %6 = arith.truncf %4 : vector<8x128xf32> to vector<8x128xbf16>
    %cst = arith.constant dense<0.000000e+00> : vector<8x256xf32>
    %7 = tpu.matmul %6, %5, %cst {dimension_numbers = #tpu.dot_dimension_numbers<[1], [0], [0], [1], [0, 0, 1, 1], [], []>} : vector<8x128xbf16>, vector<128x256xbf16>, vector<8x256xf32> -> vector<8x256xf32>
    %c0_3 = arith.constant 0 : index
    %c0_4 = arith.constant 0 : index
    %8 = vector.load %arg2[%c0_3, %c0_4] : memref<1x256xf32, #tpu.memory_space<vmem>>, vector<1x256xf32>
    %9 = vector.broadcast %8 : vector<1x256xf32> to vector<8x256xf32>
    %10 = arith.addf %7, %9 : vector<8x256xf32>
    %cst_5 = arith.constant 0.000000e+00 : f32
    %11 = vector.broadcast %cst_5 : f32 to vector<8x256xf32>
    %12 = arith.cmpf ogt, %10, %11 : vector<8x256xf32>
    %cst_6 = arith.constant 2.000000e-01 : f32
    %13 = vector.broadcast %cst_6 : f32 to vector<8x256xf32>
    %14 = arith.mulf %13, %10 : vector<8x256xf32>
    %15 = arith.select %12, %10, %14 : vector<8x256xi1>, vector<8x256xf32>
    %c0_7 = arith.constant 0 : index
    %c0_8 = arith.constant 0 : index
    %16 = vector.load %arg3[%c0_7, %c0_8] : memref<1x256xf32, #tpu.memory_space<vmem>>, vector<1x256xf32>
    %c0_9 = arith.constant 0 : index
    %c0_10 = arith.constant 0 : index
    %17 = vector.load %arg4[%c0_9, %c0_10] : memref<1x256xf32, #tpu.memory_space<vmem>>, vector<1x256xf32>
    %cst_11 = arith.constant dense<0.000000e+00> : vector<256xf32>
    %18 = vector.multi_reduction <add>, %15, %cst_11 [0] : vector<8x256xf32> to vector<256xf32>
    %19 = vector.shape_cast %18 : vector<256xf32> to vector<1x256xf32>
    %cst_12 = arith.constant 8.000000e+00 : f32
    %20 = vector.broadcast %cst_12 : f32 to vector<1x256xf32>
    %21 = arith.divf %19, %20 : vector<1x256xf32>
    %22 = arith.mulf %15, %15 : vector<8x256xf32>
    %cst_13 = arith.constant dense<0.000000e+00> : vector<256xf32>
    %23 = vector.multi_reduction <add>, %22, %cst_13 [0] : vector<8x256xf32> to vector<256xf32>
    %24 = vector.shape_cast %23 : vector<256xf32> to vector<1x256xf32>
    %cst_14 = arith.constant 8.000000e+00 : f32
    %25 = vector.broadcast %cst_14 : f32 to vector<1x256xf32>
    %26 = arith.divf %24, %25 : vector<1x256xf32>
    %27 = arith.mulf %21, %21 : vector<1x256xf32>
    %28 = arith.subf %26, %27 : vector<1x256xf32>
    %cst_15 = arith.constant 0.000000e+00 : f32
    %29 = vector.broadcast %cst_15 : f32 to vector<1x256xf32>
    %30 = arith.maximumf %28, %29 : vector<1x256xf32>
    %cst_16 = arith.constant 9.99999974E-6 : f32
    %31 = vector.broadcast %cst_16 : f32 to vector<1x256xf32>
    %32 = arith.addf %30, %31 : vector<1x256xf32>
    %33 = math.rsqrt %32 : vector<1x256xf32>
    %34 = arith.mulf %16, %33 : vector<1x256xf32>
    %35 = arith.mulf %21, %34 : vector<1x256xf32>
    %36 = arith.subf %17, %35 : vector<1x256xf32>
    %37 = vector.broadcast %34 : vector<1x256xf32> to vector<8x256xf32>
    %38 = arith.mulf %15, %37 : vector<8x256xf32>
    %39 = vector.broadcast %36 : vector<1x256xf32> to vector<8x256xf32>
    %40 = arith.addf %38, %39 : vector<8x256xf32>
    %c0_17 = arith.constant 0 : index
    %c0_18 = arith.constant 0 : index
    %41 = vector.load %arg5[%c0_17, %c0_18] : memref<256x512xbf16, #tpu.memory_space<vmem>>, vector<256x512xbf16>
    %42 = arith.truncf %40 : vector<8x256xf32> to vector<8x256xbf16>
    %cst_19 = arith.constant dense<0.000000e+00> : vector<8x512xf32>
    %43 = tpu.matmul %42, %41, %cst_19 {dimension_numbers = #tpu.dot_dimension_numbers<[1], [0], [0], [1], [0, 0, 1, 1], [], []>} : vector<8x256xbf16>, vector<256x512xbf16>, vector<8x512xf32> -> vector<8x512xf32>
    %c0_20 = arith.constant 0 : index
    %c0_21 = arith.constant 0 : index
    %44 = vector.load %arg6[%c0_20, %c0_21] : memref<1x512xf32, #tpu.memory_space<vmem>>, vector<1x512xf32>
    %45 = vector.broadcast %44 : vector<1x512xf32> to vector<8x512xf32>
    %46 = arith.addf %43, %45 : vector<8x512xf32>
    %cst_22 = arith.constant 0.000000e+00 : f32
    %47 = vector.broadcast %cst_22 : f32 to vector<8x512xf32>
    %48 = arith.cmpf ogt, %46, %47 : vector<8x512xf32>
    %cst_23 = arith.constant 2.000000e-01 : f32
    %49 = vector.broadcast %cst_23 : f32 to vector<8x512xf32>
    %50 = arith.mulf %49, %46 : vector<8x512xf32>
    %51 = arith.select %48, %46, %50 : vector<8x512xi1>, vector<8x512xf32>
    %c0_24 = arith.constant 0 : index
    %c0_25 = arith.constant 0 : index
    %52 = vector.load %arg7[%c0_24, %c0_25] : memref<1x512xf32, #tpu.memory_space<vmem>>, vector<1x512xf32>
    %c0_26 = arith.constant 0 : index
    %c0_27 = arith.constant 0 : index
    %53 = vector.load %arg8[%c0_26, %c0_27] : memref<1x512xf32, #tpu.memory_space<vmem>>, vector<1x512xf32>
    %cst_28 = arith.constant dense<0.000000e+00> : vector<512xf32>
    %54 = vector.multi_reduction <add>, %51, %cst_28 [0] : vector<8x512xf32> to vector<512xf32>
    %55 = vector.shape_cast %54 : vector<512xf32> to vector<1x512xf32>
    %cst_29 = arith.constant 8.000000e+00 : f32
    %56 = vector.broadcast %cst_29 : f32 to vector<1x512xf32>
    %57 = arith.divf %55, %56 : vector<1x512xf32>
    %58 = arith.mulf %51, %51 : vector<8x512xf32>
    %cst_30 = arith.constant dense<0.000000e+00> : vector<512xf32>
    %59 = vector.multi_reduction <add>, %58, %cst_30 [0] : vector<8x512xf32> to vector<512xf32>
    %60 = vector.shape_cast %59 : vector<512xf32> to vector<1x512xf32>
    %cst_31 = arith.constant 8.000000e+00 : f32
    %61 = vector.broadcast %cst_31 : f32 to vector<1x512xf32>
    %62 = arith.divf %60, %61 : vector<1x512xf32>
    %63 = arith.mulf %57, %57 : vector<1x512xf32>
    %64 = arith.subf %62, %63 : vector<1x512xf32>
    %cst_32 = arith.constant 0.000000e+00 : f32
    %65 = vector.broadcast %cst_32 : f32 to vector<1x512xf32>
    %66 = arith.maximumf %64, %65 : vector<1x512xf32>
    %cst_33 = arith.constant 9.99999974E-6 : f32
    %67 = vector.broadcast %cst_33 : f32 to vector<1x512xf32>
    %68 = arith.addf %66, %67 : vector<1x512xf32>
    %69 = math.rsqrt %68 : vector<1x512xf32>
    %70 = arith.mulf %52, %69 : vector<1x512xf32>
    %71 = arith.mulf %57, %70 : vector<1x512xf32>
    %72 = arith.subf %53, %71 : vector<1x512xf32>
    %73 = vector.broadcast %70 : vector<1x512xf32> to vector<8x512xf32>
    %74 = arith.mulf %51, %73 : vector<8x512xf32>
    %75 = vector.broadcast %72 : vector<1x512xf32> to vector<8x512xf32>
    %76 = arith.addf %74, %75 : vector<8x512xf32>
    %c0_i32_34 = arith.constant 0 : i32
    %77 = tpu.memref_slice %arg18[%c0_i32_34] : memref<2x!tpu.dma_semaphore, #tpu.memory_space<semaphore_mem>> -> memref<1x!tpu.dma_semaphore, #tpu.memory_space<semaphore_mem>>
    %78 = tpu.memref_squeeze %77 : memref<1x!tpu.dma_semaphore, #tpu.memory_space<semaphore_mem>> -> memref<!tpu.dma_semaphore, #tpu.memory_space<semaphore_mem>>
    tpu.wait_dma2 semaphore(%78 : memref<!tpu.dma_semaphore, #tpu.memory_space<semaphore_mem>>) src(%arg9 : memref<512x1024xbf16, #tpu.memory_space<any>>) dst(%arg16 : memref<512x1024xbf16, #tpu.memory_space<vmem>>)
    %c0_35 = arith.constant 0 : index
    %c0_36 = arith.constant 0 : index
    %79 = vector.load %arg16[%c0_35, %c0_36] : memref<512x1024xbf16, #tpu.memory_space<vmem>>, vector<512x1024xbf16>
    %80 = arith.truncf %76 : vector<8x512xf32> to vector<8x512xbf16>
    %cst_37 = arith.constant dense<0.000000e+00> : vector<8x1024xf32>
    %81 = tpu.matmul %80, %79, %cst_37 {dimension_numbers = #tpu.dot_dimension_numbers<[1], [0], [0], [1], [0, 0, 1, 1], [], []>} : vector<8x512xbf16>, vector<512x1024xbf16>, vector<8x1024xf32> -> vector<8x1024xf32>
    %c0_38 = arith.constant 0 : index
    %c0_39 = arith.constant 0 : index
    %82 = vector.load %arg10[%c0_38, %c0_39] : memref<1x1024xf32, #tpu.memory_space<vmem>>, vector<1x1024xf32>
    %83 = vector.broadcast %82 : vector<1x1024xf32> to vector<8x1024xf32>
    %84 = arith.addf %81, %83 : vector<8x1024xf32>
    %cst_40 = arith.constant 0.000000e+00 : f32
    %85 = vector.broadcast %cst_40 : f32 to vector<8x1024xf32>
    %86 = arith.cmpf ogt, %84, %85 : vector<8x1024xf32>
    %cst_41 = arith.constant 2.000000e-01 : f32
    %87 = vector.broadcast %cst_41 : f32 to vector<8x1024xf32>
    %88 = arith.mulf %87, %84 : vector<8x1024xf32>
    %89 = arith.select %86, %84, %88 : vector<8x1024xi1>, vector<8x1024xf32>
    %c0_42 = arith.constant 0 : index
    %c0_43 = arith.constant 0 : index
    %90 = vector.load %arg11[%c0_42, %c0_43] : memref<1x1024xf32, #tpu.memory_space<vmem>>, vector<1x1024xf32>
    %c0_44 = arith.constant 0 : index
    %c0_45 = arith.constant 0 : index
    %91 = vector.load %arg12[%c0_44, %c0_45] : memref<1x1024xf32, #tpu.memory_space<vmem>>, vector<1x1024xf32>
    %cst_46 = arith.constant dense<0.000000e+00> : vector<1024xf32>
    %92 = vector.multi_reduction <add>, %89, %cst_46 [0] : vector<8x1024xf32> to vector<1024xf32>
    %93 = vector.shape_cast %92 : vector<1024xf32> to vector<1x1024xf32>
    %cst_47 = arith.constant 8.000000e+00 : f32
    %94 = vector.broadcast %cst_47 : f32 to vector<1x1024xf32>
    %95 = arith.divf %93, %94 : vector<1x1024xf32>
    %96 = arith.mulf %89, %89 : vector<8x1024xf32>
    %cst_48 = arith.constant dense<0.000000e+00> : vector<1024xf32>
    %97 = vector.multi_reduction <add>, %96, %cst_48 [0] : vector<8x1024xf32> to vector<1024xf32>
    %98 = vector.shape_cast %97 : vector<1024xf32> to vector<1x1024xf32>
    %cst_49 = arith.constant 8.000000e+00 : f32
    %99 = vector.broadcast %cst_49 : f32 to vector<1x1024xf32>
    %100 = arith.divf %98, %99 : vector<1x1024xf32>
    %101 = arith.mulf %95, %95 : vector<1x1024xf32>
    %102 = arith.subf %100, %101 : vector<1x1024xf32>
    %cst_50 = arith.constant 0.000000e+00 : f32
    %103 = vector.broadcast %cst_50 : f32 to vector<1x1024xf32>
    %104 = arith.maximumf %102, %103 : vector<1x1024xf32>
    %cst_51 = arith.constant 9.99999974E-6 : f32
    %105 = vector.broadcast %cst_51 : f32 to vector<1x1024xf32>
    %106 = arith.addf %104, %105 : vector<1x1024xf32>
    %107 = math.rsqrt %106 : vector<1x1024xf32>
    %108 = arith.mulf %90, %107 : vector<1x1024xf32>
    %109 = arith.mulf %95, %108 : vector<1x1024xf32>
    %110 = arith.subf %91, %109 : vector<1x1024xf32>
    %111 = vector.broadcast %108 : vector<1x1024xf32> to vector<8x1024xf32>
    %112 = arith.mulf %89, %111 : vector<8x1024xf32>
    %113 = vector.broadcast %110 : vector<1x1024xf32> to vector<8x1024xf32>
    %114 = arith.addf %112, %113 : vector<8x1024xf32>
    %c1_i32_52 = arith.constant 1 : i32
    %115 = tpu.memref_slice %arg18[%c1_i32_52] : memref<2x!tpu.dma_semaphore, #tpu.memory_space<semaphore_mem>> -> memref<1x!tpu.dma_semaphore, #tpu.memory_space<semaphore_mem>>
    %116 = tpu.memref_squeeze %115 : memref<1x!tpu.dma_semaphore, #tpu.memory_space<semaphore_mem>> -> memref<!tpu.dma_semaphore, #tpu.memory_space<semaphore_mem>>
    tpu.wait_dma2 semaphore(%116 : memref<!tpu.dma_semaphore, #tpu.memory_space<semaphore_mem>>) src(%arg13 : memref<1024x896xbf16, #tpu.memory_space<any>>) dst(%arg17 : memref<1024x896xbf16, #tpu.memory_space<vmem>>)
    %c0_53 = arith.constant 0 : index
    %c0_54 = arith.constant 0 : index
    %117 = vector.load %arg17[%c0_53, %c0_54] : memref<1024x896xbf16, #tpu.memory_space<vmem>>, vector<1024x896xbf16>
    %118 = arith.truncf %114 : vector<8x1024xf32> to vector<8x1024xbf16>
    %cst_55 = arith.constant dense<0.000000e+00> : vector<8x896xf32>
    %119 = tpu.matmul %118, %117, %cst_55 {dimension_numbers = #tpu.dot_dimension_numbers<[1], [0], [0], [1], [0, 0, 1, 1], [], []>} : vector<8x1024xbf16>, vector<1024x896xbf16>, vector<8x896xf32> -> vector<8x896xf32>
    %c0_56 = arith.constant 0 : index
    %c0_57 = arith.constant 0 : index
    %120 = vector.load %arg14[%c0_56, %c0_57] : memref<1x896xf32, #tpu.memory_space<vmem>>, vector<1x896xf32>
    %121 = vector.broadcast %120 : vector<1x896xf32> to vector<8x896xf32>
    %122 = arith.addf %119, %121 : vector<8x896xf32>
    %123 = math.tanh %122 : vector<8x896xf32>
    %c0_58 = arith.constant 0 : index
    %c0_59 = arith.constant 0 : index
    %124 = vector.load %arg15[%c0_58, %c0_59] : memref<8x896xf32, #tpu.memory_space<vmem>>, vector<8x896xf32>
    tpu.vector_store %arg15[%c0_58, %c0_59], %123 {strides = array<i32>} : memref<8x896xf32, #tpu.memory_space<vmem>>, vector<8x896xf32>,
    return
  }
}

</mosaic_0001>

<llo_original>
// kernel: tpu_custom_call.1
$region0: #{tpu_custom_call.1}
  #allocation0 [shape = 'u32[]', space=smem, size = 0x4, offset = 0x4, fixed_abs, tag = 'smem constant byte address 0x4 - core index']
  #allocation1 [shape = 'u32[144,128]{1,0:T(1,128)}', space=vmem, size = 0x12000, scoped, tag = 'internal scratch']
  #allocation2 [shape = 'bf16[512,1024]{1,0:T(16,128)(2,1)}', space=vmem, size = 0x100000, scoped, tag = 'scratch operand']
  #allocation3 [shape = 'bf16[1024,896]{1,0:T(16,128)(2,1)}', space=vmem, size = 0x1c0000, scoped, tag = 'scratch operand']
  #allocation4 [shape = 's32[2]{0}', space=sflag, size = 0x8, scoped, tag = 'scratch operand']
  #allocation27 [shape = 's32[]', space=sflag, size = 0x4, offset = 0, fixed_abs, tag = 'sflag constant byte address 0x0 - dummy sync flag']
  #allocation29 [shape = 's32[]', space=sflag, size = 0x4, offset = 0, fixed_abs, tag = 'sflag constant byte address 0x0 - dummy sync flag']
  %s0 = inlined_call_operand.hbm [shape: f32[8,128], index: 0, kind: input, shape index: {}]
  %s1 = inlined_call_operand.hbm [shape: bf16[128,256], index: 1, kind: input, shape index: {}]
  %s2 = inlined_call_operand.hbm [shape: f32[1,256], index: 2, kind: input, shape index: {}]
  %s3 = inlined_call_operand.hbm [shape: f32[1,256], index: 3, kind: input, shape index: {}]
  %s4 = inlined_call_operand.hbm [shape: f32[1,256], index: 4, kind: input, shape index: {}]
  %s5 = inlined_call_operand.hbm [shape: bf16[256,512], index: 5, kind: input, shape index: {}]
  %s6 = inlined_call_operand.hbm [shape: f32[1,512], index: 6, kind: input, shape index: {}]
  %s7 = inlined_call_operand.hbm [shape: f32[1,512], index: 7, kind: input, shape index: {}]
  %s8 = inlined_call_operand.hbm [shape: f32[1,512], index: 8, kind: input, shape index: {}]
  %s9 = inlined_call_operand.hbm [shape: bf16[512,1024], index: 9, kind: input, shape index: {}]
  %s10 = inlined_call_operand.hbm [shape: f32[1,1024], index: 10, kind: input, shape index: {}]
  %s11 = inlined_call_operand.hbm [shape: f32[1,1024], index: 11, kind: input, shape index: {}]
  %s12 = inlined_call_operand.hbm [shape: f32[1,1024], index: 12, kind: input, shape index: {}]
  %s13 = inlined_call_operand.hbm [shape: bf16[1024,896], index: 13, kind: input, shape index: {}]
  %s14 = inlined_call_operand.hbm [shape: f32[1,896], index: 14, kind: input, shape index: {}]
  %s15 = inlined_call_operand.hbm [shape: f32[8,896], index: 15, kind: output, shape index: {}]
  %s16 = sld [smem:[#allocation0]]
  $region114: #{tpu_custom_call.1} parent=0
    _
  %s18 = ssub.s32 1, %s16
  %s19 = scalar_select 0, %s18, %s16
  $region1: #{tpu_custom_call.1} parent=0
    #allocation5 [shape = 'u8[4096]{0}', space=vmem, size = 0x1000, scoped, tag = 'input window, operand 0, single buffered']
    #allocation6 [shape = 's32[1]{0}', space=sflag, size = 0x4, scoped, tag = 'scoped memory for tpu_custom_call.1']
    #allocation7 [shape = 's32[1]{0}', space=sflag, size = 0x4, scoped, tag = 'scoped memory for tpu_custom_call.1']
    #allocation8 [shape = 'u8[65536]{0}', space=vmem, size = 0x10000, scoped, tag = 'input window, operand 1, single buffered']
    #allocation9 [shape = 's32[1]{0}', space=sflag, size = 0x4, scoped, tag = 'scoped memory for tpu_custom_call.1']
    #allocation10 [shape = 'u8[1024]{0}', space=vmem, size = 0x400, scoped, tag = 'input window, operand 2, single buffered']
    #allocation11 [shape = 'u8[1024]{0}', space=vmem, size = 0x400, scoped, tag = 'input window, operand 3, single buffered']
    #allocation12 [shape = 's32[1]{0}', space=sflag, size = 0x4, scoped, tag = 'scoped memory for tpu_custom_call.1']
    #allocation13 [shape = 'u8[1024]{0}', space=vmem, size = 0x400, scoped, tag = 'input window, operand 4, single buffered']
    #allocation14 [shape = 'u8[262144]{0}', space=vmem, size = 0x40000, scoped, tag = 'input window, operand 5, single buffered']
    #allocation15 [shape = 's32[1]{0}', space=sflag, size = 0x4, scoped, tag = 'scoped memory for tpu_custom_call.1']
    #allocation16 [shape = 'u8[2048]{0}', space=vmem, size = 0x800, scoped, tag = 'input window, operand 6, single buffered']
    #allocation17 [shape = 'u8[2048]{0}', space=vmem, size = 0x800, scoped, tag = 'input window, operand 7, single buffered']
    #allocation18 [shape = 's32[1]{0}', space=sflag, size = 0x4, scoped, tag = 'scoped memory for tpu_custom_call.1']
    #allocation19 [shape = 'u8[2048]{0}', space=vmem, size = 0x800, scoped, tag = 'input window, operand 8, single buffered']
    #allocation20 [shape = 'u8[4096]{0}', space=vmem, size = 0x1000, scoped, tag = 'input window, operand 10, single buffered']
    #allocation21 [shape = 's32[1]{0}', space=sflag, size = 0x4, scoped, tag = 'scoped memory for tpu_custom_call.1']
    #allocation22 [shape = 'u8[4096]{0}', space=vmem, size = 0x1000, scoped, tag = 'input window, operand 11, single buffered']
    #allocation23 [shape = 'u8[4096]{0}', space=vmem, size = 0x1000, scoped, tag = 'input window, operand 12, single buffered']
    #allocation24 [shape = 's32[1]{0}', space=sflag, size = 0x4, scoped, tag = 'scoped memory for tpu_custom_call.1']
    #allocation25 [shape = 'u8[3584]{0}', space=vmem, size = 0x1000, scoped, tag = 'input window, operand 14, single buffered']
    #allocation26 [shape = 'u8[28672]{0}', space=vmem, size = 0x7000, scoped, tag = 'output window, operand 0, single buffered']
    #allocation28 [shape = 'u32[9]{0}', space=smem, size = 0x24, scoped, tag = 'DMA stride descriptor']
    #allocation30 [shape = 'u32[9]{0}', space=smem, size = 0x24, scoped, tag = 'DMA stride descriptor']
    %20 = vsyncpa [#allocation6], 0
    %21 = vsyncpa [#allocation9], 0
    %22 = vsyncpa [#allocation12], 0
    %23 = vsyncpa [#allocation15], 0
    %24 = vsyncpa [#allocation18], 0
    %25 = vsyncpa [#allocation21], 0
    %26 = vsyncpa [#allocation24], 0
    %27 = vsyncpa [#allocation7], 0
    // Predicated region
    $region2: #{tpu_custom_call.1} parent=1 // pred_check
      _
    $region3: #{tpu_custom_call.1} parent=1 // pred_check_branch
      %29 = sbr.rel (0) target = $region5
    $region4: #{tpu_custom_call.1} parent=1 // pred_region
      %s31 = ssub.s32 128, 128
      %32 = vsyncadd [#allocation6], %s31
      %s34 = sshll.u32 [#allocation5], 4
      %s35 = int_to_ptr.vmem [resolvable:$true] %s34
      %37 = dma.hbm_to_vmem [thread:$0]  %s0, 128, %s35, [#allocation6]
    $region5: #{tpu_custom_call.1} parent=1 // pred_fallthru
      _
    // Predicated region
    $region6: #{tpu_custom_call.1} parent=1 // pred_check
      _
    $region7: #{tpu_custom_call.1} parent=1 // pred_check_branch
      %39 = sbr.rel (0) target = $region9
    $region8: #{tpu_custom_call.1} parent=1 // pred_region
      %s41 = ssub.s32 2048, 2048
      %42 = vsyncadd [#allocation9], %s41
      %s43 = sshll.u32 [#allocation8], 4
      %s44 = int_to_ptr.vmem [resolvable:$true] %s43
      %49 = dma.hbm_to_vmem [thread:$0]  %s1, 2048, %s44, [#allocation9], 128, 128, 8
    $region9: #{tpu_custom_call.1} parent=1 // pred_fallthru
      _
    // Predicated region
    $region10: #{tpu_custom_call.1} parent=1 // pred_check
      _
    $region11: #{tpu_custom_call.1} parent=1 // pred_check_branch
      %51 = sbr.rel (0) target = $region13
    $region12: #{tpu_custom_call.1} parent=1 // pred_region
      %s53 = ssub.s32 32, 32
      %54 = vsyncadd [#allocation9], %s53
      %s56 = sshll.u32 [#allocation10], 4
      %s57 = int_to_ptr.vmem [resolvable:$true] %s56
      %59 = dma.hbm_to_vmem [thread:$0]  %s2, 32, %s57, [#allocation9]
    $region13: #{tpu_custom_call.1} parent=1 // pred_fallthru
      _
    // Predicated region
    $region14: #{tpu_custom_call.1} parent=1 // pred_check
      _
    $region15: #{tpu_custom_call.1} parent=1 // pred_check_branch
      %61 = sbr.rel (0) target = $region17
    $region16: #{tpu_custom_call.1} parent=1 // pred_region
      %s63 = ssub.s32 32, 32
      %64 = vsyncadd [#allocation12], %s63
      %s66 = sshll.u32 [#allocation11], 4
      %s67 = int_to_ptr.vmem [resolvable:$true] %s66
      %69 = dma.hbm_to_vmem [thread:$0]  %s3, 32, %s67, [#allocation12]
    $region17: #{tpu_custom_call.1} parent=1 // pred_fallthru
      _
    // Predicated region
    $region18: #{tpu_custom_call.1} parent=1 // pred_check
      _
    $region19: #{tpu_custom_call.1} parent=1 // pred_check_branch
      %71 = sbr.rel (0) target = $region21
    $region20: #{tpu_custom_call.1} parent=1 // pred_region
      %s73 = ssub.s32 32, 32
      %74 = vsyncadd [#allocation12], %s73
      %s76 = sshll.u32 [#allocation13], 4
      %s77 = int_to_ptr.vmem [resolvable:$true] %s76
      %79 = dma.hbm_to_vmem [thread:$0]  %s4, 32, %s77, [#allocation12]
    $region21: #{tpu_custom_call.1} parent=1 // pred_fallthru
      _
    // Predicated region
    $region22: #{tpu_custom_call.1} parent=1 // pred_check
      _
    $region23: #{tpu_custom_call.1} parent=1 // pred_check_branch
      %81 = sbr.rel (0) target = $region25
    $region24: #{tpu_custom_call.1} parent=1 // pred_region
      %s83 = ssub.s32 8192, 8192
      %84 = vsyncadd [#allocation15], %s83
      %s85 = sshll.u32 [#allocation14], 4
      %s86 = int_to_ptr.vmem [resolvable:$true] %s85
      %91 = dma.hbm_to_vmem [thread:$0]  %s5, 8192, %s86, [#allocation15], 256, 256, 16
    $region25: #{tpu_custom_call.1} parent=1 // pred_fallthru
      _
    // Predicated region
    $region26: #{tpu_custom_call.1} parent=1 // pred_check
      _
    $region27: #{tpu_custom_call.1} parent=1 // pred_check_branch
      %93 = sbr.rel (0) target = $region29
    $region28: #{tpu_custom_call.1} parent=1 // pred_region
      %s95 = ssub.s32 64, 64
      %96 = vsyncadd [#allocation15], %s95
      %s98 = sshll.u32 [#allocation16], 4
      %s99 = int_to_ptr.vmem [resolvable:$true] %s98
      %101 = dma.hbm_to_vmem [thread:$0]  %s6, 64, %s99, [#allocation15]
    $region29: #{tpu_custom_call.1} parent=1 // pred_fallthru
      _
    // Predicated region
    $region30: #{tpu_custom_call.1} parent=1 // pred_check
      _
    $region31: #{tpu_custom_call.1} parent=1 // pred_check_branch
      %103 = sbr.rel (0) target = $region33
    $region32: #{tpu_custom_call.1} parent=1 // pred_region
      %s105 = ssub.s32 64, 64
      %106 = vsyncadd [#allocation18], %s105
      %s108 = sshll.u32 [#allocation17], 4
      %s109 = int_to_ptr.vmem [resolvable:$true] %s108
      %111 = dma.hbm_to_vmem [thread:$0]  %s7, 64, %s109, [#allocation18]
    $region33: #{tpu_custom_call.1} parent=1 // pred_fallthru
      _
    // Predicated region
    $region34: #{tpu_custom_call.1} parent=1 // pred_check
      _
    $region35: #{tpu_custom_call.1} parent=1 // pred_check_branch
      %113 = sbr.rel (0) target = $region37
    $region36: #{tpu_custom_call.1} parent=1 // pred_region
      %s115 = ssub.s32 64, 64
      %116 = vsyncadd [#allocation18], %s115
      %s118 = sshll.u32 [#allocation19], 4
      %s119 = int_to_ptr.vmem [resolvable:$true] %s118
      %121 = dma.hbm_to_vmem [thread:$0]  %s8, 64, %s119, [#allocation18]
    $region37: #{tpu_custom_call.1} parent=1 // pred_fallthru
      _
    // Predicated region
    $region38: #{tpu_custom_call.1} parent=1 // pred_check
      _
    $region39: #{tpu_custom_call.1} parent=1 // pred_check_branch
      %123 = sbr.rel (0) target = $region41
    $region40: #{tpu_custom_call.1} parent=1 // pred_region
      %s125 = ssub.s32 128, 128
      %126 = vsyncadd [#allocation21], %s125
      %s128 = sshll.u32 [#allocation20], 4
      %s129 = int_to_ptr.vmem [resolvable:$true] %s128
      %131 = dma.hbm_to_vmem [thread:$0]  %s10, 128, %s129, [#allocation21]
    $region41: #{tpu_custom_call.1} parent=1 // pred_fallthru
      _
    // Predicated region
    $region42: #{tpu_custom_call.1} parent=1 // pred_check
      _
    $region43: #{tpu_custom_call.1} parent=1 // pred_check_branch
      %133 = sbr.rel (0) target = $region45
    $region44: #{tpu_custom_call.1} parent=1 // pred_region
      %s135 = ssub.s32 128, 128
      %136 = vsyncadd [#allocation21], %s135
      %s138 = sshll.u32 [#allocation22], 4
      %s139 = int_to_ptr.vmem [resolvable:$true] %s138
      %141 = dma.hbm_to_vmem [thread:$0]  %s11, 128, %s139, [#allocation21]
    $region45: #{tpu_custom_call.1} parent=1 // pred_fallthru
      _
    // Predicated region
    $region46: #{tpu_custom_call.1} parent=1 // pred_check
      _
    $region47: #{tpu_custom_call.1} parent=1 // pred_check_branch
      %143 = sbr.rel (0) target = $region49
    $region48: #{tpu_custom_call.1} parent=1 // pred_region
      %s145 = ssub.s32 128, 128
      %146 = vsyncadd [#allocation24], %s145
      %s148 = sshll.u32 [#allocation23], 4
      %s149 = int_to_ptr.vmem [resolvable:$true] %s148
      %151 = dma.hbm_to_vmem [thread:$0]  %s12, 128, %s149, [#allocation24]
    $region49: #{tpu_custom_call.1} parent=1 // pred_fallthru
      _
    // Predicated region
    $region50: #{tpu_custom_call.1} parent=1 // pred_check
      _
    $region51: #{tpu_custom_call.1} parent=1 // pred_check_branch
      %153 = sbr.rel (0) target = $region53
    $region52: #{tpu_custom_call.1} parent=1 // pred_region
      %s155 = ssub.s32 112, 112
      %156 = vsyncadd [#allocation24], %s155
      %s158 = sshll.u32 [#allocation25], 4
      %s159 = int_to_ptr.vmem [resolvable:$true] %s158
      %161 = dma.hbm_to_vmem [thread:$0]  %s14, 112, %s159, [#allocation24]
    $region53: #{tpu_custom_call.1} parent=1 // pred_fallthru
      _
    // Predicated region
    $region54: #{tpu_custom_call.1} parent=1 // pred_check
      _
    $region55: #{tpu_custom_call.1} parent=1 // pred_check_branch
      %163 = sbr.rel (0) target = $region57
    $region56: #{tpu_custom_call.1} parent=1 // pred_region
      %164 = dma.done [#allocation6], 128
    $region57: #{tpu_custom_call.1} parent=1 // pred_fallthru
      _
    // Predicated region
    $region58: #{tpu_custom_call.1} parent=1 // pred_check
      _
    $region59: #{tpu_custom_call.1} parent=1 // pred_check_branch
      %166 = sbr.rel (0) target = $region61
    $region60: #{tpu_custom_call.1} parent=1 // pred_region
      %167 = dma.done [#allocation9], 2048
    $region61: #{tpu_custom_call.1} parent=1 // pred_fallthru
      _
    // Predicated region
    $region62: #{tpu_custom_call.1} parent=1 // pred_check
      _
    $region63: #{tpu_custom_call.1} parent=1 // pred_check_branch
      %169 = sbr.rel (0) target = $region65
    $region64: #{tpu_custom_call.1} parent=1 // pred_region
      %170 = dma.done [#allocation9], 32
    $region65: #{tpu_custom_call.1} parent=1 // pred_fallthru
      _
    // Predicated region
    $region66: #{tpu_custom_call.1} parent=1 // pred_check
      _
    $region67: #{tpu_custom_call.1} parent=1 // pred_check_branch
      %172 = sbr.rel (0) target = $region69
    $region68: #{tpu_custom_call.1} parent=1 // pred_region
      %173 = dma.done [#allocation12], 32
    $region69: #{tpu_custom_call.1} parent=1 // pred_fallthru
      _
    // Predicated region
    $region70: #{tpu_custom_call.1} parent=1 // pred_check
      _
    $region71: #{tpu_custom_call.1} parent=1 // pred_check_branch
      %175 = sbr.rel (0) target = $region73
    $region72: #{tpu_custom_call.1} parent=1 // pred_region
      %176 = dma.done [#allocation12], 32
    $region73: #{tpu_custom_call.1} parent=1 // pred_fallthru
      _
    // Predicated region
    $region74: #{tpu_custom_call.1} parent=1 // pred_check
      _
    $region75: #{tpu_custom_call.1} parent=1 // pred_check_branch
      %178 = sbr.rel (0) target = $region77
    $region76: #{tpu_custom_call.1} parent=1 // pred_region
      %179 = dma.done [#allocation15], 8192
    $region77: #{tpu_custom_call.1} parent=1 // pred_fallthru
      _
    // Predicated region
    $region78: #{tpu_custom_call.1} parent=1 // pred_check
      _
    $region79: #{tpu_custom_call.1} parent=1 // pred_check_branch
      %181 = sbr.rel (0) target = $region81
    $region80: #{tpu_custom_call.1} parent=1 // pred_region
      %182 = dma.done [#allocation15], 64
    $region81: #{tpu_custom_call.1} parent=1 // pred_fallthru
      _
    // Predicated region
    $region82: #{tpu_custom_call.1} parent=1 // pred_check
      _
    $region83: #{tpu_custom_call.1} parent=1 // pred_check_branch
      %184 = sbr.rel (0) target = $region85
    $region84: #{tpu_custom_call.1} parent=1 // pred_region
      %185 = dma.done [#allocation18], 64
    $region85: #{tpu_custom_call.1} parent=1 // pred_fallthru
      _
    // Predicated region
    $region86: #{tpu_custom_call.1} parent=1 // pred_check
      _
    $region87: #{tpu_custom_call.1} parent=1 // pred_check_branch
      %187 = sbr.rel (0) target = $region89
    $region88: #{tpu_custom_call.1} parent=1 // pred_region
      %188 = dma.done [#allocation18], 64
    $region89: #{tpu_custom_call.1} parent=1 // pred_fallthru
      _
    // Predicated region
    $region90: #{tpu_custom_call.1} parent=1 // pred_check
      _
    $region91: #{tpu_custom_call.1} parent=1 // pred_check_branch
      %190 = sbr.rel (0) target = $region93
    $region92: #{tpu_custom_call.1} parent=1 // pred_region
      %191 = dma.done [#allocation21], 128
    $region93: #{tpu_custom_call.1} parent=1 // pred_fallthru
      _
    // Predicated region
    $region94: #{tpu_custom_call.1} parent=1 // pred_check
      _
    $region95: #{tpu_custom_call.1} parent=1 // pred_check_branch
      %193 = sbr.rel (0) target = $region97
    $region96: #{tpu_custom_call.1} parent=1 // pred_region
      %194 = dma.done [#allocation21], 128
    $region97: #{tpu_custom_call.1} parent=1 // pred_fallthru
      _
    // Predicated region
    $region98: #{tpu_custom_call.1} parent=1 // pred_check
      _
    $region99: #{tpu_custom_call.1} parent=1 // pred_check_branch
      %196 = sbr.rel (0) target = $region101
    $region100: #{tpu_custom_call.1} parent=1 // pred_region
      %197 = dma.done [#allocation24], 128
    $region101: #{tpu_custom_call.1} parent=1 // pred_fallthru
      _
    // Predicated region
    $region102: #{tpu_custom_call.1} parent=1 // pred_check
      _
    $region103: #{tpu_custom_call.1} parent=1 // pred_check_branch
      %199 = sbr.rel (0) target = $region105
    $region104: #{tpu_custom_call.1} parent=1 // pred_region
      %200 = dma.done [#allocation24], 112
    $region105: #{tpu_custom_call.1} parent=1 // pred_fallthru
      _
    %s203 = sshll.u32 1, 14
    %s204 = sxor.u32 4294967295, %s203
    %s206 = sld [smem:[#allocation0]]
    %s207 = sadd.s32 2, %s206
    %s209 = sshll.u32 7, 26
    %s210 = sxor.u32 4294967295, %s209
    %s211 = sand.u32 0, %s210
    %s212 = sshll.u32 %s207, 26
    %s213 = sor.u32 %s211, %s212
    %s214 = sshll.u32 [#allocation2], 4
    %s215 = int_to_ptr.vmem [resolvable:$true] %s214
    %218 = sst [smem:[#allocation28]] 1024
    %s219 = scalar_lea.smem [#allocation28], 1
    %220 = sst [smem:[%s219]] 1024
    %s221 = scalar_lea.smem [#allocation28], 2
    %222 = sst [smem:[%s221]] 8
    %s223 = scalar_lea.smem [#allocation28], 3
    %224 = sst [smem:[%s223]] 64
    %s225 = scalar_lea.smem [#allocation28], 4
    %226 = sst [smem:[%s225]] 128
    %s227 = scalar_lea.smem [#allocation28], 5
    %228 = sst [smem:[%s227]] 2
    %s229 = scalar_lea.smem [#allocation28], 6
    %230 = sst [smem:[%s229]] 512
    %s231 = scalar_lea.smem [#allocation28], 7
    %232 = sst [smem:[%s231]] 64
    %s233 = scalar_lea.smem [#allocation28], 8
    %234 = sst [smem:[%s233]] 4
    %236 = dma.general %s9, 32768, %s215, [#allocation4], [#allocation27], [#allocation28], %s213, 0
    %s237 = scalar_lea.sflag [#allocation4], 1
    %s239 = sshll.u32 1, 14
    %s240 = sxor.u32 4294967295, %s239
    %s242 = sadd.s32 2, %s206
    %s244 = sshll.u32 7, 26
    %s245 = sxor.u32 4294967295, %s244
    %s246 = sand.u32 0, %s245
    %s247 = sshll.u32 %s242, 26
    %s248 = sor.u32 %s246, %s247
    %s249 = sshll.u32 [#allocation3], 4
    %s250 = int_to_ptr.vmem [resolvable:$true] %s249
    %253 = sst [smem:[#allocation30]] 896
    %s254 = scalar_lea.smem [#allocation30], 1
    %255 = sst [smem:[%s254]] 896
    %s256 = scalar_lea.smem [#allocation30], 2
    %257 = sst [smem:[%s256]] 7
    %s258 = scalar_lea.smem [#allocation30], 3
    %259 = sst [smem:[%s258]] 64
    %s260 = scalar_lea.smem [#allocation30], 4
    %261 = sst [smem:[%s260]] 128
    %s262 = scalar_lea.smem [#allocation30], 5
    %263 = sst [smem:[%s262]] 2
    %s264 = scalar_lea.smem [#allocation30], 6
    %265 = sst [smem:[%s264]] 448
    %s266 = scalar_lea.smem [#allocation30], 7
    %267 = sst [smem:[%s266]] 64
    %s268 = scalar_lea.smem [#allocation30], 8
    %269 = sst [smem:[%s268]] 4
    %271 = dma.general %s13, 57344, %s250, %s237, [#allocation29], [#allocation30], %s248, 0
    %v272 = vld [vmem:[#allocation5] sm:$0xff]
    %v273 = vld [vmem:[#allocation8] sm:$0xff]
    %v274 = vld [vmem:[#allocation8 + $0x8] sm:$0xff]
    %v275 = vld [vmem:[#allocation8 + $0x10] sm:$0xff]
    %v276 = vld [vmem:[#allocation8 + $0x18] sm:$0xff]
    %v277 = vld [vmem:[#allocation8 + $0x20] sm:$0xff]
    %v278 = vld [vmem:[#allocation8 + $0x28] sm:$0xff]
    %v279 = vld [vmem:[#allocation8 + $0x30] sm:$0xff]
    %v280 = vld [vmem:[#allocation8 + $0x38] sm:$0xff]
    %v281 = vld [vmem:[#allocation8 + $0x40] sm:$0xff]
    %v282 = vld [vmem:[#allocation8 + $0x48] sm:$0xff]
    %v283 = vld [vmem:[#allocation8 + $0x50] sm:$0xff]
    %v284 = vld [vmem:[#allocation8 + $0x58] sm:$0xff]
    %v285 = vld [vmem:[#allocation8 + $0x60] sm:$0xff]
    %v286 = vld [vmem:[#allocation8 + $0x68] sm:$0xff]
    %v287 = vld [vmem:[#allocation8 + $0x70] sm:$0xff]
    %v288 = vld [vmem:[#allocation8 + $0x78] sm:$0xff]
    %v289 = vpack.c.bf16 %v272, %v272
    %v290 = vld [vmem:[#allocation10] sm:$0x3]
    %v292 = vlaneseq
    %v293 = vshrl.u32 %v292, 7
    %v294 = vsub.s32 0, %v293
    %v295 = vrot.slane %v290, %v294
    %v296 = vlaneseq
    %v297 = vshrl.u32 %v296, 7
    %v298 = vsub.s32 1, %v297
    %v299 = vrot.slane %v290, %v298
    %v318 = vunpack.c.l.b16 %v273
    %v319 = vunpack.c.h.b16 %v273
    %v320 = vunpack.c.l.b16 %v274
    %v321 = vunpack.c.h.b16 %v274
    %v322 = vunpack.c.l.b16 %v275
    %v323 = vunpack.c.h.b16 %v275
    %v324 = vunpack.c.l.b16 %v276
    %v325 = vunpack.c.h.b16 %v276
    %v326 = vunpack.c.l.b16 %v277
    %v327 = vunpack.c.h.b16 %v277
    %v328 = vunpack.c.l.b16 %v278
    %v329 = vunpack.c.h.b16 %v278
    %v330 = vunpack.c.l.b16 %v279
    %v331 = vunpack.c.h.b16 %v279
    %v332 = vunpack.c.l.b16 %v280
    %v333 = vunpack.c.h.b16 %v280
    %v334 = vunpack.c.l.b16 %v281
    %v335 = vunpack.c.h.b16 %v281
    %v336 = vunpack.c.l.b16 %v282
    %v337 = vunpack.c.h.b16 %v282
    %v338 = vunpack.c.l.b16 %v283
    %v339 = vunpack.c.h.b16 %v283
    %v340 = vunpack.c.l.b16 %v284
    %v341 = vunpack.c.h.b16 %v284
    %v342 = vunpack.c.l.b16 %v285
    %v343 = vunpack.c.h.b16 %v285
    %v344 = vunpack.c.l.b16 %v286
    %v345 = vunpack.c.h.b16 %v286
    %v346 = vunpack.c.l.b16 %v287
    %v347 = vunpack.c.h.b16 %v287
    %v348 = vunpack.c.l.b16 %v288
    %v349 = vunpack.c.h.b16 %v288
    %v350 = vpack.c.b16 %v320, %v318
    %v351 = vpack.c.b16 %v321, %v319
    %v352 = vpack.c.b16 %v324, %v322
    %v353 = vpack.c.b16 %v325, %v323
    %v354 = vpack.c.b16 %v328, %v326
    %v355 = vpack.c.b16 %v329, %v327
    %v356 = vpack.c.b16 %v332, %v330
    %v357 = vpack.c.b16 %v333, %v331
    %v358 = vpack.c.b16 %v336, %v334
    %v359 = vpack.c.b16 %v337, %v335
    %v360 = vpack.c.b16 %v340, %v338
    %v361 = vpack.c.b16 %v341, %v339
    %v362 = vpack.c.b16 %v344, %v342
    %v363 = vpack.c.b16 %v345, %v343
    %v364 = vpack.c.b16 %v348, %v346
    %v365 = vpack.c.b16 %v349, %v347
    %382 = vmatprep.subr.bf16.mxu0 %v351
    %383 = vmatpush1.bf16.msra.mxu0 %v350
    %384 = vmatprep.subr.bf16.mxu0 %v353
    %385 = vmatpush1.bf16.msra.mxu0 %v352
    %386 = vmatprep.subr.bf16.mxu0 %v355
    %387 = vmatpush1.bf16.msra.mxu0 %v354
    %388 = vmatprep.subr.bf16.mxu0 %v357
    %389 = vmatpush1.bf16.msra.mxu0 %v356
    %390 = vmatprep.subr.bf16.mxu0 %v359
    %391 = vmatpush1.bf16.msra.mxu0 %v358
    %392 = vmatprep.subr.bf16.mxu0 %v361
    %393 = vmatpush1.bf16.msra.mxu0 %v360
    %394 = vmatprep.subr.bf16.mxu0 %v363
    %395 = vmatpush1.bf16.msra.mxu0 %v362
    %396 = vmatprep.subr.bf16.mxu0 %v365
    %397 = vmatpush1.bf16.msra.mxu0 %v364
    %398 = vmatprep.subr.bf16.mxu0 0
    %399 = vmatpush1.bf16.msra.mxu0 0
    %400 = vmatprep.subr.bf16.mxu0 0
    %401 = vmatpush1.bf16.msra.mxu0 0
    %402 = vmatprep.subr.bf16.mxu0 0
    %403 = vmatpush1.bf16.msra.mxu0 0
    %404 = vmatprep.subr.bf16.mxu0 0
    %405 = vmatpush1.bf16.msra.mxu0 0
    %406 = vmatprep.subr.bf16.mxu0 0
    %407 = vmatpush1.bf16.msra.mxu0 0
    %408 = vmatprep.subr.bf16.mxu0 0
    %409 = vmatpush1.bf16.msra.mxu0 0
    %410 = vmatprep.subr.bf16.mxu0 0
    %411 = vmatpush1.bf16.msra.mxu0 0
    %412 = vmatprep.subr.bf16.mxu0 0
    %413 = vmatpush1.bf16.msra.mxu0 0
    %414 = vmatprep.mubr.bf16.mxu0 0
    %415 = vmatmul.mubr.bf16.gmra.mrb[0].mxu0 %v289
    %v416 = vpop.f32.mrb[0].mxu0
    %v417 = vadd.f32 %v295, %v416
    %v418 = vpop.f32.mrb[0].mxu0
    %v419 = vadd.f32 %v299, %v418
    %v420 = vpop.f32.mrb[0].mxu0
    %v421 = vpop.f32.mrb[0].mxu0
    %422 = vdwg.mxu0
    %vm423 = vcmp.gt.f32.partialorder %v417, 0.0
    %vm424 = vcmp.gt.f32.partialorder %v419, 0.0
    %v425 = vmul.f32 %v417, 0.2
    %v426 = vmul.f32 %v419, 0.2
    %v427 = vsel %vm423, %v417, %v425
    %v428 = vsel %vm424, %v419, %v426
    %v429 = vld [vmem:[#allocation11] sm:$0x3]
    %v430 = vld [vmem:[#allocation13] sm:$0x3]
    %v431 = vrot.slane %v427, 4
    %v432 = vadd.f32 %v427, %v431
    %v433 = vrot.slane %v432, 2
    %v434 = vadd.f32 %v432, %v433
    %v435 = vrot.slane %v434, 1
    %v436 = vadd.f32 %v434, %v435
    %v437 = vrot.slane %v428, 4
    %v438 = vadd.f32 %v428, %v437
    %v439 = vrot.slane %v438, 2
    %v440 = vadd.f32 %v438, %v439
    %v441 = vrot.slane %v440, 1
    %v442 = vadd.f32 %v440, %v441
    %v443 = vrcp.pop 8.0
    %v444 = vmul.f32 %v436, %v443
    %v445 = vmul.f32 %v442, %v443
    %v446 = vmul.f32 %v427, %v427
    %v447 = vmul.f32 %v428, %v428
    %v448 = vrot.slane %v446, 4
    %v449 = vadd.f32 %v446, %v448
    %v450 = vrot.slane %v449, 2
    %v451 = vadd.f32 %v449, %v450
    %v452 = vrot.slane %v451, 1
    %v453 = vadd.f32 %v451, %v452
    %v454 = vrot.slane %v447, 4
    %v455 = vadd.f32 %v447, %v454
    %v456 = vrot.slane %v455, 2
    %v457 = vadd.f32 %v455, %v456
    %v458 = vrot.slane %v457, 1
    %v459 = vadd.f32 %v457, %v458
    %v460 = vmul.f32 %v453, %v443
    %v461 = vmul.f32 %v459, %v443
    %v462 = vmul.f32 %v444, %v444
    %v463 = vmul.f32 %v445, %v445
    %v464 = vsub.f32 %v460, %v462
    %v465 = vsub.f32 %v461, %v463
    %v466 = vmax.f32 %v464, 0.0
    %v467 = vmax.f32 %v465, 0.0
    %v468 = vadd.f32 %v466, 1e-05
    %v469 = vadd.f32 %v467, 1e-05
    %v470 = vrsqrt.pop %v468
    %v471 = vrsqrt.pop %v469
    %v474 = vcombine.low %v470, %v471
    %v476 = vunpack.c.l.s4 1966171168
    %v477 = vunpack.c.0.s8 %v476
    %v478 = vlaneseq
    %v479 = vshrl.u32 %v478, 7
    %v480 = vsub.s32 %v477, %v479
    %v481 = vrot.slane %v474, %v480
    %v483 = vunpack.c.l.s4 1966171168
    %v484 = vunpack.c.0.s8 %v483
    %v485 = vlaneseq
    %v486 = vshrl.u32 %v485, 7
    %v487 = vsub.s32 %v484, %v486
    %v488 = vrot.slane %v481, %v487
    %v490 = vmul.f32 %v429, %v488
    %v492 = vlaneseq
    %v493 = vshrl.u32 %v492, 7
    %v494 = vsub.s32 0, %v493
    %v495 = vrot.slane %v490, %v494
    %v496 = vlaneseq
    %v497 = vshrl.u32 %v496, 7
    %v498 = vsub.s32 1, %v497
    %v499 = vrot.slane %v490, %v498
    %v502 = vmul.f32 %v444, %v495
    %v503 = vmul.f32 %v445, %v499
    %v506 = vcombine.low %v502, %v503
    %v508 = vunpack.c.l.s4 1966171168
    %v509 = vunpack.c.0.s8 %v508
    %v510 = vlaneseq
    %v511 = vshrl.u32 %v510, 7
    %v512 = vsub.s32 %v509, %v511
    %v513 = vrot.slane %v506, %v512
    %v515 = vunpack.c.l.s4 1966171168
    %v516 = vunpack.c.0.s8 %v515
    %v517 = vlaneseq
    %v518 = vshrl.u32 %v517, 7
    %v519 = vsub.s32 %v516, %v518
    %v520 = vrot.slane %v513, %v519
    %v522 = vsub.f32 %v430, %v520
    %v523 = vmul.f32 %v427, %v495
    %v524 = vmul.f32 %v428, %v499
    %v526 = vlaneseq
    %v527 = vshrl.u32 %v526, 7
    %v528 = vsub.s32 0, %v527
    %v529 = vrot.slane %v522, %v528
    %v530 = vlaneseq
    %v531 = vshrl.u32 %v530, 7
    %v532 = vsub.s32 1, %v531
    %v533 = vrot.slane %v522, %v532
    %v536 = vadd.f32 %v523, %v529
    %v537 = vadd.f32 %v524, %v533
    %v538 = vld [vmem:[#allocation14] sm:$0xff]
    %v539 = vld [vmem:[#allocation14 + $0x8] sm:$0xff]
    %v540 = vld [vmem:[#allocation14 + $0x10] sm:$0xff]
    %v541 = vld [vmem:[#allocation14 + $0x18] sm:$0xff]
    %v542 = vld [vmem:[#allocation14 + $0x20] sm:$0xff]
    %v543 = vld [vmem:[#allocation14 + $0x28] sm:$0xff]
    %v544 = vld [vmem:[#allocation14 + $0x30] sm:$0xff]
    %v545 = vld [vmem:[#allocation14 + $0x38] sm:$0xff]
    %v546 = vld [vmem:[#allocation14 + $0x40] sm:$0xff]
    %v547 = vld [vmem:[#allocation14 + $0x48] sm:$0xff]
    %v548 = vld [vmem:[#allocation14 + $0x50] sm:$0xff]
    %v549 = vld [vmem:[#allocation14 + $0x58] sm:$0xff]
    %v550 = vld [vmem:[#allocation14 + $0x60] sm:$0xff]
    %v551 = vld [vmem:[#allocation14 + $0x68] sm:$0xff]
    %v552 = vld [vmem:[#allocation14 + $0x70] sm:$0xff]
    %v553 = vld [vmem:[#allocation14 + $0x78] sm:$0xff]
    %v554 = vld [vmem:[#allocation14 + $0x80] sm:$0xff]
    %v555 = vld [vmem:[#allocation14 + $0x88] sm:$0xff]
    %v556 = vld [vmem:[#allocation14 + $0x90] sm:$0xff]
    %v557 = vld [vmem:[#allocation14 + $0x98] sm:$0xff]
    %v558 = vld [vmem:[#allocation14 + $0xa0] sm:$0xff]
    %v559 = vld [vmem:[#allocation14 + $0xa8] sm:$0xff]
    %v560 = vld [vmem:[#allocation14 + $0xb0] sm:$0xff]
    %v561 = vld [vmem:[#allocation14 + $0xb8] sm:$0xff]
    %v562 = vld [vmem:[#allocation14 + $0xc0] sm:$0xff]
    %v563 = vld [vmem:[#allocation14 + $0xc8] sm:$0xff]
    %v564 = vld [vmem:[#allocation14 + $0xd0] sm:$0xff]
    %v565 = vld [vmem:[#allocation14 + $0xd8] sm:$0xff]
    %v566 = vld [vmem:[#allocation14 + $0xe0] sm:$0xff]
    %v567 = vld [vmem:[#allocation14 + $0xe8] sm:$0xff]
    %v568 = vld [vmem:[#allocation14 + $0xf0] sm:$0xff]
    %v569 = vld [vmem:[#allocation14 + $0xf8] sm:$0xff]
    %v570 = vld [vmem:[#allocation14 + $0x100] sm:$0xff]
    %v571 = vld [vmem:[#allocation14 + $0x108] sm:$0xff]
    %v572 = vld [vmem:[#allocation14 + $0x110] sm:$0xff]
    %v573 = vld [vmem:[#allocation14 + $0x118] sm:$0xff]
    %v574 = vld [vmem:[#allocation14 + $0x120] sm:$0xff]
    %v575 = vld [vmem:[#allocation14 + $0x128] sm:$0xff]
    %v576 = vld [vmem:[#allocation14 + $0x130] sm:$0xff]
    %v577 = vld [vmem:[#allocation14 + $0x138] sm:$0xff]
    %v578 = vld [vmem:[#allocation14 + $0x140] sm:$0xff]
    %v579 = vld [vmem:[#allocation14 + $0x148] sm:$0xff]
    %v580 = vld [vmem:[#allocation14 + $0x150] sm:$0xff]
    %v581 = vld [vmem:[#allocation14 + $0x158] sm:$0xff]
    %v582 = vld [vmem:[#allocation14 + $0x160] sm:$0xff]
    %v583 = vld [vmem:[#allocation14 + $0x168] sm:$0xff]
    %v584 = vld [vmem:[#allocation14 + $0x170] sm:$0xff]
    %v585 = vld [vmem:[#allocation14 + $0x178] sm:$0xff]
    %v586 = vld [vmem:[#allocation14 + $0x180] sm:$0xff]
    %v587 = vld [vmem:[#allocation14 + $0x188] sm:$0xff]
    %v588 = vld [vmem:[#allocation14 + $0x190] sm:$0xff]
    %v589 = vld [vmem:[#allocation14 + $0x198] sm:$0xff]
    %v590 = vld [vmem:[#allocation14 + $0x1a0] sm:$0xff]
    %v591 = vld [vmem:[#allocation14 + $0x1a8] sm:$0xff]
    %v592 = vld [vmem:[#allocation14 + $0x1b0] sm:$0xff]
    %v593 = vld [vmem:[#allocation14 + $0x1b8] sm:$0xff]
    %v594 = vld [vmem:[#allocation14 + $0x1c0] sm:$0xff]
    %v595 = vld [vmem:[#allocation14 + $0x1c8] sm:$0xff]
    %v596 = vld [vmem:[#allocation14 + $0x1d0] sm:$0xff]
    %v597 = vld [vmem:[#allocation14 + $0x1d8] sm:$0xff]
    %v598 = vld [vmem:[#allocation14 + $0x1e0] sm:$0xff]
    %v599 = vld [vmem:[#allocation14 + $0x1e8] sm:$0xff]
    %v600 = vld [vmem:[#allocation14 + $0x1f0] sm:$0xff]
    %v601 = vld [vmem:[#allocation14 + $0x1f8] sm:$0xff]
    %v602 = vpack.c.bf16 %v536, %v536
    %v603 = vpack.c.bf16 %v537, %v537
    %v604 = vld [vmem:[#allocation16] sm:$0xf]
    %v606 = vlaneseq
    %v607 = vshrl.u32 %v606, 7
    %v608 = vsub.s32 0, %v607
    %v609 = vrot.slane %v604, %v608
    %v610 = vlaneseq
    %v611 = vshrl.u32 %v610, 7
    %v612 = vsub.s32 1, %v611
    %v613 = vrot.slane %v604, %v612
    %v614 = vlaneseq
    %v615 = vshrl.u32 %v614, 7
    %v616 = vsub.s32 2, %v615
    %v617 = vrot.slane %v604, %v616
    %v618 = vlaneseq
    %v619 = vshrl.u32 %v618, 7
    %v620 = vsub.s32 3, %v619
    %v621 = vrot.slane %v604, %v620
    %v690 = vunpack.c.l.b16 %v538
    %v691 = vunpack.c.h.b16 %v538
    %v692 = vunpack.c.l.b16 %v539
    %v693 = vunpack.c.h.b16 %v539
    %v694 = vunpack.c.l.b16 %v540
    %v695 = vunpack.c.h.b16 %v540
    %v696 = vunpack.c.l.b16 %v541
    %v697 = vunpack.c.h.b16 %v541
    %v698 = vunpack.c.l.b16 %v542
    %v699 = vunpack.c.h.b16 %v542
    %v700 = vunpack.c.l.b16 %v543
    %v701 = vunpack.c.h.b16 %v543
    %v702 = vunpack.c.l.b16 %v544
    %v703 = vunpack.c.h.b16 %v544
    %v704 = vunpack.c.l.b16 %v545
    %v705 = vunpack.c.h.b16 %v545
    %v706 = vunpack.c.l.b16 %v546
    %v707 = vunpack.c.h.b16 %v546
    %v708 = vunpack.c.l.b16 %v547
    %v709 = vunpack.c.h.b16 %v547
    %v710 = vunpack.c.l.b16 %v548
    %v711 = vunpack.c.h.b16 %v548
    %v712 = vunpack.c.l.b16 %v549
    %v713 = vunpack.c.h.b16 %v549
    %v714 = vunpack.c.l.b16 %v550
    %v715 = vunpack.c.h.b16 %v550
    %v716 = vunpack.c.l.b16 %v551
    %v717 = vunpack.c.h.b16 %v551
    %v718 = vunpack.c.l.b16 %v552
    %v719 = vunpack.c.h.b16 %v552
    %v720 = vunpack.c.l.b16 %v553
    %v721 = vunpack.c.h.b16 %v553
    %v722 = vunpack.c.l.b16 %v554
    %v723 = vunpack.c.h.b16 %v554
    %v724 = vunpack.c.l.b16 %v555
    %v725 = vunpack.c.h.b16 %v555
    %v726 = vunpack.c.l.b16 %v556
    %v727 = vunpack.c.h.b16 %v556
    %v728 = vunpack.c.l.b16 %v557
    %v729 = vunpack.c.h.b16 %v557
    %v730 = vunpack.c.l.b16 %v558
    %v731 = vunpack.c.h.b16 %v558
    %v732 = vunpack.c.l.b16 %v559
    %v733 = vunpack.c.h.b16 %v559
    %v734 = vunpack.c.l.b16 %v560
    %v735 = vunpack.c.h.b16 %v560
    %v736 = vunpack.c.l.b16 %v561
    %v737 = vunpack.c.h.b16 %v561
    %v738 = vunpack.c.l.b16 %v562
    %v739 = vunpack.c.h.b16 %v562
    %v740 = vunpack.c.l.b16 %v563
    %v741 = vunpack.c.h.b16 %v563
    %v742 = vunpack.c.l.b16 %v564
    %v743 = vunpack.c.h.b16 %v564
    %v744 = vunpack.c.l.b16 %v565
    %v745 = vunpack.c.h.b16 %v565
    %v746 = vunpack.c.l.b16 %v566
    %v747 = vunpack.c.h.b16 %v566
    %v748 = vunpack.c.l.b16 %v567
    %v749 = vunpack.c.h.b16 %v567
    %v750 = vunpack.c.l.b16 %v568
    %v751 = vunpack.c.h.b16 %v568
    %v752 = vunpack.c.l.b16 %v569
    %v753 = vunpack.c.h.b16 %v569
    %v754 = vunpack.c.l.b16 %v570
    %v755 = vunpack.c.h.b16 %v570
    %v756 = vunpack.c.l.b16 %v571
    %v757 = vunpack.c.h.b16 %v571
    %v758 = vunpack.c.l.b16 %v572
    %v759 = vunpack.c.h.b16 %v572
    %v760 = vunpack.c.l.b16 %v573
    %v761 = vunpack.c.h.b16 %v573
    %v762 = vunpack.c.l.b16 %v574
    %v763 = vunpack.c.h.b16 %v574
    %v764 = vunpack.c.l.b16 %v575
    %v765 = vunpack.c.h.b16 %v575
    %v766 = vunpack.c.l.b16 %v576
    %v767 = vunpack.c.h.b16 %v576
    %v768 = vunpack.c.l.b16 %v577
    %v769 = vunpack.c.h.b16 %v577
    %v770 = vunpack.c.l.b16 %v578
    %v771 = vunpack.c.h.b16 %v578
    %v772 = vunpack.c.l.b16 %v579
    %v773 = vunpack.c.h.b16 %v579
    %v774 = vunpack.c.l.b16 %v580
    %v775 = vunpack.c.h.b16 %v580
    %v776 = vunpack.c.l.b16 %v581
    %v777 = vunpack.c.h.b16 %v581
    %v778 = vunpack.c.l.b16 %v582
    %v779 = vunpack.c.h.b16 %v582
    %v780 = vunpack.c.l.b16 %v583
    %v781 = vunpack.c.h.b16 %v583
    %v782 = vunpack.c.l.b16 %v584
    %v783 = vunpack.c.h.b16 %v584
    %v784 = vunpack.c.l.b16 %v585
    %v785 = vunpack.c.h.b16 %v585
    %v786 = vunpack.c.l.b16 %v586
    %v787 = vunpack.c.h.b16 %v586
    %v788 = vunpack.c.l.b16 %v587
    %v789 = vunpack.c.h.b16 %v587
    %v790 = vunpack.c.l.b16 %v588
    %v791 = vunpack.c.h.b16 %v588
    %v792 = vunpack.c.l.b16 %v589
    %v793 = vunpack.c.h.b16 %v589
    %v794 = vunpack.c.l.b16 %v590
    %v795 = vunpack.c.h.b16 %v590
    %v796 = vunpack.c.l.b16 %v591
    %v797 = vunpack.c.h.b16 %v591
    %v798 = vunpack.c.l.b16 %v592
    %v799 = vunpack.c.h.b16 %v592
    %v800 = vunpack.c.l.b16 %v593
    %v801 = vunpack.c.h.b16 %v593
    %v802 = vunpack.c.l.b16 %v594
    %v803 = vunpack.c.h.b16 %v594
    %v804 = vunpack.c.l.b16 %v595
    %v805 = vunpack.c.h.b16 %v595
    %v806 = vunpack.c.l.b16 %v596
    %v807 = vunpack.c.h.b16 %v596
    %v808 = vunpack.c.l.b16 %v597
    %v809 = vunpack.c.h.b16 %v597
    %v810 = vunpack.c.l.b16 %v598
    %v811 = vunpack.c.h.b16 %v598
    %v812 = vunpack.c.l.b16 %v599
    %v813 = vunpack.c.h.b16 %v599
    %v814 = vunpack.c.l.b16 %v600
    %v815 = vunpack.c.h.b16 %v600
    %v816 = vunpack.c.l.b16 %v601
    %v817 = vunpack.c.h.b16 %v601
    %v818 = vpack.c.b16 %v694, %v690
    %v819 = vpack.c.b16 %v695, %v691
    %v820 = vpack.c.b16 %v696, %v692
    %v821 = vpack.c.b16 %v697, %v693
    %v822 = vpack.c.b16 %v702, %v698
    %v823 = vpack.c.b16 %v703, %v699
    %v824 = vpack.c.b16 %v704, %v700
    %v825 = vpack.c.b16 %v705, %v701
    %v826 = vpack.c.b16 %v710, %v706
    %v827 = vpack.c.b16 %v711, %v707
    %v828 = vpack.c.b16 %v712, %v708
    %v829 = vpack.c.b16 %v713, %v709
    %v830 = vpack.c.b16 %v718, %v714
    %v831 = vpack.c.b16 %v719, %v715
    %v832 = vpack.c.b16 %v720, %v716
    %v833 = vpack.c.b16 %v721, %v717
    %v834 = vpack.c.b16 %v726, %v722
    %v835 = vpack.c.b16 %v727, %v723
    %v836 = vpack.c.b16 %v728, %v724
    %v837 = vpack.c.b16 %v729, %v725
    %v838 = vpack.c.b16 %v734, %v730
    %v839 = vpack.c.b16 %v735, %v731
    %v840 = vpack.c.b16 %v736, %v732
    %v841 = vpack.c.b16 %v737, %v733
    %v842 = vpack.c.b16 %v742, %v738
    %v843 = vpack.c.b16 %v743, %v739
    %v844 = vpack.c.b16 %v744, %v740
    %v845 = vpack.c.b16 %v745, %v741
    %v846 = vpack.c.b16 %v750, %v746
    %v847 = vpack.c.b16 %v751, %v747
    %v848 = vpack.c.b16 %v752, %v748
    %v849 = vpack.c.b16 %v753, %v749
    %v850 = vpack.c.b16 %v758, %v754
    %v851 = vpack.c.b16 %v759, %v755
    %v852 = vpack.c.b16 %v760, %v756
    %v853 = vpack.c.b16 %v761, %v757
    %v854 = vpack.c.b16 %v766, %v762
    %v855 = vpack.c.b16 %v767, %v763
    %v856 = vpack.c.b16 %v768, %v764
    %v857 = vpack.c.b16 %v769, %v765
    %v858 = vpack.c.b16 %v774, %v770
    %v859 = vpack.c.b16 %v775, %v771
    %v860 = vpack.c.b16 %v776, %v772
    %v861 = vpack.c.b16 %v777, %v773
    %v862 = vpack.c.b16 %v782, %v778
    %v863 = vpack.c.b16 %v783, %v779
    %v864 = vpack.c.b16 %v784, %v780
    %v865 = vpack.c.b16 %v785, %v781
    %v866 = vpack.c.b16 %v790, %v786
    %v867 = vpack.c.b16 %v791, %v787
    %v868 = vpack.c.b16 %v792, %v788
    %v869 = vpack.c.b16 %v793, %v789
    %v870 = vpack.c.b16 %v798, %v794
    %v871 = vpack.c.b16 %v799, %v795
    %v872 = vpack.c.b16 %v800, %v796
    %v873 = vpack.c.b16 %v801, %v797
    %v874 = vpack.c.b16 %v806, %v802
    %v875 = vpack.c.b16 %v807, %v803
    %v876 = vpack.c.b16 %v808, %v804
    %v877 = vpack.c.b16 %v809, %v805
    %v878 = vpack.c.b16 %v814, %v810
    %v879 = vpack.c.b16 %v815, %v811
    %v880 = vpack.c.b16 %v816, %v812
    %v881 = vpack.c.b16 %v817, %v813
    %946 = vmatprep.subr.bf16.mxu0 %v819
    %947 = vmatpush1.bf16.msra.mxu0 %v818
    %948 = vmatprep.subr.bf16.mxu0 %v823
    %949 = vmatpush1.bf16.msra.mxu0 %v822
    %950 = vmatprep.subr.bf16.mxu0 %v827
    %951 = vmatpush1.bf16.msra.mxu0 %v826
    %952 = vmatprep.subr.bf16.mxu0 %v831
    %953 = vmatpush1.bf16.msra.mxu0 %v830
    %954 = vmatprep.subr.bf16.mxu0 %v835
    %955 = vmatpush1.bf16.msra.mxu0 %v834
    %956 = vmatprep.subr.bf16.mxu0 %v839
    %957 = vmatpush1.bf16.msra.mxu0 %v838
    %958 = vmatprep.subr.bf16.mxu0 %v843
    %959 = vmatpush1.bf16.msra.mxu0 %v842
    %960 = vmatprep.subr.bf16.mxu0 %v847
    %961 = vmatpush1.bf16.msra.mxu0 %v846
    %962 = vmatprep.subr.bf16.mxu0 %v851
    %963 = vmatpush1.bf16.msra.mxu0 %v850
    %964 = vmatprep.subr.bf16.mxu0 %v855
    %965 = vmatpush1.bf16.msra.mxu0 %v854
    %966 = vmatprep.subr.bf16.mxu0 %v859
    %967 = vmatpush1.bf16.msra.mxu0 %v858
    %968 = vmatprep.subr.bf16.mxu0 %v863
    %969 = vmatpush1.bf16.msra.mxu0 %v862
    %970 = vmatprep.subr.bf16.mxu0 %v867
    %971 = vmatpush1.bf16.msra.mxu0 %v866
    %972 = vmatprep.subr.bf16.mxu0 %v871
    %973 = vmatpush1.bf16.msra.mxu0 %v870
    %974 = vmatprep.subr.bf16.mxu0 %v875
    %975 = vmatpush1.bf16.msra.mxu0 %v874
    %976 = vmatprep.subr.bf16.mxu0 %v879
    %977 = vmatpush1.bf16.msra.mxu0 %v878
    %978 = vmatprep.mubr.bf16.mxu0 %v603
    %979 = vmatmul.mubr.bf16.gmra.mrb[0].mxu0 %v602
    %v980 = vpop.f32.mrb[0].mxu0
    %v981 = vadd.f32 %v609, %v980
    %v982 = vpop.f32.mrb[0].mxu0
    %v983 = vadd.f32 %v613, %v982
    %v984 = vpop.f32.mrb[0].mxu0
    %v985 = vpop.f32.mrb[0].mxu0
    %986 = vdwg.mxu0
    %987 = vmatprep.subr.bf16.mxu0 %v821
    %988 = vmatpush1.bf16.msra.mxu0 %v820
    %989 = vmatprep.subr.bf16.mxu0 %v825
    %990 = vmatpush1.bf16.msra.mxu0 %v824
    %991 = vmatprep.subr.bf16.mxu0 %v829
    %992 = vmatpush1.bf16.msra.mxu0 %v828
    %993 = vmatprep.subr.bf16.mxu0 %v833
    %994 = vmatpush1.bf16.msra.mxu0 %v832
    %995 = vmatprep.subr.bf16.mxu0 %v837
    %996 = vmatpush1.bf16.msra.mxu0 %v836
    %997 = vmatprep.subr.bf16.mxu0 %v841
    %998 = vmatpush1.bf16.msra.mxu0 %v840
    %999 = vmatprep.subr.bf16.mxu0 %v845
    %1000 = vmatpush1.bf16.msra.mxu0 %v844
    %1001 = vmatprep.subr.bf16.mxu0 %v849
    %1002 = vmatpush1.bf16.msra.mxu0 %v848
    %1003 = vmatprep.subr.bf16.mxu0 %v853
    %1004 = vmatpush1.bf16.msra.mxu0 %v852
    %1005 = vmatprep.subr.bf16.mxu0 %v857
    %1006 = vmatpush1.bf16.msra.mxu0 %v856
    %1007 = vmatprep.subr.bf16.mxu0 %v861
    %1008 = vmatpush1.bf16.msra.mxu0 %v860
    %1009 = vmatprep.subr.bf16.mxu0 %v865
    %1010 = vmatpush1.bf16.msra.mxu0 %v864
    %1011 = vmatprep.subr.bf16.mxu0 %v869
    %1012 = vmatpush1.bf16.msra.mxu0 %v868
    %1013 = vmatprep.subr.bf16.mxu0 %v873
    %1014 = vmatpush1.bf16.msra.mxu0 %v872
    %1015 = vmatprep.subr.bf16.mxu0 %v877
    %1016 = vmatpush1.bf16.msra.mxu0 %v876
    %1017 = vmatprep.subr.bf16.mxu0 %v881
    %1018 = vmatpush1.bf16.msra.mxu0 %v880
    %1019 = vmatprep.mubr.bf16.mxu0 %v603
    %1020 = vmatmul.mubr.bf16.gmra.mrb[0].mxu0 %v602
    %v1021 = vpop.f32.mrb[0].mxu0
    %v1022 = vadd.f32 %v617, %v1021
    %v1023 = vpop.f32.mrb[0].mxu0
    %v1024 = vadd.f32 %v621, %v1023
    %v1025 = vpop.f32.mrb[0].mxu0
    %v1026 = vpop.f32.mrb[0].mxu0
    %1027 = vdwg.mxu0
    %vm1028 = vcmp.gt.f32.partialorder %v981, 0.0
    %vm1029 = vcmp.gt.f32.partialorder %v983, 0.0
    %vm1030 = vcmp.gt.f32.partialorder %v1022, 0.0
    %vm1031 = vcmp.gt.f32.partialorder %v1024, 0.0
    %v1032 = vmul.f32 %v981, 0.2
    %v1033 = vmul.f32 %v983, 0.2
    %v1034 = vmul.f32 %v1022, 0.2
    %v1035 = vmul.f32 %v1024, 0.2
    %v1036 = vsel %vm1028, %v981, %v1032
    %v1037 = vsel %vm1029, %v983, %v1033
    %v1038 = vsel %vm1030, %v1022, %v1034
    %v1039 = vsel %vm1031, %v1024, %v1035
    %v1040 = vld [vmem:[#allocation17] sm:$0xf]
    %v1041 = vld [vmem:[#allocation19] sm:$0xf]
    %v1042 = vrot.slane %v1036, 4
    %v1043 = vadd.f32 %v1036, %v1042
    %v1044 = vrot.slane %v1043, 2
    %v1045 = vadd.f32 %v1043, %v1044
    %v1046 = vrot.slane %v1045, 1
    %v1047 = vadd.f32 %v1045, %v1046
    %v1048 = vrot.slane %v1037, 4
    %v1049 = vadd.f32 %v1037, %v1048
    %v1050 = vrot.slane %v1049, 2
    %v1051 = vadd.f32 %v1049, %v1050
    %v1052 = vrot.slane %v1051, 1
    %v1053 = vadd.f32 %v1051, %v1052
    %v1054 = vrot.slane %v1038, 4
    %v1055 = vadd.f32 %v1038, %v1054
    %v1056 = vrot.slane %v1055, 2
    %v1057 = vadd.f32 %v1055, %v1056
    %v1058 = vrot.slane %v1057, 1
    %v1059 = vadd.f32 %v1057, %v1058
    %v1060 = vrot.slane %v1039, 4
    %v1061 = vadd.f32 %v1039, %v1060
    %v1062 = vrot.slane %v1061, 2
    %v1063 = vadd.f32 %v1061, %v1062
    %v1064 = vrot.slane %v1063, 1
    %v1065 = vadd.f32 %v1063, %v1064
    %v1066 = vmul.f32 %v1047, %v443
    %v1067 = vmul.f32 %v1053, %v443
    %v1068 = vmul.f32 %v1059, %v443
    %v1069 = vmul.f32 %v1065, %v443
    %v1070 = vmul.f32 %v1036, %v1036
    %v1071 = vmul.f32 %v1037, %v1037
    %v1072 = vmul.f32 %v1038, %v1038
    %v1073 = vmul.f32 %v1039, %v1039
    %v1074 = vrot.slane %v1070, 4
    %v1075 = vadd.f32 %v1070, %v1074
    %v1076 = vrot.slane %v1075, 2
    %v1077 = vadd.f32 %v1075, %v1076
    %v1078 = vrot.slane %v1077, 1
    %v1079 = vadd.f32 %v1077, %v1078
    %v1080 = vrot.slane %v1071, 4
    %v1081 = vadd.f32 %v1071, %v1080
    %v1082 = vrot.slane %v1081, 2
    %v1083 = vadd.f32 %v1081, %v1082
    %v1084 = vrot.slane %v1083, 1
    %v1085 = vadd.f32 %v1083, %v1084
    %v1086 = vrot.slane %v1072, 4
    %v1087 = vadd.f32 %v1072, %v1086
    %v1088 = vrot.slane %v1087, 2
    %v1089 = vadd.f32 %v1087, %v1088
    %v1090 = vrot.slane %v1089, 1
    %v1091 = vadd.f32 %v1089, %v1090
    %v1092 = vrot.slane %v1073, 4
    %v1093 = vadd.f32 %v1073, %v1092
    %v1094 = vrot.slane %v1093, 2
    %v1095 = vadd.f32 %v1093, %v1094
    %v1096 = vrot.slane %v1095, 1
    %v1097 = vadd.f32 %v1095, %v1096
    %v1098 = vmul.f32 %v1079, %v443
    %v1099 = vmul.f32 %v1085, %v443
    %v1100 = vmul.f32 %v1091, %v443
    %v1101 = vmul.f32 %v1097, %v443
    %v1102 = vmul.f32 %v1066, %v1066
    %v1103 = vmul.f32 %v1067, %v1067
    %v1104 = vmul.f32 %v1068, %v1068
    %v1105 = vmul.f32 %v1069, %v1069
    %v1106 = vsub.f32 %v1098, %v1102
    %v1107 = vsub.f32 %v1099, %v1103
    %v1108 = vsub.f32 %v1100, %v1104
    %v1109 = vsub.f32 %v1101, %v1105
    %v1110 = vmax.f32 %v1106, 0.0
    %v1111 = vmax.f32 %v1107, 0.0
    %v1112 = vmax.f32 %v1108, 0.0
    %v1113 = vmax.f32 %v1109, 0.0
    %v1114 = vadd.f32 %v1110, 1e-05
    %v1115 = vadd.f32 %v1111, 1e-05
    %v1116 = vadd.f32 %v1112, 1e-05
    %v1117 = vadd.f32 %v1113, 1e-05
    %v1118 = vrsqrt.pop %v1114
    %v1119 = vrsqrt.pop %v1115
    %v1120 = vrsqrt.pop %v1116
    %v1121 = vrsqrt.pop %v1117
    %v1126 = vcombine.low %v1118, %v1119
    %v1127 = vcombine.low %v1120, %v1121
    %v1129 = vunpack.c.l.s4 1966171168
    %v1130 = vunpack.c.0.s8 %v1129
    %v1131 = vlaneseq
    %v1132 = vshrl.u32 %v1131, 7
    %v1133 = vsub.s32 %v1130, %v1132
    %v1134 = vrot.slane %v1126, %v1133
    %v1136 = vunpack.c.l.s4 1966171168
    %v1137 = vunpack.c.0.s8 %v1136
    %v1138 = vlaneseq
    %v1139 = vshrl.u32 %v1138, 7
    %v1140 = vsub.s32 %v1137, %v1139
    %v1141 = vrot.slane %v1127, %v1140
    %v1142 = vcombine.low %v1134, %v1141
    %v1144 = vunpack.c.l.s4 1966171168
    %v1145 = vunpack.c.0.s8 %v1144
    %v1146 = vlaneseq
    %v1147 = vshrl.u32 %v1146, 7
    %v1148 = vsub.s32 %v1145, %v1147
    %v1149 = vrot.slane %v1142, %v1148
    %v1151 = vmul.f32 %v1040, %v1149
    %v1153 = vlaneseq
    %v1154 = vshrl.u32 %v1153, 7
    %v1155 = vsub.s32 0, %v1154
    %v1156 = vrot.slane %v1151, %v1155
    %v1157 = vlaneseq
    %v1158 = vshrl.u32 %v1157, 7
    %v1159 = vsub.s32 1, %v1158
    %v1160 = vrot.slane %v1151, %v1159
    %v1161 = vlaneseq
    %v1162 = vshrl.u32 %v1161, 7
    %v1163 = vsub.s32 2, %v1162
    %v1164 = vrot.slane %v1151, %v1163
    %v1165 = vlaneseq
    %v1166 = vshrl.u32 %v1165, 7
    %v1167 = vsub.s32 3, %v1166
    %v1168 = vrot.slane %v1151, %v1167
    %v1173 = vmul.f32 %v1066, %v1156
    %v1174 = vmul.f32 %v1067, %v1160
    %v1175 = vmul.f32 %v1068, %v1164
    %v1176 = vmul.f32 %v1069, %v1168
    %v1181 = vcombine.low %v1173, %v1174
    %v1182 = vcombine.low %v1175, %v1176
    %v1184 = vunpack.c.l.s4 1966171168
    %v1185 = vunpack.c.0.s8 %v1184
    %v1186 = vlaneseq
    %v1187 = vshrl.u32 %v1186, 7
    %v1188 = vsub.s32 %v1185, %v1187
    %v1189 = vrot.slane %v1181, %v1188
    %v1191 = vunpack.c.l.s4 1966171168
    %v1192 = vunpack.c.0.s8 %v1191
    %v1193 = vlaneseq
    %v1194 = vshrl.u32 %v1193, 7
    %v1195 = vsub.s32 %v1192, %v1194
    %v1196 = vrot.slane %v1182, %v1195
    %v1197 = vcombine.low %v1189, %v1196
    %v1199 = vunpack.c.l.s4 1966171168
    %v1200 = vunpack.c.0.s8 %v1199
    %v1201 = vlaneseq
    %v1202 = vshrl.u32 %v1201, 7
    %v1203 = vsub.s32 %v1200, %v1202
    %v1204 = vrot.slane %v1197, %v1203
    %v1206 = vsub.f32 %v1041, %v1204
    %v1207 = vmul.f32 %v1036, %v1156
    %v1208 = vmul.f32 %v1037, %v1160
    %v1209 = vmul.f32 %v1038, %v1164
    %v1210 = vmul.f32 %v1039, %v1168
    %v1212 = vlaneseq
    %v1213 = vshrl.u32 %v1212, 7
    %v1214 = vsub.s32 0, %v1213
    %v1215 = vrot.slane %v1206, %v1214
    %v1216 = vlaneseq
    %v1217 = vshrl.u32 %v1216, 7
    %v1218 = vsub.s32 1, %v1217
    %v1219 = vrot.slane %v1206, %v1218
    %v1220 = vlaneseq
    %v1221 = vshrl.u32 %v1220, 7
    %v1222 = vsub.s32 2, %v1221
    %v1223 = vrot.slane %v1206, %v1222
    %v1224 = vlaneseq
    %v1225 = vshrl.u32 %v1224, 7
    %v1226 = vsub.s32 3, %v1225
    %v1227 = vrot.slane %v1206, %v1226
    %v1232 = vadd.f32 %v1207, %v1215
    %v1233 = vadd.f32 %v1208, %v1219
    %v1234 = vadd.f32 %v1209, %v1223
    %v1235 = vadd.f32 %v1210, %v1227
    %s1236 = smul.u32 4, 64
    %s1237 = smul.u32 %s1236, 8
    %s1238 = sshll.u32 %s1237, 4
    %1239 = dma.done [#allocation4], %s1238
    %v1240 = vld [vmem:[#allocation2] sm:$0xff]
    %v1241 = vld [vmem:[#allocation2 + $0x8] sm:$0xff]
    %v1242 = vld [vmem:[#allocation2 + $0x10] sm:$0xff]
    %v1243 = vld [vmem:[#allocation2 + $0x18] sm:$0xff]
    %v1244 = vld [vmem:[#allocation2 + $0x20] sm:$0xff]
    %v1245 = vld [vmem:[#allocation2 + $0x28] sm:$0xff]
    %v1246 = vld [vmem:[#allocation2 + $0x30] sm:$0xff]
    %v1247 = vld [vmem:[#allocation2 + $0x38] sm:$0xff]
    %v1248 = vld [vmem:[#allocation2 + $0x40] sm:$0xff]
    %v1249 = vld [vmem:[#allocation2 + $0x48] sm:$0xff]
    %v1250 = vld [vmem:[#allocation2 + $0x50] sm:$0xff]
    %v1251 = vld [vmem:[#allocation2 + $0x58] sm:$0xff]
    %v1252 = vld [vmem:[#allocation2 + $0x60] sm:$0xff]
    %v1253 = vld [vmem:[#allocation2 + $0x68] sm:$0xff]
    %v1254 = vld [vmem:[#allocation2 + $0x70] sm:$0xff]
    %v1255 = vld [vmem:[#allocation2 + $0x78] sm:$0xff]
    %v1256 = vld [vmem:[#allocation2 + $0x80] sm:$0xff]
    %v1257 = vld [vmem:[#allocation2 + $0x88] sm:$0xff]
    %v1258 = vld [vmem:[#allocation2 + $0x90] sm:$0xff]
    %v1259 = vld [vmem:[#allocation2 + $0x98] sm:$0xff]
    %v1260 = vld [vmem:[#allocation2 + $0xa0] sm:$0xff]
    %v1261 = vld [vmem:[#allocation2 + $0xa8] sm:$0xff]
    %v1262 = vld [vmem:[#allocation2 + $0xb0] sm:$0xff]
    %v1263 = vld [vmem:[#allocation2 + $0xb8] sm:$0xff]
    %v1264 = vld [vmem:[#allocation2 + $0xc0] sm:$0xff]
    %v1265 = vld [vmem:[#allocation2 + $0xc8] sm:$0xff]
    %v1266 = vld [vmem:[#allocation2 + $0xd0] sm:$0xff]
    %v1267 = vld [vmem:[#allocation2 + $0xd8] sm:$0xff]
    %v1268 = vld [vmem:[#allocation2 + $0xe0] sm:$0xff]
    %v1269 = vld [vmem:[#allocation2 + $0xe8] sm:$0xff]
    %v1270 = vld [vmem:[#allocation2 + $0xf0] sm:$0xff]
    %v1271 = vld [vmem:[#allocation2 + $0xf8] sm:$0xff]
    %v1272 = vld [vmem:[#allocation2 + $0x100] sm:$0xff]
    %v1273 = vld [vmem:[#allocation2 + $0x108] sm:$0xff]
    %v1274 = vld [vmem:[#allocation2 + $0x110] sm:$0xff]
    %v1275 = vld [vmem:[#allocation2 + $0x118] sm:$0xff]
    %v1276 = vld [vmem:[#allocation2 + $0x120] sm:$0xff]
    %v1277 = vld [vmem:[#allocation2 + $0x128] sm:$0xff]
    %v1278 = vld [vmem:[#allocation2 + $0x130] sm:$0xff]
    %v1279 = vld [vmem:[#allocation2 + $0x138] sm:$0xff]
    %v1280 = vld [vmem:[#allocation2 + $0x140] sm:$0xff]
    %v1281 = vld [vmem:[#allocation2 + $0x148] sm:$0xff]
    %v1282 = vld [vmem:[#allocation2 + $0x150] sm:$0xff]
    %v1283 = vld [vmem:[#allocation2 + $0x158] sm:$0xff]
    %v1284 = vld [vmem:[#allocation2 + $0x160] sm:$0xff]
    %v1285 = vld [vmem:[#allocation2 + $0x168] sm:$0xff]
    %v1286 = vld [vmem:[#allocation2 + $0x170] sm:$0xff]
    %v1287 = vld [vmem:[#allocation2 + $0x178] sm:$0xff]
    %v1288 = vld [vmem:[#allocation2 + $0x180] sm:$0xff]
    %v1289 = vld [vmem:[#allocation2 + $0x188] sm:$0xff]
    %v1290 = vld [vmem:[#allocation2 + $0x190] sm:$0xff]
    %v1291 = vld [vmem:[#allocation2 + $0x198] sm:$0xff]
    %v1292 = vld [vmem:[#allocation2 + $0x1a0] sm:$0xff]
    %v1293 = vld [vmem:[#allocation2 + $0x1a8] sm:$0xff]
    %v1294 = vld [vmem:[#allocation2 + $0x1b0] sm:$0xff]
    %v1295 = vld [vmem:[#allocation2 + $0x1b8] sm:$0xff]
    %v1296 = vld [vmem:[#allocation2 + $0x1c0] sm:$0xff]
    %v1297 = vld [vmem:[#allocation2 + $0x1c8] sm:$0xff]
    %v1298 = vld [vmem:[#allocation2 + $0x1d0] sm:$0xff]
    %v1299 = vld [vmem:[#allocation2 + $0x1d8] sm:$0xff]
    %v1300 = vld [vmem:[#allocation2 + $0x1e0] sm:$0xff]
    %v1301 = vld [vmem:[#allocation2 + $0x1e8] sm:$0xff]
    %v1302 = vld [vmem:[#allocation2 + $0x1f0] sm:$0xff]
    %v1303 = vld [vmem:[#allocation2 + $0x1f8] sm:$0xff]
    %v1304 = vld [vmem:[#allocation2 + $0x200] sm:$0xff]
    %v1305 = vld [vmem:[#allocation2 + $0x208] sm:$0xff]
    %v1306 = vld [vmem:[#allocation2 + $0x210] sm:$0xff]
    %v1307 = vld [vmem:[#allocation2 + $0x218] sm:$0xff]
    %v1308 = vld [vmem:[#allocation2 + $0x220] sm:$0xff]
    %v1309 = vld [vmem:[#allocation2 + $0x228] sm:$0xff]
    %v1310 = vld [vmem:[#allocation2 + $0x230] sm:$0xff]
    %v1311 = vld [vmem:[#allocation2 + $0x238] sm:$0xff]
    %v1312 = vld [vmem:[#allocation2 + $0x240] sm:$0xff]
    %v1313 = vld [vmem:[#allocation2 + $0x248] sm:$0xff]
    %v1314 = vld [vmem:[#allocation2 + $0x250] sm:$0xff]
    %v1315 = vld [vmem:[#allocation2 + $0x258] sm:$0xff]
    %v1316 = vld [vmem:[#allocation2 + $0x260] sm:$0xff]
    %v1317 = vld [vmem:[#allocation2 + $0x268] sm:$0xff]
    %v1318 = vld [vmem:[#allocation2 + $0x270] sm:$0xff]
    %v1319 = vld [vmem:[#allocation2 + $0x278] sm:$0xff]
    %v1320 = vld [vmem:[#allocation2 + $0x280] sm:$0xff]
    %v1321 = vld [vmem:[#allocation2 + $0x288] sm:$0xff]
    %v1322 = vld [vmem:[#allocation2 + $0x290] sm:$0xff]
    %v1323 = vld [vmem:[#allocation2 + $0x298] sm:$0xff]
    %v1324 = vld [vmem:[#allocation2 + $0x2a0] sm:$0xff]
    %v1325 = vld [vmem:[#allocation2 + $0x2a8] sm:$0xff]
    %v1326 = vld [vmem:[#allocation2 + $0x2b0] sm:$0xff]
    %v1327 = vld [vmem:[#allocation2 + $0x2b8] sm:$0xff]
    %v1328 = vld [vmem:[#allocation2 + $0x2c0] sm:$0xff]
    %v1329 = vld [vmem:[#allocation2 + $0x2c8] sm:$0xff]
    %v1330 = vld [vmem:[#allocation2 + $0x2d0] sm:$0xff]
    %v1331 = vld [vmem:[#allocation2 + $0x2d8] sm:$0xff]
    %v1332 = vld [vmem:[#allocation2 + $0x2e0] sm:$0xff]
    %v1333 = vld [vmem:[#allocation2 + $0x2e8] sm:$0xff]
    %v1334 = vld [vmem:[#allocation2 + $0x2f0] sm:$0xff]
    %v1335 = vld [vmem:[#allocation2 + $0x2f8] sm:$0xff]
    %v1336 = vld [vmem:[#allocation2 + $0x300] sm:$0xff]
    %v1337 = vld [vmem:[#allocation2 + $0x308] sm:$0xff]
    %v1338 = vld [vmem:[#allocation2 + $0x310] sm:$0xff]
    %v1339 = vld [vmem:[#allocation2 + $0x318] sm:$0xff]
    %v1340 = vld [vmem:[#allocation2 + $0x320] sm:$0xff]
    %v1341 = vld [vmem:[#allocation2 + $0x328] sm:$0xff]
    %v1342 = vld [vmem:[#allocation2 + $0x330] sm:$0xff]
    %v1343 = vld [vmem:[#allocation2 + $0x338] sm:$0xff]
    %v1344 = vld [vmem:[#allocation2 + $0x340] sm:$0xff]
    %v1345 = vld [vmem:[#allocation2 + $0x348] sm:$0xff]
    %v1346 = vld [vmem:[#allocation2 + $0x350] sm:$0xff]
    %v1347 = vld [vmem:[#allocation2 + $0x358] sm:$0xff]
    %v1348 = vld [vmem:[#allocation2 + $0x360] sm:$0xff]
    %v1349 = vld [vmem:[#allocation2 + $0x368] sm:$0xff]
    %v1350 = vld [vmem:[#allocation2 + $0x370] sm:$0xff]
    %v1351 = vld [vmem:[#allocation2 + $0x378] sm:$0xff]
    %v1352 = vld [vmem:[#allocation2 + $0x380] sm:$0xff]
    %v1353 = vld [vmem:[#allocation2 + $0x388] sm:$0xff]
    %v1354 = vld [vmem:[#allocation2 + $0x390] sm:$0xff]
    %v1355 = vld [vmem:[#allocation2 + $0x398] sm:$0xff]
    %v1356 = vld [vmem:[#allocation2 + $0x3a0] sm:$0xff]
    %v1357 = vld [vmem:[#allocation2 + $0x3a8] sm:$0xff]
    %v1358 = vld [vmem:[#allocation2 + $0x3b0] sm:$0xff]
    %v1359 = vld [vmem:[#allocation2 + $0x3b8] sm:$0xff]
    %v1360 = vld [vmem:[#allocation2 + $0x3c0] sm:$0xff]
    %v1361 = vld [vmem:[#allocation2 + $0x3c8] sm:$0xff]
    %v1362 = vld [vmem:[#allocation2 + $0x3d0] sm:$0xff]
    %v1363 = vld [vmem:[#allocation2 + $0x3d8] sm:$0xff]
    %v1364 = vld [vmem:[#allocation2 + $0x3e0] sm:$0xff]
    %v1365 = vld [vmem:[#allocation2 + $0x3e8] sm:$0xff]
    %v1366 = vld [vmem:[#allocation2 + $0x3f0] sm:$0xff]
    %v1367 = vld [vmem:[#allocation2 + $0x3f8] sm:$0xff]
    %v1368 = vld [vmem:[#allocation2 + $0x400] sm:$0xff]
    %v1369 = vld [vmem:[#allocation2 + $0x408] sm:$0xff]
    %v1370 = vld [vmem:[#allocation2 + $0x410] sm:$0xff]
    %v1371 = vld [vmem:[#allocation2 + $0x418] sm:$0xff]
    %v1372 = vld [vmem:[#allocation2 + $0x420] sm:$0xff]
    %v1373 = vld [vmem:[#allocation2 + $0x428] sm:$0xff]
    %v1374 = vld [vmem:[#allocation2 + $0x430] sm:$0xff]
    %v1375 = vld [vmem:[#allocation2 + $0x438] sm:$0xff]
    %v1376 = vld [vmem:[#allocation2 + $0x440] sm:$0xff]
    %v1377 = vld [vmem:[#allocation2 + $0x448] sm:$0xff]
    %v1378 = vld [vmem:[#allocation2 + $0x450] sm:$0xff]
    %v1379 = vld [vmem:[#allocation2 + $0x458] sm:$0xff]
    %v1380 = vld [vmem:[#allocation2 + $0x460] sm:$0xff]
    %v1381 = vld [vmem:[#allocation2 + $0x468] sm:$0xff]
    %v1382 = vld [vmem:[#allocation2 + $0x470] sm:$0xff]
    %v1383 = vld [vmem:[#allocation2 + $0x478] sm:$0xff]
    %v1384 = vld [vmem:[#allocation2 + $0x480] sm:$0xff]
    %v1385 = vld [vmem:[#allocation2 + $0x488] sm:$0xff]
    %v1386 = vld [vmem:[#allocation2 + $0x490] sm:$0xff]
    %v1387 = vld [vmem:[#allocation2 + $0x498] sm:$0xff]
    %v1388 = vld [vmem:[#allocation2 + $0x4a0] sm:$0xff]
    %v1389 = vld [vmem:[#allocation2 + $0x4a8] sm:$0xff]
    %v1390 = vld [vmem:[#allocation2 + $0x4b0] sm:$0xff]
    %v1391 = vld [vmem:[#allocation2 + $0x4b8] sm:$0xff]
    %v1392 = vld [vmem:[#allocation2 + $0x4c0] sm:$0xff]
    %v1393 = vld [vmem:[#allocation2 + $0x4c8] sm:$0xff]
    %v1394 = vld [vmem:[#allocation2 + $0x4d0] sm:$0xff]
    %v1395 = vld [vmem:[#allocation2 + $0x4d8] sm:$0xff]
    %v1396 = vld [vmem:[#allocation2 + $0x4e0] sm:$0xff]
    %v1397 = vld [vmem:[#allocation2 + $0x4e8] sm:$0xff]
    %v1398 = vld [vmem:[#allocation2 + $0x4f0] sm:$0xff]
    %v1399 = vld [vmem:[#allocation2 + $0x4f8] sm:$0xff]
    %v1400 = vld [vmem:[#allocation2 + $0x500] sm:$0xff]
    %v1401 = vld [vmem:[#allocation2 + $0x508] sm:$0xff]
    %v1402 = vld [vmem:[#allocation2 + $0x510] sm:$0xff]
    %v1403 = vld [vmem:[#allocation2 + $0x518] sm:$0xff]
    %v1404 = vld [vmem:[#allocation2 + $0x520] sm:$0xff]
    %v1405 = vld [vmem:[#allocation2 + $0x528] sm:$0xff]
    %v1406 = vld [vmem:[#allocation2 + $0x530] sm:$0xff]
    %v1407 = vld [vmem:[#allocation2 + $0x538] sm:$0xff]
    %v1408 = vld [vmem:[#allocation2 + $0x540] sm:$0xff]
    %v1409 = vld [vmem:[#allocation2 + $0x548] sm:$0xff]
    %v1410 = vld [vmem:[#allocation2 + $0x550] sm:$0xff]
    %v1411 = vld [vmem:[#allocation2 + $0x558] sm:$0xff]
    %v1412 = vld [vmem:[#allocation2 + $0x560] sm:$0xff]
    %v1413 = vld [vmem:[#allocation2 + $0x568] sm:$0xff]
    %v1414 = vld [vmem:[#allocation2 + $0x570] sm:$0xff]
    %v1415 = vld [vmem:[#allocation2 + $0x578] sm:$0xff]
    %v1416 = vld [vmem:[#allocation2 + $0x580] sm:$0xff]
    %v1417 = vld [vmem:[#allocation2 + $0x588] sm:$0xff]
    %v1418 = vld [vmem:[#allocation2 + $0x590] sm:$0xff]
    %v1419 = vld [vmem:[#allocation2 + $0x598] sm:$0xff]
    %v1420 = vld [vmem:[#allocation2 + $0x5a0] sm:$0xff]
    %v1421 = vld [vmem:[#allocation2 + $0x5a8] sm:$0xff]
    %v1422 = vld [vmem:[#allocation2 + $0x5b0] sm:$0xff]
    %v1423 = vld [vmem:[#allocation2 + $0x5b8] sm:$0xff]
    %v1424 = vld [vmem:[#allocation2 + $0x5c0] sm:$0xff]
    %v1425 = vld [vmem:[#allocation2 + $0x5c8] sm:$0xff]
    %v1426 = vld [vmem:[#allocation2 + $0x5d0] sm:$0xff]
    %v1427 = vld [vmem:[#allocation2 + $0x5d8] sm:$0xff]
    %v1428 = vld [vmem:[#allocation2 + $0x5e0] sm:$0xff]
    %v1429 = vld [vmem:[#allocation2 + $0x5e8] sm:$0xff]
    %v1430 = vld [vmem:[#allocation2 + $0x5f0] sm:$0xff]
    %v1431 = vld [vmem:[#allocation2 + $0x5f8] sm:$0xff]
    %v1432 = vld [vmem:[#allocation2 + $0x600] sm:$0xff]
    %v1433 = vld [vmem:[#allocation2 + $0x608] sm:$0xff]
    %v1434 = vld [vmem:[#allocation2 + $0x610] sm:$0xff]
    %v1435 = vld [vmem:[#allocation2 + $0x618] sm:$0xff]
    %v1436 = vld [vmem:[#allocation2 + $0x620] sm:$0xff]
    %v1437 = vld [vmem:[#allocation2 + $0x628] sm:$0xff]
    %v1438 = vld [vmem:[#allocation2 + $0x630] sm:$0xff]
    %v1439 = vld [vmem:[#allocation2 + $0x638] sm:$0xff]
    %v1440 = vld [vmem:[#allocation2 + $0x640] sm:$0xff]
    %v1441 = vld [vmem:[#allocation2 + $0x648] sm:$0xff]
    %v1442 = vld [vmem:[#allocation2 + $0x650] sm:$0xff]
    %v1443 = vld [vmem:[#allocation2 + $0x658] sm:$0xff]
    %v1444 = vld [vmem:[#allocation2 + $0x660] sm:$0xff]
    %v1445 = vld [vmem:[#allocation2 + $0x668] sm:$0xff]
    %v1446 = vld [vmem:[#allocation2 + $0x670] sm:$0xff]
    %v1447 = vld [vmem:[#allocation2 + $0x678] sm:$0xff]
    %v1448 = vld [vmem:[#allocation2 + $0x680] sm:$0xff]
    %v1449 = vld [vmem:[#allocation2 + $0x688] sm:$0xff]
    %v1450 = vld [vmem:[#allocation2 + $0x690] sm:$0xff]
    %v1451 = vld [vmem:[#allocation2 + $0x698] sm:$0xff]
    %v1452 = vld [vmem:[#allocation2 + $0x6a0] sm:$0xff]
    %v1453 = vld [vmem:[#allocation2 + $0x6a8] sm:$0xff]
    %v1454 = vld [vmem:[#allocation2 + $0x6b0] sm:$0xff]
    %v1455 = vld [vmem:[#allocation2 + $0x6b8] sm:$0xff]
    %v1456 = vld [vmem:[#allocation2 + $0x6c0] sm:$0xff]
    %v1457 = vld [vmem:[#allocation2 + $0x6c8] sm:$0xff]
    %v1458 = vld [vmem:[#allocation2 + $0x6d0] sm:$0xff]
    %v1459 = vld [vmem:[#allocation2 + $0x6d8] sm:$0xff]
    %v1460 = vld [vmem:[#allocation2 + $0x6e0] sm:$0xff]
    %v1461 = vld [vmem:[#allocation2 + $0x6e8] sm:$0xff]
    %v1462 = vld [vmem:[#allocation2 + $0x6f0] sm:$0xff]
    %v1463 = vld [vmem:[#allocation2 + $0x6f8] sm:$0xff]
    %v1464 = vld [vmem:[#allocation2 + $0x700] sm:$0xff]
    %v1465 = vld [vmem:[#allocation2 + $0x708] sm:$0xff]
    %v1466 = vld [vmem:[#allocation2 + $0x710] sm:$0xff]
    %v1467 = vld [vmem:[#allocation2 + $0x718] sm:$0xff]
    %v1468 = vld [vmem:[#allocation2 + $0x720] sm:$0xff]
    %v1469 = vld [vmem:[#allocation2 + $0x728] sm:$0xff]
    %v1470 = vld [vmem:[#allocation2 + $0x730] sm:$0xff]
    %v1471 = vld [vmem:[#allocation2 + $0x738] sm:$0xff]
    %v1472 = vld [vmem:[#allocation2 + $0x740] sm:$0xff]
    %v1473 = vld [vmem:[#allocation2 + $0x748] sm:$0xff]
    %v1474 = vld [vmem:[#allocation2 + $0x750] sm:$0xff]
    %v1475 = vld [vmem:[#allocation2 + $0x758] sm:$0xff]
    %v1476 = vld [vmem:[#allocation2 + $0x760] sm:$0xff]
    %v1477 = vld [vmem:[#allocation2 + $0x768] sm:$0xff]
    %v1478 = vld [vmem:[#allocation2 + $0x770] sm:$0xff]
    %v1479 = vld [vmem:[#allocation2 + $0x778] sm:$0xff]
    %v1480 = vld [vmem:[#allocation2 + $0x780] sm:$0xff]
    %v1481 = vld [vmem:[#allocation2 + $0x788] sm:$0xff]
    %v1482 = vld [vmem:[#allocation2 + $0x790] sm:$0xff]
    %v1483 = vld [vmem:[#allocation2 + $0x798] sm:$0xff]
    %v1484 = vld [vmem:[#allocation2 + $0x7a0] sm:$0xff]
    %v1485 = vld [vmem:[#allocation2 + $0x7a8] sm:$0xff]
    %v1486 = vld [vmem:[#allocation2 + $0x7b0] sm:$0xff]
    %v1487 = vld [vmem:[#allocation2 + $0x7b8] sm:$0xff]
    %v1488 = vld [vmem:[#allocation2 + $0x7c0] sm:$0xff]
    %v1489 = vld [vmem:[#allocation2 + $0x7c8] sm:$0xff]
    %v1490 = vld [vmem:[#allocation2 + $0x7d0] sm:$0xff]
    %v1491 = vld [vmem:[#allocation2 + $0x7d8] sm:$0xff]
    %v1492 = vld [vmem:[#allocation2 + $0x7e0] sm:$0xff]
    %v1493 = vld [vmem:[#allocation2 + $0x7e8] sm:$0xff]
    %v1494 = vld [vmem:[#allocation2 + $0x7f0] sm:$0xff]
    %v1495 = vld [vmem:[#allocation2 + $0x7f8] sm:$0xff]
    %v1496 = vpack.c.bf16 %v1232, %v1232
    %v1497 = vpack.c.bf16 %v1233, %v1233
    %v1498 = vpack.c.bf16 %v1234, %v1234
    %v1499 = vpack.c.bf16 %v1235, %v1235
    %v1500 = vld [vmem:[#allocation20] sm:$0xff]
    %v1502 = vlaneseq
    %v1503 = vshrl.u32 %v1502, 7
    %v1504 = vsub.s32 0, %v1503
    %v1505 = vrot.slane %v1500, %v1504
    %v1506 = vlaneseq
    %v1507 = vshrl.u32 %v1506, 7
    %v1508 = vsub.s32 1, %v1507
    %v1509 = vrot.slane %v1500, %v1508
    %v1510 = vlaneseq
    %v1511 = vshrl.u32 %v1510, 7
    %v1512 = vsub.s32 2, %v1511
    %v1513 = vrot.slane %v1500, %v1512
    %v1514 = vlaneseq
    %v1515 = vshrl.u32 %v1514, 7
    %v1516 = vsub.s32 3, %v1515
    %v1517 = vrot.slane %v1500, %v1516
    %v1518 = vlaneseq
    %v1519 = vshrl.u32 %v1518, 7
    %v1520 = vsub.s32 4, %v1519
    %v1521 = vrot.slane %v1500, %v1520
    %v1522 = vlaneseq
    %v1523 = vshrl.u32 %v1522, 7
    %v1524 = vsub.s32 5, %v1523
    %v1525 = vrot.slane %v1500, %v1524
    %v1526 = vlaneseq
    %v1527 = vshrl.u32 %v1526, 7
    %v1528 = vsub.s32 6, %v1527
    %v1529 = vrot.slane %v1500, %v1528
    %v1530 = vlaneseq
    %v1531 = vshrl.u32 %v1530, 7
    %v1532 = vsub.s32 7, %v1531
    %v1533 = vrot.slane %v1500, %v1532
    %1542 = vmatprep.subr.bf16.mxu0 %v1241
    %1543 = vmatpush1.bf16.msra.mxu0 %v1240
    %1544 = vmatprep.subr.bf16.mxu0 %v1249
    %1545 = vmatpush1.bf16.msra.mxu0 %v1248
    %1546 = vmatprep.subr.bf16.mxu0 %v1257
    %1547 = vmatpush1.bf16.msra.mxu0 %v1256
    %1548 = vmatprep.subr.bf16.mxu0 %v1265
    %1549 = vmatpush1.bf16.msra.mxu0 %v1264
    %1550 = vmatprep.subr.bf16.mxu0 %v1273
    %1551 = vmatpush1.bf16.msra.mxu0 %v1272
    %1552 = vmatprep.subr.bf16.mxu0 %v1281
    %1553 = vmatpush1.bf16.msra.mxu0 %v1280
    %1554 = vmatprep.subr.bf16.mxu0 %v1289
    %1555 = vmatpush1.bf16.msra.mxu0 %v1288
    %1556 = vmatprep.subr.bf16.mxu0 %v1297
    %1557 = vmatpush1.bf16.msra.mxu0 %v1296
    %1558 = vmatprep.subr.bf16.mxu0 %v1305
    %1559 = vmatpush1.bf16.msra.mxu0 %v1304
    %1560 = vmatprep.subr.bf16.mxu0 %v1313
    %1561 = vmatpush1.bf16.msra.mxu0 %v1312
    %1562 = vmatprep.subr.bf16.mxu0 %v1321
    %1563 = vmatpush1.bf16.msra.mxu0 %v1320
    %1564 = vmatprep.subr.bf16.mxu0 %v1329
    %1565 = vmatpush1.bf16.msra.mxu0 %v1328
    %1566 = vmatprep.subr.bf16.mxu0 %v1337
    %1567 = vmatpush1.bf16.msra.mxu0 %v1336
    %1568 = vmatprep.subr.bf16.mxu0 %v1345
    %1569 = vmatpush1.bf16.msra.mxu0 %v1344
    %1570 = vmatprep.subr.bf16.mxu0 %v1353
    %1571 = vmatpush1.bf16.msra.mxu0 %v1352
    %1572 = vmatprep.subr.bf16.mxu0 %v1361
    %1573 = vmatpush1.bf16.msra.mxu0 %v1360
    %1574 = vmatprep.mubr.bf16.mxu0 %v1497
    %1575 = vmatmul.mubr.bf16.gmra.mrb[0].mxu0 %v1496
    %v1576 = vpop.f32.mrb[0].mxu0
    %v1577 = vadd.f32 %v1505, %v1576
    %v1578 = vpop.f32.mrb[0].mxu0
    %v1579 = vadd.f32 %v1509, %v1578
    %v1580 = vpop.f32.mrb[0].mxu0
    %v1581 = vpop.f32.mrb[0].mxu0
    %1582 = vdwg.mxu0
    %1583 = vmatprep.subr.bf16.mxu0 %v1369
    %1584 = vmatpush1.bf16.msra.mxu0 %v1368
    %1585 = vmatprep.subr.bf16.mxu0 %v1377
    %1586 = vmatpush1.bf16.msra.mxu0 %v1376
    %1587 = vmatprep.subr.bf16.mxu0 %v1385
    %1588 = vmatpush1.bf16.msra.mxu0 %v1384
    %1589 = vmatprep.subr.bf16.mxu0 %v1393
    %1590 = vmatpush1.bf16.msra.mxu0 %v1392
    %1591 = vmatprep.subr.bf16.mxu0 %v1401
    %1592 = vmatpush1.bf16.msra.mxu0 %v1400
    %1593 = vmatprep.subr.bf16.mxu0 %v1409
    %1594 = vmatpush1.bf16.msra.mxu0 %v1408
    %1595 = vmatprep.subr.bf16.mxu0 %v1417
    %1596 = vmatpush1.bf16.msra.mxu0 %v1416
    %1597 = vmatprep.subr.bf16.mxu0 %v1425
    %1598 = vmatpush1.bf16.msra.mxu0 %v1424
    %1599 = vmatprep.subr.bf16.mxu0 %v1433
    %1600 = vmatpush1.bf16.msra.mxu0 %v1432
    %1601 = vmatprep.subr.bf16.mxu0 %v1441
    %1602 = vmatpush1.bf16.msra.mxu0 %v1440
    %1603 = vmatprep.subr.bf16.mxu0 %v1449
    %1604 = vmatpush1.bf16.msra.mxu0 %v1448
    %1605 = vmatprep.subr.bf16.mxu0 %v1457
    %1606 = vmatpush1.bf16.msra.mxu0 %v1456
    %1607 = vmatprep.subr.bf16.mxu0 %v1465
    %1608 = vmatpush1.bf16.msra.mxu0 %v1464
    %1609 = vmatprep.subr.bf16.mxu0 %v1473
    %1610 = vmatpush1.bf16.msra.mxu0 %v1472
    %1611 = vmatprep.subr.bf16.mxu0 %v1481
    %1612 = vmatpush1.bf16.msra.mxu0 %v1480
    %1613 = vmatprep.subr.bf16.mxu0 %v1489
    %1614 = vmatpush1.bf16.msra.mxu0 %v1488
    %1615 = vmatprep.mubr.bf16.mxu0 %v1499
    %1616 = vmatmul.mubr.bf16.gmra.mrb[0].mxu0 %v1498
    %v1617 = vpop.f32.mrb[0].mxu0
    %v1618 = vadd.f32 %v1577, %v1617
    %v1619 = vpop.f32.mrb[0].mxu0
    %v1620 = vadd.f32 %v1579, %v1619
    %v1621 = vpop.f32.mrb[0].mxu0
    %v1622 = vpop.f32.mrb[0].mxu0
    %1623 = vdwg.mxu0
    %1624 = vmatprep.subr.bf16.mxu0 %v1243
    %1625 = vmatpush1.bf16.msra.mxu0 %v1242
    %1626 = vmatprep.subr.bf16.mxu0 %v1251
    %1627 = vmatpush1.bf16.msra.mxu0 %v1250
    %1628 = vmatprep.subr.bf16.mxu0 %v1259
    %1629 = vmatpush1.bf16.msra.mxu0 %v1258
    %1630 = vmatprep.subr.bf16.mxu0 %v1267
    %1631 = vmatpush1.bf16.msra.mxu0 %v1266
    %1632 = vmatprep.subr.bf16.mxu0 %v1275
    %1633 = vmatpush1.bf16.msra.mxu0 %v1274
    %1634 = vmatprep.subr.bf16.mxu0 %v1283
    %1635 = vmatpush1.bf16.msra.mxu0 %v1282
    %1636 = vmatprep.subr.bf16.mxu0 %v1291
    %1637 = vmatpush1.bf16.msra.mxu0 %v1290
    %1638 = vmatprep.subr.bf16.mxu0 %v1299
    %1639 = vmatpush1.bf16.msra.mxu0 %v1298
    %1640 = vmatprep.subr.bf16.mxu0 %v1307
    %1641 = vmatpush1.bf16.msra.mxu0 %v1306
    %1642 = vmatprep.subr.bf16.mxu0 %v1315
    %1643 = vmatpush1.bf16.msra.mxu0 %v1314
    %1644 = vmatprep.subr.bf16.mxu0 %v1323
    %1645 = vmatpush1.bf16.msra.mxu0 %v1322
    %1646 = vmatprep.subr.bf16.mxu0 %v1331
    %1647 = vmatpush1.bf16.msra.mxu0 %v1330
    %1648 = vmatprep.subr.bf16.mxu0 %v1339
    %1649 = vmatpush1.bf16.msra.mxu0 %v1338
    %1650 = vmatprep.subr.bf16.mxu0 %v1347
    %1651 = vmatpush1.bf16.msra.mxu0 %v1346
    %1652 = vmatprep.subr.bf16.mxu0 %v1355
    %1653 = vmatpush1.bf16.msra.mxu0 %v1354
    %1654 = vmatprep.subr.bf16.mxu0 %v1363
    %1655 = vmatpush1.bf16.msra.mxu0 %v1362
    %1656 = vmatprep.mubr.bf16.mxu0 %v1497
    %1657 = vmatmul.mubr.bf16.gmra.mrb[0].mxu0 %v1496
    %v1658 = vpop.f32.mrb[0].mxu0
    %v1659 = vadd.f32 %v1513, %v1658
    %v1660 = vpop.f32.mrb[0].mxu0
    %v1661 = vadd.f32 %v1517, %v1660
    %v1662 = vpop.f32.mrb[0].mxu0
    %v1663 = vpop.f32.mrb[0].mxu0
    %1664 = vdwg.mxu0
    %1665 = vmatprep.subr.bf16.mxu0 %v1371
    %1666 = vmatpush1.bf16.msra.mxu0 %v1370
    %1667 = vmatprep.subr.bf16.mxu0 %v1379
    %1668 = vmatpush1.bf16.msra.mxu0 %v1378
    %1669 = vmatprep.subr.bf16.mxu0 %v1387
    %1670 = vmatpush1.bf16.msra.mxu0 %v1386
    %1671 = vmatprep.subr.bf16.mxu0 %v1395
    %1672 = vmatpush1.bf16.msra.mxu0 %v1394
    %1673 = vmatprep.subr.bf16.mxu0 %v1403
    %1674 = vmatpush1.bf16.msra.mxu0 %v1402
    %1675 = vmatprep.subr.bf16.mxu0 %v1411
    %1676 = vmatpush1.bf16.msra.mxu0 %v1410
    %1677 = vmatprep.subr.bf16.mxu0 %v1419
    %1678 = vmatpush1.bf16.msra.mxu0 %v1418
    %1679 = vmatprep.subr.bf16.mxu0 %v1427
    %1680 = vmatpush1.bf16.msra.mxu0 %v1426
    %1681 = vmatprep.subr.bf16.mxu0 %v1435
    %1682 = vmatpush1.bf16.msra.mxu0 %v1434
    %1683 = vmatprep.subr.bf16.mxu0 %v1443
    %1684 = vmatpush1.bf16.msra.mxu0 %v1442
    %1685 = vmatprep.subr.bf16.mxu0 %v1451
    %1686 = vmatpush1.bf16.msra.mxu0 %v1450
    %1687 = vmatprep.subr.bf16.mxu0 %v1459
    %1688 = vmatpush1.bf16.msra.mxu0 %v1458
    %1689 = vmatprep.subr.bf16.mxu0 %v1467
    %1690 = vmatpush1.bf16.msra.mxu0 %v1466
    %1691 = vmatprep.subr.bf16.mxu0 %v1475
    %1692 = vmatpush1.bf16.msra.mxu0 %v1474
    %1693 = vmatprep.subr.bf16.mxu0 %v1483
    %1694 = vmatpush1.bf16.msra.mxu0 %v1482
    %1695 = vmatprep.subr.bf16.mxu0 %v1491
    %1696 = vmatpush1.bf16.msra.mxu0 %v1490
    %1697 = vmatprep.mubr.bf16.mxu0 %v1499
    %1698 = vmatmul.mubr.bf16.gmra.mrb[0].mxu0 %v1498
    %v1699 = vpop.f32.mrb[0].mxu0
    %v1700 = vadd.f32 %v1659, %v1699
    %v1701 = vpop.f32.mrb[0].mxu0
    %v1702 = vadd.f32 %v1661, %v1701
    %v1703 = vpop.f32.mrb[0].mxu0
    %v1704 = vpop.f32.mrb[0].mxu0
    %1705 = vdwg.mxu0
    %1706 = vmatprep.subr.bf16.mxu0 %v1245
    %1707 = vmatpush1.bf16.msra.mxu0 %v1244
    %1708 = vmatprep.subr.bf16.mxu0 %v1253
    %1709 = vmatpush1.bf16.msra.mxu0 %v1252
    %1710 = vmatprep.subr.bf16.mxu0 %v1261
    %1711 = vmatpush1.bf16.msra.mxu0 %v1260
    %1712 = vmatprep.subr.bf16.mxu0 %v1269
    %1713 = vmatpush1.bf16.msra.mxu0 %v1268
    %1714 = vmatprep.subr.bf16.mxu0 %v1277
    %1715 = vmatpush1.bf16.msra.mxu0 %v1276
    %1716 = vmatprep.subr.bf16.mxu0 %v1285
    %1717 = vmatpush1.bf16.msra.mxu0 %v1284
    %1718 = vmatprep.subr.bf16.mxu0 %v1293
    %1719 = vmatpush1.bf16.msra.mxu0 %v1292
    %1720 = vmatprep.subr.bf16.mxu0 %v1301
    %1721 = vmatpush1.bf16.msra.mxu0 %v1300
    %1722 = vmatprep.subr.bf16.mxu0 %v1309
    %1723 = vmatpush1.bf16.msra.mxu0 %v1308
    %1724 = vmatprep.subr.bf16.mxu0 %v1317
    %1725 = vmatpush1.bf16.msra.mxu0 %v1316
    %1726 = vmatprep.subr.bf16.mxu0 %v1325
    %1727 = vmatpush1.bf16.msra.mxu0 %v1324
    %1728 = vmatprep.subr.bf16.mxu0 %v1333
    %1729 = vmatpush1.bf16.msra.mxu0 %v1332
    %1730 = vmatprep.subr.bf16.mxu0 %v1341
    %1731 = vmatpush1.bf16.msra.mxu0 %v1340
    %1732 = vmatprep.subr.bf16.mxu0 %v1349
    %1733 = vmatpush1.bf16.msra.mxu0 %v1348
    %1734 = vmatprep.subr.bf16.mxu0 %v1357
    %1735 = vmatpush1.bf16.msra.mxu0 %v1356
    %1736 = vmatprep.subr.bf16.mxu0 %v1365
    %1737 = vmatpush1.bf16.msra.mxu0 %v1364
    %1738 = vmatprep.mubr.bf16.mxu0 %v1497
    %1739 = vmatmul.mubr.bf16.gmra.mrb[0].mxu0 %v1496
    %v1740 = vpop.f32.mrb[0].mxu0
    %v1741 = vadd.f32 %v1521, %v1740
    %v1742 = vpop.f32.mrb[0].mxu0
    %v1743 = vadd.f32 %v1525, %v1742
    %v1744 = vpop.f32.mrb[0].mxu0
    %v1745 = vpop.f32.mrb[0].mxu0
    %1746 = vdwg.mxu0
    %1747 = vmatprep.subr.bf16.mxu0 %v1373
    %1748 = vmatpush1.bf16.msra.mxu0 %v1372
    %1749 = vmatprep.subr.bf16.mxu0 %v1381
    %1750 = vmatpush1.bf16.msra.mxu0 %v1380
    %1751 = vmatprep.subr.bf16.mxu0 %v1389
    %1752 = vmatpush1.bf16.msra.mxu0 %v1388
    %1753 = vmatprep.subr.bf16.mxu0 %v1397
    %1754 = vmatpush1.bf16.msra.mxu0 %v1396
    %1755 = vmatprep.subr.bf16.mxu0 %v1405
    %1756 = vmatpush1.bf16.msra.mxu0 %v1404
    %1757 = vmatprep.subr.bf16.mxu0 %v1413
    %1758 = vmatpush1.bf16.msra.mxu0 %v1412
    %1759 = vmatprep.subr.bf16.mxu0 %v1421
    %1760 = vmatpush1.bf16.msra.mxu0 %v1420
    %1761 = vmatprep.subr.bf16.mxu0 %v1429
    %1762 = vmatpush1.bf16.msra.mxu0 %v1428
    %1763 = vmatprep.subr.bf16.mxu0 %v1437
    %1764 = vmatpush1.bf16.msra.mxu0 %v1436
    %1765 = vmatprep.subr.bf16.mxu0 %v1445
    %1766 = vmatpush1.bf16.msra.mxu0 %v1444
    %1767 = vmatprep.subr.bf16.mxu0 %v1453
    %1768 = vmatpush1.bf16.msra.mxu0 %v1452
    %1769 = vmatprep.subr.bf16.mxu0 %v1461
    %1770 = vmatpush1.bf16.msra.mxu0 %v1460
    %1771 = vmatprep.subr.bf16.mxu0 %v1469
    %1772 = vmatpush1.bf16.msra.mxu0 %v1468
    %1773 = vmatprep.subr.bf16.mxu0 %v1477
    %1774 = vmatpush1.bf16.msra.mxu0 %v1476
    %1775 = vmatprep.subr.bf16.mxu0 %v1485
    %1776 = vmatpush1.bf16.msra.mxu0 %v1484
    %1777 = vmatprep.subr.bf16.mxu0 %v1493
    %1778 = vmatpush1.bf16.msra.mxu0 %v1492
    %1779 = vmatprep.mubr.bf16.mxu0 %v1499
    %1780 = vmatmul.mubr.bf16.gmra.mrb[0].mxu0 %v1498
    %v1781 = vpop.f32.mrb[0].mxu0
    %v1782 = vadd.f32 %v1741, %v1781
    %v1783 = vpop.f32.mrb[0].mxu0
    %v1784 = vadd.f32 %v1743, %v1783
    %v1785 = vpop.f32.mrb[0].mxu0
    %v1786 = vpop.f32.mrb[0].mxu0
    %1787 = vdwg.mxu0
    %1788 = vmatprep.subr.bf16.mxu0 %v1247
    %1789 = vmatpush1.bf16.msra.mxu0 %v1246
    %1790 = vmatprep.subr.bf16.mxu0 %v1255
    %1791 = vmatpush1.bf16.msra.mxu0 %v1254
    %1792 = vmatprep.subr.bf16.mxu0 %v1263
    %1793 = vmatpush1.bf16.msra.mxu0 %v1262
    %1794 = vmatprep.subr.bf16.mxu0 %v1271
    %1795 = vmatpush1.bf16.msra.mxu0 %v1270
    %1796 = vmatprep.subr.bf16.mxu0 %v1279
    %1797 = vmatpush1.bf16.msra.mxu0 %v1278
    %1798 = vmatprep.subr.bf16.mxu0 %v1287
    %1799 = vmatpush1.bf16.msra.mxu0 %v1286
    %1800 = vmatprep.subr.bf16.mxu0 %v1295
    %1801 = vmatpush1.bf16.msra.mxu0 %v1294
    %1802 = vmatprep.subr.bf16.mxu0 %v1303
    %1803 = vmatpush1.bf16.msra.mxu0 %v1302
    %1804 = vmatprep.subr.bf16.mxu0 %v1311
    %1805 = vmatpush1.bf16.msra.mxu0 %v1310
    %1806 = vmatprep.subr.bf16.mxu0 %v1319
    %1807 = vmatpush1.bf16.msra.mxu0 %v1318
    %1808 = vmatprep.subr.bf16.mxu0 %v1327
    %1809 = vmatpush1.bf16.msra.mxu0 %v1326
    %1810 = vmatprep.subr.bf16.mxu0 %v1335
    %1811 = vmatpush1.bf16.msra.mxu0 %v1334
    %1812 = vmatprep.subr.bf16.mxu0 %v1343
    %1813 = vmatpush1.bf16.msra.mxu0 %v1342
    %1814 = vmatprep.subr.bf16.mxu0 %v1351
    %1815 = vmatpush1.bf16.msra.mxu0 %v1350
    %1816 = vmatprep.subr.bf16.mxu0 %v1359
    %1817 = vmatpush1.bf16.msra.mxu0 %v1358
    %1818 = vmatprep.subr.bf16.mxu0 %v1367
    %1819 = vmatpush1.bf16.msra.mxu0 %v1366
    %1820 = vmatprep.mubr.bf16.mxu0 %v1497
    %1821 = vmatmul.mubr.bf16.gmra.mrb[0].mxu0 %v1496
    %v1822 = vpop.f32.mrb[0].mxu0
    %v1823 = vadd.f32 %v1529, %v1822
    %v1824 = vpop.f32.mrb[0].mxu0
    %v1825 = vadd.f32 %v1533, %v1824
    %v1826 = vpop.f32.mrb[0].mxu0
    %v1827 = vpop.f32.mrb[0].mxu0
    %1828 = vdwg.mxu0
    %1829 = vmatprep.subr.bf16.mxu0 %v1375
    %1830 = vmatpush1.bf16.msra.mxu0 %v1374
    %1831 = vmatprep.subr.bf16.mxu0 %v1383
    %1832 = vmatpush1.bf16.msra.mxu0 %v1382
    %1833 = vmatprep.subr.bf16.mxu0 %v1391
    %1834 = vmatpush1.bf16.msra.mxu0 %v1390
    %1835 = vmatprep.subr.bf16.mxu0 %v1399
    %1836 = vmatpush1.bf16.msra.mxu0 %v1398
    %1837 = vmatprep.subr.bf16.mxu0 %v1407
    %1838 = vmatpush1.bf16.msra.mxu0 %v1406
    %1839 = vmatprep.subr.bf16.mxu0 %v1415
    %1840 = vmatpush1.bf16.msra.mxu0 %v1414
    %1841 = vmatprep.subr.bf16.mxu0 %v1423
    %1842 = vmatpush1.bf16.msra.mxu0 %v1422
    %1843 = vmatprep.subr.bf16.mxu0 %v1431
    %1844 = vmatpush1.bf16.msra.mxu0 %v1430
    %1845 = vmatprep.subr.bf16.mxu0 %v1439
    %1846 = vmatpush1.bf16.msra.mxu0 %v1438
    %1847 = vmatprep.subr.bf16.mxu0 %v1447
    %1848 = vmatpush1.bf16.msra.mxu0 %v1446
    %1849 = vmatprep.subr.bf16.mxu0 %v1455
    %1850 = vmatpush1.bf16.msra.mxu0 %v1454
    %1851 = vmatprep.subr.bf16.mxu0 %v1463
    %1852 = vmatpush1.bf16.msra.mxu0 %v1462
    %1853 = vmatprep.subr.bf16.mxu0 %v1471
    %1854 = vmatpush1.bf16.msra.mxu0 %v1470
    %1855 = vmatprep.subr.bf16.mxu0 %v1479
    %1856 = vmatpush1.bf16.msra.mxu0 %v1478
    %1857 = vmatprep.subr.bf16.mxu0 %v1487
    %1858 = vmatpush1.bf16.msra.mxu0 %v1486
    %1859 = vmatprep.subr.bf16.mxu0 %v1495
    %1860 = vmatpush1.bf16.msra.mxu0 %v1494
    %1861 = vmatprep.mubr.bf16.mxu0 %v1499
    %1862 = vmatmul.mubr.bf16.gmra.mrb[0].mxu0 %v1498
    %v1863 = vpop.f32.mrb[0].mxu0
    %v1864 = vadd.f32 %v1823, %v1863
    %v1865 = vpop.f32.mrb[0].mxu0
    %v1866 = vadd.f32 %v1825, %v1865
    %v1867 = vpop.f32.mrb[0].mxu0
    %v1868 = vpop.f32.mrb[0].mxu0
    %1869 = vdwg.mxu0
    %vm1870 = vcmp.gt.f32.partialorder %v1618, 0.0
    %vm1871 = vcmp.gt.f32.partialorder %v1620, 0.0
    %vm1872 = vcmp.gt.f32.partialorder %v1700, 0.0
    %vm1873 = vcmp.gt.f32.partialorder %v1702, 0.0
    %vm1874 = vcmp.gt.f32.partialorder %v1782, 0.0
    %vm1875 = vcmp.gt.f32.partialorder %v1784, 0.0
    %vm1876 = vcmp.gt.f32.partialorder %v1864, 0.0
    %vm1877 = vcmp.gt.f32.partialorder %v1866, 0.0
    %v1878 = vmul.f32 %v1618, 0.2
    %v1879 = vmul.f32 %v1620, 0.2
    %v1880 = vmul.f32 %v1700, 0.2
    %v1881 = vmul.f32 %v1702, 0.2
    %v1882 = vmul.f32 %v1782, 0.2
    %v1883 = vmul.f32 %v1784, 0.2
    %v1884 = vmul.f32 %v1864, 0.2
    %v1885 = vmul.f32 %v1866, 0.2
    %v1886 = vsel %vm1870, %v1618, %v1878
    %v1887 = vsel %vm1871, %v1620, %v1879
    %v1888 = vsel %vm1872, %v1700, %v1880
    %v1889 = vsel %vm1873, %v1702, %v1881
    %v1890 = vsel %vm1874, %v1782, %v1882
    %v1891 = vsel %vm1875, %v1784, %v1883
    %v1892 = vsel %vm1876, %v1864, %v1884
    %v1893 = vsel %vm1877, %v1866, %v1885
    %v1894 = vld [vmem:[#allocation22] sm:$0xff]
    %v1895 = vld [vmem:[#allocation23] sm:$0xff]
    %v1896 = vrot.slane %v1886, 4
    %v1897 = vadd.f32 %v1886, %v1896
    %v1898 = vrot.slane %v1897, 2
    %v1899 = vadd.f32 %v1897, %v1898
    %v1900 = vrot.slane %v1899, 1
    %v1901 = vadd.f32 %v1899, %v1900
    %v1902 = vrot.slane %v1887, 4
    %v1903 = vadd.f32 %v1887, %v1902
    %v1904 = vrot.slane %v1903, 2
    %v1905 = vadd.f32 %v1903, %v1904
    %v1906 = vrot.slane %v1905, 1
    %v1907 = vadd.f32 %v1905, %v1906
    %v1908 = vrot.slane %v1888, 4
    %v1909 = vadd.f32 %v1888, %v1908
    %v1910 = vrot.slane %v1909, 2
    %v1911 = vadd.f32 %v1909, %v1910
    %v1912 = vrot.slane %v1911, 1
    %v1913 = vadd.f32 %v1911, %v1912
    %v1914 = vrot.slane %v1889, 4
    %v1915 = vadd.f32 %v1889, %v1914
    %v1916 = vrot.slane %v1915, 2
    %v1917 = vadd.f32 %v1915, %v1916
    %v1918 = vrot.slane %v1917, 1
    %v1919 = vadd.f32 %v1917, %v1918
    %v1920 = vrot.slane %v1890, 4
    %v1921 = vadd.f32 %v1890, %v1920
    %v1922 = vrot.slane %v1921, 2
    %v1923 = vadd.f32 %v1921, %v1922
    %v1924 = vrot.slane %v1923, 1
    %v1925 = vadd.f32 %v1923, %v1924
    %v1926 = vrot.slane %v1891, 4
    %v1927 = vadd.f32 %v1891, %v1926
    %v1928 = vrot.slane %v1927, 2
    %v1929 = vadd.f32 %v1927, %v1928
    %v1930 = vrot.slane %v1929, 1
    %v1931 = vadd.f32 %v1929, %v1930
    %v1932 = vrot.slane %v1892, 4
    %v1933 = vadd.f32 %v1892, %v1932
    %v1934 = vrot.slane %v1933, 2
    %v1935 = vadd.f32 %v1933, %v1934
    %v1936 = vrot.slane %v1935, 1
    %v1937 = vadd.f32 %v1935, %v1936
    %v1938 = vrot.slane %v1893, 4
    %v1939 = vadd.f32 %v1893, %v1938
    %v1940 = vrot.slane %v1939, 2
    %v1941 = vadd.f32 %v1939, %v1940
    %v1942 = vrot.slane %v1941, 1
    %v1943 = vadd.f32 %v1941, %v1942
    %v1944 = vmul.f32 %v1901, %v443
    %v1945 = vmul.f32 %v1907, %v443
    %v1946 = vmul.f32 %v1913, %v443
    %v1947 = vmul.f32 %v1919, %v443
    %v1948 = vmul.f32 %v1925, %v443
    %v1949 = vmul.f32 %v1931, %v443
    %v1950 = vmul.f32 %v1937, %v443
    %v1951 = vmul.f32 %v1943, %v443
    %v1952 = vmul.f32 %v1886, %v1886
    %v1953 = vmul.f32 %v1887, %v1887
    %v1954 = vmul.f32 %v1888, %v1888
    %v1955 = vmul.f32 %v1889, %v1889
    %v1956 = vmul.f32 %v1890, %v1890
    %v1957 = vmul.f32 %v1891, %v1891
    %v1958 = vmul.f32 %v1892, %v1892
    %v1959 = vmul.f32 %v1893, %v1893
    %v1960 = vrot.slane %v1952, 4
    %v1961 = vadd.f32 %v1952, %v1960
    %v1962 = vrot.slane %v1961, 2
    %v1963 = vadd.f32 %v1961, %v1962
    %v1964 = vrot.slane %v1963, 1
    %v1965 = vadd.f32 %v1963, %v1964
    %v1966 = vrot.slane %v1953, 4
    %v1967 = vadd.f32 %v1953, %v1966
    %v1968 = vrot.slane %v1967, 2
    %v1969 = vadd.f32 %v1967, %v1968
    %v1970 = vrot.slane %v1969, 1
    %v1971 = vadd.f32 %v1969, %v1970
    %v1972 = vrot.slane %v1954, 4
    %v1973 = vadd.f32 %v1954, %v1972
    %v1974 = vrot.slane %v1973, 2
    %v1975 = vadd.f32 %v1973, %v1974
    %v1976 = vrot.slane %v1975, 1
    %v1977 = vadd.f32 %v1975, %v1976
    %v1978 = vrot.slane %v1955, 4
    %v1979 = vadd.f32 %v1955, %v1978
    %v1980 = vrot.slane %v1979, 2
    %v1981 = vadd.f32 %v1979, %v1980
    %v1982 = vrot.slane %v1981, 1
    %v1983 = vadd.f32 %v1981, %v1982
    %v1984 = vrot.slane %v1956, 4
    %v1985 = vadd.f32 %v1956, %v1984
    %v1986 = vrot.slane %v1985, 2
    %v1987 = vadd.f32 %v1985, %v1986
    %v1988 = vrot.slane %v1987, 1
    %v1989 = vadd.f32 %v1987, %v1988
    %v1990 = vrot.slane %v1957, 4
    %v1991 = vadd.f32 %v1957, %v1990
    %v1992 = vrot.slane %v1991, 2
    %v1993 = vadd.f32 %v1991, %v1992
    %v1994 = vrot.slane %v1993, 1
    %v1995 = vadd.f32 %v1993, %v1994
    %v1996 = vrot.slane %v1958, 4
    %v1997 = vadd.f32 %v1958, %v1996
    %v1998 = vrot.slane %v1997, 2
    %v1999 = vadd.f32 %v1997, %v1998
    %v2000 = vrot.slane %v1999, 1
    %v2001 = vadd.f32 %v1999, %v2000
    %v2002 = vrot.slane %v1959, 4
    %v2003 = vadd.f32 %v1959, %v2002
    %v2004 = vrot.slane %v2003, 2
    %v2005 = vadd.f32 %v2003, %v2004
    %v2006 = vrot.slane %v2005, 1
    %v2007 = vadd.f32 %v2005, %v2006
    %v2008 = vmul.f32 %v1965, %v443
    %v2009 = vmul.f32 %v1971, %v443
    %v2010 = vmul.f32 %v1977, %v443
    %v2011 = vmul.f32 %v1983, %v443
    %v2012 = vmul.f32 %v1989, %v443
    %v2013 = vmul.f32 %v1995, %v443
    %v2014 = vmul.f32 %v2001, %v443
    %v2015 = vmul.f32 %v2007, %v443
    %v2016 = vmul.f32 %v1944, %v1944
    %v2017 = vmul.f32 %v1945, %v1945
    %v2018 = vmul.f32 %v1946, %v1946
    %v2019 = vmul.f32 %v1947, %v1947
    %v2020 = vmul.f32 %v1948, %v1948
    %v2021 = vmul.f32 %v1949, %v1949
    %v2022 = vmul.f32 %v1950, %v1950
    %v2023 = vmul.f32 %v1951, %v1951
    %v2024 = vsub.f32 %v2008, %v2016
    %v2025 = vsub.f32 %v2009, %v2017
    %v2026 = vsub.f32 %v2010, %v2018
    %v2027 = vsub.f32 %v2011, %v2019
    %v2028 = vsub.f32 %v2012, %v2020
    %v2029 = vsub.f32 %v2013, %v2021
    %v2030 = vsub.f32 %v2014, %v2022
    %v2031 = vsub.f32 %v2015, %v2023
    %v2032 = vmax.f32 %v2024, 0.0
    %v2033 = vmax.f32 %v2025, 0.0
    %v2034 = vmax.f32 %v2026, 0.0
    %v2035 = vmax.f32 %v2027, 0.0
    %v2036 = vmax.f32 %v2028, 0.0
    %v2037 = vmax.f32 %v2029, 0.0
    %v2038 = vmax.f32 %v2030, 0.0
    %v2039 = vmax.f32 %v2031, 0.0
    %v2040 = vadd.f32 %v2032, 1e-05
    %v2041 = vadd.f32 %v2033, 1e-05
    %v2042 = vadd.f32 %v2034, 1e-05
    %v2043 = vadd.f32 %v2035, 1e-05
    %v2044 = vadd.f32 %v2036, 1e-05
    %v2045 = vadd.f32 %v2037, 1e-05
    %v2046 = vadd.f32 %v2038, 1e-05
    %v2047 = vadd.f32 %v2039, 1e-05
    %v2048 = vrsqrt.pop %v2040
    %v2049 = vrsqrt.pop %v2041
    %v2050 = vrsqrt.pop %v2042
    %v2051 = vrsqrt.pop %v2043
    %v2052 = vrsqrt.pop %v2044
    %v2053 = vrsqrt.pop %v2045
    %v2054 = vrsqrt.pop %v2046
    %v2055 = vrsqrt.pop %v2047
    %v2064 = vcombine.low %v2048, %v2049
    %v2065 = vcombine.low %v2050, %v2051
    %v2066 = vcombine.low %v2052, %v2053
    %v2067 = vcombine.low %v2054, %v2055
    %v2069 = vunpack.c.l.s4 1966171168
    %v2070 = vunpack.c.0.s8 %v2069
    %v2071 = vlaneseq
    %v2072 = vshrl.u32 %v2071, 7
    %v2073 = vsub.s32 %v2070, %v2072
    %v2074 = vrot.slane %v2064, %v2073
    %v2076 = vunpack.c.l.s4 1966171168
    %v2077 = vunpack.c.0.s8 %v2076
    %v2078 = vlaneseq
    %v2079 = vshrl.u32 %v2078, 7
    %v2080 = vsub.s32 %v2077, %v2079
    %v2081 = vrot.slane %v2065, %v2080
    %v2083 = vunpack.c.l.s4 1966171168
    %v2084 = vunpack.c.0.s8 %v2083
    %v2085 = vlaneseq
    %v2086 = vshrl.u32 %v2085, 7
    %v2087 = vsub.s32 %v2084, %v2086
    %v2088 = vrot.slane %v2066, %v2087
    %v2090 = vunpack.c.l.s4 1966171168
    %v2091 = vunpack.c.0.s8 %v2090
    %v2092 = vlaneseq
    %v2093 = vshrl.u32 %v2092, 7
    %v2094 = vsub.s32 %v2091, %v2093
    %v2095 = vrot.slane %v2067, %v2094
    %v2096 = vcombine.low %v2074, %v2081
    %v2097 = vcombine.low %v2088, %v2095
    %v2099 = vunpack.c.l.s4 1966171168
    %v2100 = vunpack.c.0.s8 %v2099
    %v2101 = vlaneseq
    %v2102 = vshrl.u32 %v2101, 7
    %v2103 = vsub.s32 %v2100, %v2102
    %v2104 = vrot.slane %v2096, %v2103
    %v2106 = vunpack.c.l.s4 1966171168
    %v2107 = vunpack.c.0.s8 %v2106
    %v2108 = vlaneseq
    %v2109 = vshrl.u32 %v2108, 7
    %v2110 = vsub.s32 %v2107, %v2109
    %v2111 = vrot.slane %v2097, %v2110
    %v2112 = vcombine.low %v2104, %v2111
    %v2114 = vmul.f32 %v1894, %v2112
    %v2116 = vlaneseq
    %v2117 = vshrl.u32 %v2116, 7
    %v2118 = vsub.s32 0, %v2117
    %v2119 = vrot.slane %v2114, %v2118
    %v2120 = vlaneseq
    %v2121 = vshrl.u32 %v2120, 7
    %v2122 = vsub.s32 1, %v2121
    %v2123 = vrot.slane %v2114, %v2122
    %v2124 = vlaneseq
    %v2125 = vshrl.u32 %v2124, 7
    %v2126 = vsub.s32 2, %v2125
    %v2127 = vrot.slane %v2114, %v2126
    %v2128 = vlaneseq
    %v2129 = vshrl.u32 %v2128, 7
    %v2130 = vsub.s32 3, %v2129
    %v2131 = vrot.slane %v2114, %v2130
    %v2132 = vlaneseq
    %v2133 = vshrl.u32 %v2132, 7
    %v2134 = vsub.s32 4, %v2133
    %v2135 = vrot.slane %v2114, %v2134
    %v2136 = vlaneseq
    %v2137 = vshrl.u32 %v2136, 7
    %v2138 = vsub.s32 5, %v2137
    %v2139 = vrot.slane %v2114, %v2138
    %v2140 = vlaneseq
    %v2141 = vshrl.u32 %v2140, 7
    %v2142 = vsub.s32 6, %v2141
    %v2143 = vrot.slane %v2114, %v2142
    %v2144 = vlaneseq
    %v2145 = vshrl.u32 %v2144, 7
    %v2146 = vsub.s32 7, %v2145
    %v2147 = vrot.slane %v2114, %v2146
    %v2156 = vmul.f32 %v1944, %v2119
    %v2157 = vmul.f32 %v1945, %v2123
    %v2158 = vmul.f32 %v1946, %v2127
    %v2159 = vmul.f32 %v1947, %v2131
    %v2160 = vmul.f32 %v1948, %v2135
    %v2161 = vmul.f32 %v1949, %v2139
    %v2162 = vmul.f32 %v1950, %v2143
    %v2163 = vmul.f32 %v1951, %v2147
    %v2172 = vcombine.low %v2156, %v2157
    %v2173 = vcombine.low %v2158, %v2159
    %v2174 = vcombine.low %v2160, %v2161
    %v2175 = vcombine.low %v2162, %v2163
    %v2177 = vunpack.c.l.s4 1966171168
    %v2178 = vunpack.c.0.s8 %v2177
    %v2179 = vlaneseq
    %v2180 = vshrl.u32 %v2179, 7
    %v2181 = vsub.s32 %v2178, %v2180
    %v2182 = vrot.slane %v2172, %v2181
    %v2184 = vunpack.c.l.s4 1966171168
    %v2185 = vunpack.c.0.s8 %v2184
    %v2186 = vlaneseq
    %v2187 = vshrl.u32 %v2186, 7
    %v2188 = vsub.s32 %v2185, %v2187
    %v2189 = vrot.slane %v2173, %v2188
    %v2191 = vunpack.c.l.s4 1966171168
    %v2192 = vunpack.c.0.s8 %v2191
    %v2193 = vlaneseq
    %v2194 = vshrl.u32 %v2193, 7
    %v2195 = vsub.s32 %v2192, %v2194
    %v2196 = vrot.slane %v2174, %v2195
    %v2198 = vunpack.c.l.s4 1966171168
    %v2199 = vunpack.c.0.s8 %v2198
    %v2200 = vlaneseq
    %v2201 = vshrl.u32 %v2200, 7
    %v2202 = vsub.s32 %v2199, %v2201
    %v2203 = vrot.slane %v2175, %v2202
    %v2204 = vcombine.low %v2182, %v2189
    %v2205 = vcombine.low %v2196, %v2203
    %v2207 = vunpack.c.l.s4 1966171168
    %v2208 = vunpack.c.0.s8 %v2207
    %v2209 = vlaneseq
    %v2210 = vshrl.u32 %v2209, 7
    %v2211 = vsub.s32 %v2208, %v2210
    %v2212 = vrot.slane %v2204, %v2211
    %v2214 = vunpack.c.l.s4 1966171168
    %v2215 = vunpack.c.0.s8 %v2214
    %v2216 = vlaneseq
    %v2217 = vshrl.u32 %v2216, 7
    %v2218 = vsub.s32 %v2215, %v2217
    %v2219 = vrot.slane %v2205, %v2218
    %v2220 = vcombine.low %v2212, %v2219
    %v2222 = vsub.f32 %v1895, %v2220
    %v2223 = vmul.f32 %v1886, %v2119
    %v2224 = vmul.f32 %v1887, %v2123
    %v2225 = vmul.f32 %v1888, %v2127
    %v2226 = vmul.f32 %v1889, %v2131
    %v2227 = vmul.f32 %v1890, %v2135
    %v2228 = vmul.f32 %v1891, %v2139
    %v2229 = vmul.f32 %v1892, %v2143
    %v2230 = vmul.f32 %v1893, %v2147
    %v2232 = vlaneseq
    %v2233 = vshrl.u32 %v2232, 7
    %v2234 = vsub.s32 0, %v2233
    %v2235 = vrot.slane %v2222, %v2234
    %v2236 = vlaneseq
    %v2237 = vshrl.u32 %v2236, 7
    %v2238 = vsub.s32 1, %v2237
    %v2239 = vrot.slane %v2222, %v2238
    %v2240 = vlaneseq
    %v2241 = vshrl.u32 %v2240, 7
    %v2242 = vsub.s32 2, %v2241
    %v2243 = vrot.slane %v2222, %v2242
    %v2244 = vlaneseq
    %v2245 = vshrl.u32 %v2244, 7
    %v2246 = vsub.s32 3, %v2245
    %v2247 = vrot.slane %v2222, %v2246
    %v2248 = vlaneseq
    %v2249 = vshrl.u32 %v2248, 7
    %v2250 = vsub.s32 4, %v2249
    %v2251 = vrot.slane %v2222, %v2250
    %v2252 = vlaneseq
    %v2253 = vshrl.u32 %v2252, 7
    %v2254 = vsub.s32 5, %v2253
    %v2255 = vrot.slane %v2222, %v2254
    %v2256 = vlaneseq
    %v2257 = vshrl.u32 %v2256, 7
    %v2258 = vsub.s32 6, %v2257
    %v2259 = vrot.slane %v2222, %v2258
    %v2260 = vlaneseq
    %v2261 = vshrl.u32 %v2260, 7
    %v2262 = vsub.s32 7, %v2261
    %v2263 = vrot.slane %v2222, %v2262
    %v2272 = vadd.f32 %v2223, %v2235
    %v2273 = vadd.f32 %v2224, %v2239
    %v2274 = vadd.f32 %v2225, %v2243
    %v2275 = vadd.f32 %v2226, %v2247
    %v2276 = vadd.f32 %v2227, %v2251
    %v2277 = vadd.f32 %v2228, %v2255
    %v2278 = vadd.f32 %v2229, %v2259
    %v2279 = vadd.f32 %v2230, %v2263
    %s2280 = smul.u32 4, 128
    %s2281 = smul.u32 %s2280, 7
    %s2282 = sshll.u32 %s2281, 4
    %2283 = dma.done %s237, %s2282
    %v2284 = vld [vmem:[#allocation3] sm:$0xff]
    %v2285 = vld [vmem:[#allocation3 + $0x8] sm:$0xff]
    %v2286 = vld [vmem:[#allocation3 + $0x10] sm:$0xff]
    %v2287 = vld [vmem:[#allocation3 + $0x18] sm:$0xff]
    %v2288 = vld [vmem:[#allocation3 + $0x20] sm:$0xff]
    %v2289 = vld [vmem:[#allocation3 + $0x28] sm:$0xff]
    %v2290 = vld [vmem:[#allocation3 + $0x30] sm:$0xff]
    %v2291 = vld [vmem:[#allocation3 + $0x38] sm:$0xff]
    %v2292 = vld [vmem:[#allocation3 + $0x40] sm:$0xff]
    %v2293 = vld [vmem:[#allocation3 + $0x48] sm:$0xff]
    %v2294 = vld [vmem:[#allocation3 + $0x50] sm:$0xff]
    %v2295 = vld [vmem:[#allocation3 + $0x58] sm:$0xff]
    %v2296 = vld [vmem:[#allocation3 + $0x60] sm:$0xff]
    %v2297 = vld [vmem:[#allocation3 + $0x68] sm:$0xff]
    %v2298 = vld [vmem:[#allocation3 + $0x70] sm:$0xff]
    %v2299 = vld [vmem:[#allocation3 + $0x78] sm:$0xff]
    %v2300 = vld [vmem:[#allocation3 + $0x80] sm:$0xff]
    %v2301 = vld [vmem:[#allocation3 + $0x88] sm:$0xff]
    %v2302 = vld [vmem:[#allocation3 + $0x90] sm:$0xff]
    %v2303 = vld [vmem:[#allocation3 + $0x98] sm:$0xff]
    %v2304 = vld [vmem:[#allocation3 + $0xa0] sm:$0xff]
    %v2305 = vld [vmem:[#allocation3 + $0xa8] sm:$0xff]
    %v2306 = vld [vmem:[#allocation3 + $0xb0] sm:$0xff]
    %v2307 = vld [vmem:[#allocation3 + $0xb8] sm:$0xff]
    %v2308 = vld [vmem:[#allocation3 + $0xc0] sm:$0xff]
    %v2309 = vld [vmem:[#allocation3 + $0xc8] sm:$0xff]
    %v2310 = vld [vmem:[#allocation3 + $0xd0] sm:$0xff]
    %v2311 = vld [vmem:[#allocation3 + $0xd8] sm:$0xff]
    %v2312 = vld [vmem:[#allocation3 + $0xe0] sm:$0xff]
    %v2313 = vld [vmem:[#allocation3 + $0xe8] sm:$0xff]
    %v2314 = vld [vmem:[#allocation3 + $0xf0] sm:$0xff]
    %v2315 = vld [vmem:[#allocation3 + $0xf8] sm:$0xff]
    %v2316 = vld [vmem:[#allocation3 + $0x100] sm:$0xff]
    %v2317 = vld [vmem:[#allocation3 + $0x108] sm:$0xff]
    %v2318 = vld [vmem:[#allocation3 + $0x110] sm:$0xff]
    %v2319 = vld [vmem:[#allocation3 + $0x118] sm:$0xff]
    %v2320 = vld [vmem:[#allocation3 + $0x120] sm:$0xff]
    %v2321 = vld [vmem:[#allocation3 + $0x128] sm:$0xff]
    %v2322 = vld [vmem:[#allocation3 + $0x130] sm:$0xff]
    %v2323 = vld [vmem:[#allocation3 + $0x138] sm:$0xff]
    %v2324 = vld [vmem:[#allocation3 + $0x140] sm:$0xff]
    %v2325 = vld [vmem:[#allocation3 + $0x148] sm:$0xff]
    %v2326 = vld [vmem:[#allocation3 + $0x150] sm:$0xff]
    %v2327 = vld [vmem:[#allocation3 + $0x158] sm:$0xff]
    %v2328 = vld [vmem:[#allocation3 + $0x160] sm:$0xff]
    %v2329 = vld [vmem:[#allocation3 + $0x168] sm:$0xff]
    %v2330 = vld [vmem:[#allocation3 + $0x170] sm:$0xff]
    %v2331 = vld [vmem:[#allocation3 + $0x178] sm:$0xff]
    %v2332 = vld [vmem:[#allocation3 + $0x180] sm:$0xff]
    %v2333 = vld [vmem:[#allocation3 + $0x188] sm:$0xff]
    %v2334 = vld [vmem:[#allocation3 + $0x190] sm:$0xff]
    %v2335 = vld [vmem:[#allocation3 + $0x198] sm:$0xff]
    %v2336 = vld [vmem:[#allocation3 + $0x1a0] sm:$0xff]
    %v2337 = vld [vmem:[#allocation3 + $0x1a8] sm:$0xff]
    %v2338 = vld [vmem:[#allocation3 + $0x1b0] sm:$0xff]
    %v2339 = vld [vmem:[#allocation3 + $0x1b8] sm:$0xff]
    %v2340 = vld [vmem:[#allocation3 + $0x1c0] sm:$0xff]
    %v2341 = vld [vmem:[#allocation3 + $0x1c8] sm:$0xff]
    %v2342 = vld [vmem:[#allocation3 + $0x1d0] sm:$0xff]
    %v2343 = vld [vmem:[#allocation3 + $0x1d8] sm:$0xff]
    %v2344 = vld [vmem:[#allocation3 + $0x1e0] sm:$0xff]
    %v2345 = vld [vmem:[#allocation3 + $0x1e8] sm:$0xff]
    %v2346 = vld [vmem:[#allocation3 + $0x1f0] sm:$0xff]
    %v2347 = vld [vmem:[#allocation3 + $0x1f8] sm:$0xff]
    %v2348 = vld [vmem:[#allocation3 + $0x200] sm:$0xff]
    %v2349 = vld [vmem:[#allocation3 + $0x208] sm:$0xff]
    %v2350 = vld [vmem:[#allocation3 + $0x210] sm:$0xff]
    %v2351 = vld [vmem:[#allocation3 + $0x218] sm:$0xff]
    %v2352 = vld [vmem:[#allocation3 + $0x220] sm:$0xff]
    %v2353 = vld [vmem:[#allocation3 + $0x228] sm:$0xff]
    %v2354 = vld [vmem:[#allocation3 + $0x230] sm:$0xff]
    %v2355 = vld [vmem:[#allocation3 + $0x238] sm:$0xff]
    %v2356 = vld [vmem:[#allocation3 + $0x240] sm:$0xff]
    %v2357 = vld [vmem:[#allocation3 + $0x248] sm:$0xff]
    %v2358 = vld [vmem:[#allocation3 + $0x250] sm:$0xff]
    %v2359 = vld [vmem:[#allocation3 + $0x258] sm:$0xff]
    %v2360 = vld [vmem:[#allocation3 + $0x260] sm:$0xff]
    %v2361 = vld [vmem:[#allocation3 + $0x268] sm:$0xff]
    %v2362 = vld [vmem:[#allocation3 + $0x270] sm:$0xff]
    %v2363 = vld [vmem:[#allocation3 + $0x278] sm:$0xff]
    %v2364 = vld [vmem:[#allocation3 + $0x280] sm:$0xff]
    %v2365 = vld [vmem:[#allocation3 + $0x288] sm:$0xff]
    %v2366 = vld [vmem:[#allocation3 + $0x290] sm:$0xff]
    %v2367 = vld [vmem:[#allocation3 + $0x298] sm:$0xff]
    %v2368 = vld [vmem:[#allocation3 + $0x2a0] sm:$0xff]
    %v2369 = vld [vmem:[#allocation3 + $0x2a8] sm:$0xff]
    %v2370 = vld [vmem:[#allocation3 + $0x2b0] sm:$0xff]
    %v2371 = vld [vmem:[#allocation3 + $0x2b8] sm:$0xff]
    %v2372 = vld [vmem:[#allocation3 + $0x2c0] sm:$0xff]
    %v2373 = vld [vmem:[#allocation3 + $0x2c8] sm:$0xff]
    %v2374 = vld [vmem:[#allocation3 + $0x2d0] sm:$0xff]
    %v2375 = vld [vmem:[#allocation3 + $0x2d8] sm:$0xff]
    %v2376 = vld [vmem:[#allocation3 + $0x2e0] sm:$0xff]
    %v2377 = vld [vmem:[#allocation3 + $0x2e8] sm:$0xff]
    %v2378 = vld [vmem:[#allocation3 + $0x2f0] sm:$0xff]
    %v2379 = vld [vmem:[#allocation3 + $0x2f8] sm:$0xff]
    %v2380 = vld [vmem:[#allocation3 + $0x300] sm:$0xff]
    %v2381 = vld [vmem:[#allocation3 + $0x308] sm:$0xff]
    %v2382 = vld [vmem:[#allocation3 + $0x310] sm:$0xff]
    %v2383 = vld [vmem:[#allocation3 + $0x318] sm:$0xff]
    %v2384 = vld [vmem:[#allocation3 + $0x320] sm:$0xff]
    %v2385 = vld [vmem:[#allocation3 + $0x328] sm:$0xff]
    %v2386 = vld [vmem:[#allocation3 + $0x330] sm:$0xff]
    %v2387 = vld [vmem:[#allocation3 + $0x338] sm:$0xff]
    %v2388 = vld [vmem:[#allocation3 + $0x340] sm:$0xff]
    %v2389 = vld [vmem:[#allocation3 + $0x348] sm:$0xff]
    %v2390 = vld [vmem:[#allocation3 + $0x350] sm:$0xff]
    %v2391 = vld [vmem:[#allocation3 + $0x358] sm:$0xff]
    %v2392 = vld [vmem:[#allocation3 + $0x360] sm:$0xff]
    %v2393 = vld [vmem:[#allocation3 + $0x368] sm:$0xff]
    %v2394 = vld [vmem:[#allocation3 + $0x370] sm:$0xff]
    %v2395 = vld [vmem:[#allocation3 + $0x378] sm:$0xff]
    %v2396 = vld [vmem:[#allocation3 + $0x380] sm:$0xff]
    %v2397 = vld [vmem:[#allocation3 + $0x388] sm:$0xff]
    %v2398 = vld [vmem:[#allocation3 + $0x390] sm:$0xff]
    %v2399 = vld [vmem:[#allocation3 + $0x398] sm:$0xff]
    %v2400 = vld [vmem:[#allocation3 + $0x3a0] sm:$0xff]
    %v2401 = vld [vmem:[#allocation3 + $0x3a8] sm:$0xff]
    %v2402 = vld [vmem:[#allocation3 + $0x3b0] sm:$0xff]
    %v2403 = vld [vmem:[#allocation3 + $0x3b8] sm:$0xff]
    %v2404 = vld [vmem:[#allocation3 + $0x3c0] sm:$0xff]
    %v2405 = vld [vmem:[#allocation3 + $0x3c8] sm:$0xff]
    %v2406 = vld [vmem:[#allocation3 + $0x3d0] sm:$0xff]
    %v2407 = vld [vmem:[#allocation3 + $0x3d8] sm:$0xff]
    %v2408 = vld [vmem:[#allocation3 + $0x3e0] sm:$0xff]
    %v2409 = vld [vmem:[#allocation3 + $0x3e8] sm:$0xff]
    %v2410 = vld [vmem:[#allocation3 + $0x3f0] sm:$0xff]
    %v2411 = vld [vmem:[#allocation3 + $0x3f8] sm:$0xff]
    %v2412 = vld [vmem:[#allocation3 + $0x400] sm:$0xff]
    %v2413 = vld [vmem:[#allocation3 + $0x408] sm:$0xff]
    %v2414 = vld [vmem:[#allocation3 + $0x410] sm:$0xff]
    %v2415 = vld [vmem:[#allocation3 + $0x418] sm:$0xff]
    %v2416 = vld [vmem:[#allocation3 + $0x420] sm:$0xff]
    %v2417 = vld [vmem:[#allocation3 + $0x428] sm:$0xff]
    %v2418 = vld [vmem:[#allocation3 + $0x430] sm:$0xff]
    %v2419 = vld [vmem:[#allocation3 + $0x438] sm:$0xff]
    %v2420 = vld [vmem:[#allocation3 + $0x440] sm:$0xff]
    %v2421 = vld [vmem:[#allocation3 + $0x448] sm:$0xff]
    %v2422 = vld [vmem:[#allocation3 + $0x450] sm:$0xff]
    %v2423 = vld [vmem:[#allocation3 + $0x458] sm:$0xff]
    %v2424 = vld [vmem:[#allocation3 + $0x460] sm:$0xff]
    %v2425 = vld [vmem:[#allocation3 + $0x468] sm:$0xff]
    %v2426 = vld [vmem:[#allocation3 + $0x470] sm:$0xff]
    %v2427 = vld [vmem:[#allocation3 + $0x478] sm:$0xff]
    %v2428 = vld [vmem:[#allocation3 + $0x480] sm:$0xff]
    %v2429 = vld [vmem:[#allocation3 + $0x488] sm:$0xff]
    %v2430 = vld [vmem:[#allocation3 + $0x490] sm:$0xff]
    %v2431 = vld [vmem:[#allocation3 + $0x498] sm:$0xff]
    %v2432 = vld [vmem:[#allocation3 + $0x4a0] sm:$0xff]
    %v2433 = vld [vmem:[#allocation3 + $0x4a8] sm:$0xff]
    %v2434 = vld [vmem:[#allocation3 + $0x4b0] sm:$0xff]
    %v2435 = vld [vmem:[#allocation3 + $0x4b8] sm:$0xff]
    %v2436 = vld [vmem:[#allocation3 + $0x4c0] sm:$0xff]
    %v2437 = vld [vmem:[#allocation3 + $0x4c8] sm:$0xff]
    %v2438 = vld [vmem:[#allocation3 + $0x4d0] sm:$0xff]
    %v2439 = vld [vmem:[#allocation3 + $0x4d8] sm:$0xff]
    %v2440 = vld [vmem:[#allocation3 + $0x4e0] sm:$0xff]
    %v2441 = vld [vmem:[#allocation3 + $0x4e8] sm:$0xff]
    %v2442 = vld [vmem:[#allocation3 + $0x4f0] sm:$0xff]
    %v2443 = vld [vmem:[#allocation3 + $0x4f8] sm:$0xff]
    %v2444 = vld [vmem:[#allocation3 + $0x500] sm:$0xff]
    %v2445 = vld [vmem:[#allocation3 + $0x508] sm:$0xff]
    %v2446 = vld [vmem:[#allocation3 + $0x510] sm:$0xff]
    %v2447 = vld [vmem:[#allocation3 + $0x518] sm:$0xff]
    %v2448 = vld [vmem:[#allocation3 + $0x520] sm:$0xff]
    %v2449 = vld [vmem:[#allocation3 + $0x528] sm:$0xff]
    %v2450 = vld [vmem:[#allocation3 + $0x530] sm:$0xff]
    %v2451 = vld [vmem:[#allocation3 + $0x538] sm:$0xff]
    %v2452 = vld [vmem:[#allocation3 + $0x540] sm:$0xff]
    %v2453 = vld [vmem:[#allocation3 + $0x548] sm:$0xff]
    %v2454 = vld [vmem:[#allocation3 + $0x550] sm:$0xff]
    %v2455 = vld [vmem:[#allocation3 + $0x558] sm:$0xff]
    %v2456 = vld [vmem:[#allocation3 + $0x560] sm:$0xff]
    %v2457 = vld [vmem:[#allocation3 + $0x568] sm:$0xff]
    %v2458 = vld [vmem:[#allocation3 + $0x570] sm:$0xff]
    %v2459 = vld [vmem:[#allocation3 + $0x578] sm:$0xff]
    %v2460 = vld [vmem:[#allocation3 + $0x580] sm:$0xff]
    %v2461 = vld [vmem:[#allocation3 + $0x588] sm:$0xff]
    %v2462 = vld [vmem:[#allocation3 + $0x590] sm:$0xff]
    %v2463 = vld [vmem:[#allocation3 + $0x598] sm:$0xff]
    %v2464 = vld [vmem:[#allocation3 + $0x5a0] sm:$0xff]
    %v2465 = vld [vmem:[#allocation3 + $0x5a8] sm:$0xff]
    %v2466 = vld [vmem:[#allocation3 + $0x5b0] sm:$0xff]
    %v2467 = vld [vmem:[#allocation3 + $0x5b8] sm:$0xff]
    %v2468 = vld [vmem:[#allocation3 + $0x5c0] sm:$0xff]
    %v2469 = vld [vmem:[#allocation3 + $0x5c8] sm:$0xff]
    %v2470 = vld [vmem:[#allocation3 + $0x5d0] sm:$0xff]
    %v2471 = vld [vmem:[#allocation3 + $0x5d8] sm:$0xff]
    %v2472 = vld [vmem:[#allocation3 + $0x5e0] sm:$0xff]
    %v2473 = vld [vmem:[#allocation3 + $0x5e8] sm:$0xff]
    %v2474 = vld [vmem:[#allocation3 + $0x5f0] sm:$0xff]
    %v2475 = vld [vmem:[#allocation3 + $0x5f8] sm:$0xff]
    %v2476 = vld [vmem:[#allocation3 + $0x600] sm:$0xff]
    %v2477 = vld [vmem:[#allocation3 + $0x608] sm:$0xff]
    %v2478 = vld [vmem:[#allocation3 + $0x610] sm:$0xff]
    %v2479 = vld [vmem:[#allocation3 + $0x618] sm:$0xff]
    %v2480 = vld [vmem:[#allocation3 + $0x620] sm:$0xff]
    %v2481 = vld [vmem:[#allocation3 + $0x628] sm:$0xff]
    %v2482 = vld [vmem:[#allocation3 + $0x630] sm:$0xff]
    %v2483 = vld [vmem:[#allocation3 + $0x638] sm:$0xff]
    %v2484 = vld [vmem:[#allocation3 + $0x640] sm:$0xff]
    %v2485 = vld [vmem:[#allocation3 + $0x648] sm:$0xff]
    %v2486 = vld [vmem:[#allocation3 + $0x650] sm:$0xff]
    %v2487 = vld [vmem:[#allocation3 + $0x658] sm:$0xff]
    %v2488 = vld [vmem:[#allocation3 + $0x660] sm:$0xff]
    %v2489 = vld [vmem:[#allocation3 + $0x668] sm:$0xff]
    %v2490 = vld [vmem:[#allocation3 + $0x670] sm:$0xff]
    %v2491 = vld [vmem:[#allocation3 + $0x678] sm:$0xff]
    %v2492 = vld [vmem:[#allocation3 + $0x680] sm:$0xff]
    %v2493 = vld [vmem:[#allocation3 + $0x688] sm:$0xff]
    %v2494 = vld [vmem:[#allocation3 + $0x690] sm:$0xff]
    %v2495 = vld [vmem:[#allocation3 + $0x698] sm:$0xff]
    %v2496 = vld [vmem:[#allocation3 + $0x6a0] sm:$0xff]
    %v2497 = vld [vmem:[#allocation3 + $0x6a8] sm:$0xff]
    %v2498 = vld [vmem:[#allocation3 + $0x6b0] sm:$0xff]
    %v2499 = vld [vmem:[#allocation3 + $0x6b8] sm:$0xff]
    %v2500 = vld [vmem:[#allocation3 + $0x6c0] sm:$0xff]
    %v2501 = vld [vmem:[#allocation3 + $0x6c8] sm:$0xff]
    %v2502 = vld [vmem:[#allocation3 + $0x6d0] sm:$0xff]
    %v2503 = vld [vmem:[#allocation3 + $0x6d8] sm:$0xff]
    %v2504 = vld [vmem:[#allocation3 + $0x6e0] sm:$0xff]
    %v2505 = vld [vmem:[#allocation3 + $0x6e8] sm:$0xff]
    %v2506 = vld [vmem:[#allocation3 + $0x6f0] sm:$0xff]
    %v2507 = vld [vmem:[#allocation3 + $0x6f8] sm:$0xff]
    %v2508 = vld [vmem:[#allocation3 + $0x700] sm:$0xff]
    %v2509 = vld [vmem:[#allocation3 + $0x708] sm:$0xff]
    %v2510 = vld [vmem:[#allocation3 + $0x710] sm:$0xff]
    %v2511 = vld [vmem:[#allocation3 + $0x718] sm:$0xff]
    %v2512 = vld [vmem:[#allocation3 + $0x720] sm:$0xff]
    %v2513 = vld [vmem:[#allocation3 + $0x728] sm:$0xff]
    %v2514 = vld [vmem:[#allocation3 + $0x730] sm:$0xff]
    %v2515 = vld [vmem:[#allocation3 + $0x738] sm:$0xff]
    %v2516 = vld [vmem:[#allocation3 + $0x740] sm:$0xff]
    %v2517 = vld [vmem:[#allocation3 + $0x748] sm:$0xff]
    %v2518 = vld [vmem:[#allocation3 + $0x750] sm:$0xff]
    %v2519 = vld [vmem:[#allocation3 + $0x758] sm:$0xff]
    %v2520 = vld [vmem:[#allocation3 + $0x760] sm:$0xff]
    %v2521 = vld [vmem:[#allocation3 + $0x768] sm:$0xff]
    %v2522 = vld [vmem:[#allocation3 + $0x770] sm:$0xff]
    %v2523 = vld [vmem:[#allocation3 + $0x778] sm:$0xff]
    %v2524 = vld [vmem:[#allocation3 + $0x780] sm:$0xff]
    %v2525 = vld [vmem:[#allocation3 + $0x788] sm:$0xff]
    %v2526 = vld [vmem:[#allocation3 + $0x790] sm:$0xff]
    %v2527 = vld [vmem:[#allocation3 + $0x798] sm:$0xff]
    %v2528 = vld [vmem:[#allocation3 + $0x7a0] sm:$0xff]
    %v2529 = vld [vmem:[#allocation3 + $0x7a8] sm:$0xff]
    %v2530 = vld [vmem:[#allocation3 + $0x7b0] sm:$0xff]
    %v2531 = vld [vmem:[#allocation3 + $0x7b8] sm:$0xff]
    %v2532 = vld [vmem:[#allocation3 + $0x7c0] sm:$0xff]
    %v2533 = vld [vmem:[#allocation3 + $0x7c8] sm:$0xff]
    %v2534 = vld [vmem:[#allocation3 + $0x7d0] sm:$0xff]
    %v2535 = vld [vmem:[#allocation3 + $0x7d8] sm:$0xff]
    %v2536 = vld [vmem:[#allocation3 + $0x7e0] sm:$0xff]
    %v2537 = vld [vmem:[#allocation3 + $0x7e8] sm:$0xff]
    %v2538 = vld [vmem:[#allocation3 + $0x7f0] sm:$0xff]
    %v2539 = vld [vmem:[#allocation3 + $0x7f8] sm:$0xff]
    %v2540 = vld [vmem:[#allocation3 + $0x800] sm:$0xff]
    %v2541 = vld [vmem:[#allocation3 + $0x808] sm:$0xff]
    %v2542 = vld [vmem:[#allocation3 + $0x810] sm:$0xff]
    %v2543 = vld [vmem:[#allocation3 + $0x818] sm:$0xff]
    %v2544 = vld [vmem:[#allocation3 + $0x820] sm:$0xff]
    %v2545 = vld [vmem:[#allocation3 + $0x828] sm:$0xff]
    %v2546 = vld [vmem:[#allocation3 + $0x830] sm:$0xff]
    %v2547 = vld [vmem:[#allocation3 + $0x838] sm:$0xff]
    %v2548 = vld [vmem:[#allocation3 + $0x840] sm:$0xff]
    %v2549 = vld [vmem:[#allocation3 + $0x848] sm:$0xff]
    %v2550 = vld [vmem:[#allocation3 + $0x850] sm:$0xff]
    %v2551 = vld [vmem:[#allocation3 + $0x858] sm:$0xff]
    %v2552 = vld [vmem:[#allocation3 + $0x860] sm:$0xff]
    %v2553 = vld [vmem:[#allocation3 + $0x868] sm:$0xff]
    %v2554 = vld [vmem:[#allocation3 + $0x870] sm:$0xff]
    %v2555 = vld [vmem:[#allocation3 + $0x878] sm:$0xff]
    %v2556 = vld [vmem:[#allocation3 + $0x880] sm:$0xff]
    %v2557 = vld [vmem:[#allocation3 + $0x888] sm:$0xff]
    %v2558 = vld [vmem:[#allocation3 + $0x890] sm:$0xff]
    %v2559 = vld [vmem:[#allocation3 + $0x898] sm:$0xff]
    %v2560 = vld [vmem:[#allocation3 + $0x8a0] sm:$0xff]
    %v2561 = vld [vmem:[#allocation3 + $0x8a8] sm:$0xff]
    %v2562 = vld [vmem:[#allocation3 + $0x8b0] sm:$0xff]
    %v2563 = vld [vmem:[#allocation3 + $0x8b8] sm:$0xff]
    %v2564 = vld [vmem:[#allocation3 + $0x8c0] sm:$0xff]
    %v2565 = vld [vmem:[#allocation3 + $0x8c8] sm:$0xff]
    %v2566 = vld [vmem:[#allocation3 + $0x8d0] sm:$0xff]
    %v2567 = vld [vmem:[#allocation3 + $0x8d8] sm:$0xff]
    %v2568 = vld [vmem:[#allocation3 + $0x8e0] sm:$0xff]
    %v2569 = vld [vmem:[#allocation3 + $0x8e8] sm:$0xff]
    %v2570 = vld [vmem:[#allocation3 + $0x8f0] sm:$0xff]
    %v2571 = vld [vmem:[#allocation3 + $0x8f8] sm:$0xff]
    %v2572 = vld [vmem:[#allocation3 + $0x900] sm:$0xff]
    %v2573 = vld [vmem:[#allocation3 + $0x908] sm:$0xff]
    %v2574 = vld [vmem:[#allocation3 + $0x910] sm:$0xff]
    %v2575 = vld [vmem:[#allocation3 + $0x918] sm:$0xff]
    %v2576 = vld [vmem:[#allocation3 + $0x920] sm:$0xff]
    %v2577 = vld [vmem:[#allocation3 + $0x928] sm:$0xff]
    %v2578 = vld [vmem:[#allocation3 + $0x930] sm:$0xff]
    %v2579 = vld [vmem:[#allocation3 + $0x938] sm:$0xff]
    %v2580 = vld [vmem:[#allocation3 + $0x940] sm:$0xff]
    %v2581 = vld [vmem:[#allocation3 + $0x948] sm:$0xff]
    %v2582 = vld [vmem:[#allocation3 + $0x950] sm:$0xff]
    %v2583 = vld [vmem:[#allocation3 + $0x958] sm:$0xff]
    %v2584 = vld [vmem:[#allocation3 + $0x960] sm:$0xff]
    %v2585 = vld [vmem:[#allocation3 + $0x968] sm:$0xff]
    %v2586 = vld [vmem:[#allocation3 + $0x970] sm:$0xff]
    %v2587 = vld [vmem:[#allocation3 + $0x978] sm:$0xff]
    %v2588 = vld [vmem:[#allocation3 + $0x980] sm:$0xff]
    %v2589 = vld [vmem:[#allocation3 + $0x988] sm:$0xff]
    %v2590 = vld [vmem:[#allocation3 + $0x990] sm:$0xff]
    %v2591 = vld [vmem:[#allocation3 + $0x998] sm:$0xff]
    %v2592 = vld [vmem:[#allocation3 + $0x9a0] sm:$0xff]
    %v2593 = vld [vmem:[#allocation3 + $0x9a8] sm:$0xff]
    %v2594 = vld [vmem:[#allocation3 + $0x9b0] sm:$0xff]
    %v2595 = vld [vmem:[#allocation3 + $0x9b8] sm:$0xff]
    %v2596 = vld [vmem:[#allocation3 + $0x9c0] sm:$0xff]
    %v2597 = vld [vmem:[#allocation3 + $0x9c8] sm:$0xff]
    %v2598 = vld [vmem:[#allocation3 + $0x9d0] sm:$0xff]
    %v2599 = vld [vmem:[#allocation3 + $0x9d8] sm:$0xff]
    %v2600 = vld [vmem:[#allocation3 + $0x9e0] sm:$0xff]
    %v2601 = vld [vmem:[#allocation3 + $0x9e8] sm:$0xff]
    %v2602 = vld [vmem:[#allocation3 + $0x9f0] sm:$0xff]
    %v2603 = vld [vmem:[#allocation3 + $0x9f8] sm:$0xff]
    %v2604 = vld [vmem:[#allocation3 + $0xa00] sm:$0xff]
    %v2605 = vld [vmem:[#allocation3 + $0xa08] sm:$0xff]
    %v2606 = vld [vmem:[#allocation3 + $0xa10] sm:$0xff]
    %v2607 = vld [vmem:[#allocation3 + $0xa18] sm:$0xff]
    %v2608 = vld [vmem:[#allocation3 + $0xa20] sm:$0xff]
    %v2609 = vld [vmem:[#allocation3 + $0xa28] sm:$0xff]
    %v2610 = vld [vmem:[#allocation3 + $0xa30] sm:$0xff]
    %v2611 = vld [vmem:[#allocation3 + $0xa38] sm:$0xff]
    %v2612 = vld [vmem:[#allocation3 + $0xa40] sm:$0xff]
    %v2613 = vld [vmem:[#allocation3 + $0xa48] sm:$0xff]
    %v2614 = vld [vmem:[#allocation3 + $0xa50] sm:$0xff]
    %v2615 = vld [vmem:[#allocation3 + $0xa58] sm:$0xff]
    %v2616 = vld [vmem:[#allocation3 + $0xa60] sm:$0xff]
    %v2617 = vld [vmem:[#allocation3 + $0xa68] sm:$0xff]
    %v2618 = vld [vmem:[#allocation3 + $0xa70] sm:$0xff]
    %v2619 = vld [vmem:[#allocation3 + $0xa78] sm:$0xff]
    %v2620 = vld [vmem:[#allocation3 + $0xa80] sm:$0xff]
    %v2621 = vld [vmem:[#allocation3 + $0xa88] sm:$0xff]
    %v2622 = vld [vmem:[#allocation3 + $0xa90] sm:$0xff]
    %v2623 = vld [vmem:[#allocation3 + $0xa98] sm:$0xff]
    %v2624 = vld [vmem:[#allocation3 + $0xaa0] sm:$0xff]
    %v2625 = vld [vmem:[#allocation3 + $0xaa8] sm:$0xff]
    %v2626 = vld [vmem:[#allocation3 + $0xab0] sm:$0xff]
    %v2627 = vld [vmem:[#allocation3 + $0xab8] sm:$0xff]
    %v2628 = vld [vmem:[#allocation3 + $0xac0] sm:$0xff]
    %v2629 = vld [vmem:[#allocation3 + $0xac8] sm:$0xff]
    %v2630 = vld [vmem:[#allocation3 + $0xad0] sm:$0xff]
    %v2631 = vld [vmem:[#allocation3 + $0xad8] sm:$0xff]
    %v2632 = vld [vmem:[#allocation3 + $0xae0] sm:$0xff]
    %v2633 = vld [vmem:[#allocation3 + $0xae8] sm:$0xff]
    %v2634 = vld [vmem:[#allocation3 + $0xaf0] sm:$0xff]
    %v2635 = vld [vmem:[#allocation3 + $0xaf8] sm:$0xff]
    %v2636 = vld [vmem:[#allocation3 + $0xb00] sm:$0xff]
    %v2637 = vld [vmem:[#allocation3 + $0xb08] sm:$0xff]
    %v2638 = vld [vmem:[#allocation3 + $0xb10] sm:$0xff]
    %v2639 = vld [vmem:[#allocation3 + $0xb18] sm:$0xff]
    %v2640 = vld [vmem:[#allocation3 + $0xb20] sm:$0xff]
    %v2641 = vld [vmem:[#allocation3 + $0xb28] sm:$0xff]
    %v2642 = vld [vmem:[#allocation3 + $0xb30] sm:$0xff]
    %v2643 = vld [vmem:[#allocation3 + $0xb38] sm:$0xff]
    %v2644 = vld [vmem:[#allocation3 + $0xb40] sm:$0xff]
    %v2645 = vld [vmem:[#allocation3 + $0xb48] sm:$0xff]
    %v2646 = vld [vmem:[#allocation3 + $0xb50] sm:$0xff]
    %v2647 = vld [vmem:[#allocation3 + $0xb58] sm:$0xff]
    %v2648 = vld [vmem:[#allocation3 + $0xb60] sm:$0xff]
    %v2649 = vld [vmem:[#allocation3 + $0xb68] sm:$0xff]
    %v2650 = vld [vmem:[#allocation3 + $0xb70] sm:$0xff]
    %v2651 = vld [vmem:[#allocation3 + $0xb78] sm:$0xff]
    %v2652 = vld [vmem:[#allocation3 + $0xb80] sm:$0xff]
    %v2653 = vld [vmem:[#allocation3 + $0xb88] sm:$0xff]
    %v2654 = vld [vmem:[#allocation3 + $0xb90] sm:$0xff]
    %v2655 = vld [vmem:[#allocation3 + $0xb98] sm:$0xff]
    %v2656 = vld [vmem:[#allocation3 + $0xba0] sm:$0xff]
    %v2657 = vld [vmem:[#allocation3 + $0xba8] sm:$0xff]
    %v2658 = vld [vmem:[#allocation3 + $0xbb0] sm:$0xff]
    %v2659 = vld [vmem:[#allocation3 + $0xbb8] sm:$0xff]
    %v2660 = vld [vmem:[#allocation3 + $0xbc0] sm:$0xff]
    %v2661 = vld [vmem:[#allocation3 + $0xbc8] sm:$0xff]
    %v2662 = vld [vmem:[#allocation3 + $0xbd0] sm:$0xff]
    %v2663 = vld [vmem:[#allocation3 + $0xbd8] sm:$0xff]
    %v2664 = vld [vmem:[#allocation3 + $0xbe0] sm:$0xff]
    %v2665 = vld [vmem:[#allocation3 + $0xbe8] sm:$0xff]
    %v2666 = vld [vmem:[#allocation3 + $0xbf0] sm:$0xff]
    %v2667 = vld [vmem:[#allocation3 + $0xbf8] sm:$0xff]
    %v2668 = vld [vmem:[#allocation3 + $0xc00] sm:$0xff]
    %v2669 = vld [vmem:[#allocation3 + $0xc08] sm:$0xff]
    %v2670 = vld [vmem:[#allocation3 + $0xc10] sm:$0xff]
    %v2671 = vld [vmem:[#allocation3 + $0xc18] sm:$0xff]
    %v2672 = vld [vmem:[#allocation3 + $0xc20] sm:$0xff]
    %v2673 = vld [vmem:[#allocation3 + $0xc28] sm:$0xff]
    %v2674 = vld [vmem:[#allocation3 + $0xc30] sm:$0xff]
    %v2675 = vld [vmem:[#allocation3 + $0xc38] sm:$0xff]
    %v2676 = vld [vmem:[#allocation3 + $0xc40] sm:$0xff]
    %v2677 = vld [vmem:[#allocation3 + $0xc48] sm:$0xff]
    %v2678 = vld [vmem:[#allocation3 + $0xc50] sm:$0xff]
    %v2679 = vld [vmem:[#allocation3 + $0xc58] sm:$0xff]
    %v2680 = vld [vmem:[#allocation3 + $0xc60] sm:$0xff]
    %v2681 = vld [vmem:[#allocation3 + $0xc68] sm:$0xff]
    %v2682 = vld [vmem:[#allocation3 + $0xc70] sm:$0xff]
    %v2683 = vld [vmem:[#allocation3 + $0xc78] sm:$0xff]
    %v2684 = vld [vmem:[#allocation3 + $0xc80] sm:$0xff]
    %v2685 = vld [vmem:[#allocation3 + $0xc88] sm:$0xff]
    %v2686 = vld [vmem:[#allocation3 + $0xc90] sm:$0xff]
    %v2687 = vld [vmem:[#allocation3 + $0xc98] sm:$0xff]
    %v2688 = vld [vmem:[#allocation3 + $0xca0] sm:$0xff]
    %v2689 = vld [vmem:[#allocation3 + $0xca8] sm:$0xff]
    %v2690 = vld [vmem:[#allocation3 + $0xcb0] sm:$0xff]
    %v2691 = vld [vmem:[#allocation3 + $0xcb8] sm:$0xff]
    %v2692 = vld [vmem:[#allocation3 + $0xcc0] sm:$0xff]
    %v2693 = vld [vmem:[#allocation3 + $0xcc8] sm:$0xff]
    %v2694 = vld [vmem:[#allocation3 + $0xcd0] sm:$0xff]
    %v2695 = vld [vmem:[#allocation3 + $0xcd8] sm:$0xff]
    %v2696 = vld [vmem:[#allocation3 + $0xce0] sm:$0xff]
    %v2697 = vld [vmem:[#allocation3 + $0xce8] sm:$0xff]
    %v2698 = vld [vmem:[#allocation3 + $0xcf0] sm:$0xff]
    %v2699 = vld [vmem:[#allocation3 + $0xcf8] sm:$0xff]
    %v2700 = vld [vmem:[#allocation3 + $0xd00] sm:$0xff]
    %v2701 = vld [vmem:[#allocation3 + $0xd08] sm:$0xff]
    %v2702 = vld [vmem:[#allocation3 + $0xd10] sm:$0xff]
    %v2703 = vld [vmem:[#allocation3 + $0xd18] sm:$0xff]
    %v2704 = vld [vmem:[#allocation3 + $0xd20] sm:$0xff]
    %v2705 = vld [vmem:[#allocation3 + $0xd28] sm:$0xff]
    %v2706 = vld [vmem:[#allocation3 + $0xd30] sm:$0xff]
    %v2707 = vld [vmem:[#allocation3 + $0xd38] sm:$0xff]
    %v2708 = vld [vmem:[#allocation3 + $0xd40] sm:$0xff]
    %v2709 = vld [vmem:[#allocation3 + $0xd48] sm:$0xff]
    %v2710 = vld [vmem:[#allocation3 + $0xd50] sm:$0xff]
    %v2711 = vld [vmem:[#allocation3 + $0xd58] sm:$0xff]
    %v2712 = vld [vmem:[#allocation3 + $0xd60] sm:$0xff]
    %v2713 = vld [vmem:[#allocation3 + $0xd68] sm:$0xff]
    %v2714 = vld [vmem:[#allocation3 + $0xd70] sm:$0xff]
    %v2715 = vld [vmem:[#allocation3 + $0xd78] sm:$0xff]
    %v2716 = vld [vmem:[#allocation3 + $0xd80] sm:$0xff]
    %v2717 = vld [vmem:[#allocation3 + $0xd88] sm:$0xff]
    %v2718 = vld [vmem:[#allocation3 + $0xd90] sm:$0xff]
    %v2719 = vld [vmem:[#allocation3 + $0xd98] sm:$0xff]
    %v2720 = vld [vmem:[#allocation3 + $0xda0] sm:$0xff]
    %v2721 = vld [vmem:[#allocation3 + $0xda8] sm:$0xff]
    %v2722 = vld [vmem:[#allocation3 + $0xdb0] sm:$0xff]
    %v2723 = vld [vmem:[#allocation3 + $0xdb8] sm:$0xff]
    %v2724 = vld [vmem:[#allocation3 + $0xdc0] sm:$0xff]
    %v2725 = vld [vmem:[#allocation3 + $0xdc8] sm:$0xff]
    %v2726 = vld [vmem:[#allocation3 + $0xdd0] sm:$0xff]
    %v2727 = vld [vmem:[#allocation3 + $0xdd8] sm:$0xff]
    %v2728 = vld [vmem:[#allocation3 + $0xde0] sm:$0xff]
    %v2729 = vld [vmem:[#allocation3 + $0xde8] sm:$0xff]
    %v2730 = vld [vmem:[#allocation3 + $0xdf0] sm:$0xff]
    %v2731 = vld [vmem:[#allocation3 + $0xdf8] sm:$0xff]
    %v2732 = vpack.c.bf16 %v2272, %v2272
    %v2733 = vpack.c.bf16 %v2273, %v2273
    %v2734 = vpack.c.bf16 %v2274, %v2274
    %v2735 = vpack.c.bf16 %v2275, %v2275
    %v2736 = vpack.c.bf16 %v2276, %v2276
    %v2737 = vpack.c.bf16 %v2277, %v2277
    %v2738 = vpack.c.bf16 %v2278, %v2278
    %v2739 = vpack.c.bf16 %v2279, %v2279
    %v2740 = vld [vmem:[#allocation25] sm:$0xff]
    %v2742 = vlaneseq
    %v2743 = vshrl.u32 %v2742, 7
    %v2744 = vsub.s32 0, %v2743
    %v2745 = vrot.slane %v2740, %v2744
    %v2746 = vlaneseq
    %v2747 = vshrl.u32 %v2746, 7
    %v2748 = vsub.s32 1, %v2747
    %v2749 = vrot.slane %v2740, %v2748
    %v2750 = vlaneseq
    %v2751 = vshrl.u32 %v2750, 7
    %v2752 = vsub.s32 2, %v2751
    %v2753 = vrot.slane %v2740, %v2752
    %v2754 = vlaneseq
    %v2755 = vshrl.u32 %v2754, 7
    %v2756 = vsub.s32 3, %v2755
    %v2757 = vrot.slane %v2740, %v2756
    %v2758 = vlaneseq
    %v2759 = vshrl.u32 %v2758, 7
    %v2760 = vsub.s32 4, %v2759
    %v2761 = vrot.slane %v2740, %v2760
    %v2762 = vlaneseq
    %v2763 = vshrl.u32 %v2762, 7
    %v2764 = vsub.s32 5, %v2763
    %v2765 = vrot.slane %v2740, %v2764
    %v2766 = vlaneseq
    %v2767 = vshrl.u32 %v2766, 7
    %v2768 = vsub.s32 6, %v2767
    %v2769 = vrot.slane %v2740, %v2768
    %2777 = vmatprep.subr.bf16.mxu0 %v2285
    %2778 = vmatpush1.bf16.msra.mxu0 %v2284
    %2779 = vmatprep.subr.bf16.mxu0 %v2292
    %2780 = vmatpush1.bf16.msra.mxu0 %v2291
    %2781 = vmatprep.subr.bf16.mxu0 %v2299
    %2782 = vmatpush1.bf16.msra.mxu0 %v2298
    %2783 = vmatprep.subr.bf16.mxu0 %v2306
    %2784 = vmatpush1.bf16.msra.mxu0 %v2305
    %2785 = vmatprep.subr.bf16.mxu0 %v2313
    %2786 = vmatpush1.bf16.msra.mxu0 %v2312
    %2787 = vmatprep.subr.bf16.mxu0 %v2320
    %2788 = vmatpush1.bf16.msra.mxu0 %v2319
    %2789 = vmatprep.subr.bf16.mxu0 %v2327
    %2790 = vmatpush1.bf16.msra.mxu0 %v2326
    %2791 = vmatprep.subr.bf16.mxu0 %v2334
    %2792 = vmatpush1.bf16.msra.mxu0 %v2333
    %2793 = vmatprep.subr.bf16.mxu0 %v2341
    %2794 = vmatpush1.bf16.msra.mxu0 %v2340
    %2795 = vmatprep.subr.bf16.mxu0 %v2348
    %2796 = vmatpush1.bf16.msra.mxu0 %v2347
    %2797 = vmatprep.subr.bf16.mxu0 %v2355
    %2798 = vmatpush1.bf16.msra.mxu0 %v2354
    %2799 = vmatprep.subr.bf16.mxu0 %v2362
    %2800 = vmatpush1.bf16.msra.mxu0 %v2361
    %2801 = vmatprep.subr.bf16.mxu0 %v2369
    %2802 = vmatpush1.bf16.msra.mxu0 %v2368
    %2803 = vmatprep.subr.bf16.mxu0 %v2376
    %2804 = vmatpush1.bf16.msra.mxu0 %v2375
    %2805 = vmatprep.subr.bf16.mxu0 %v2383
    %2806 = vmatpush1.bf16.msra.mxu0 %v2382
    %2807 = vmatprep.subr.bf16.mxu0 %v2390
    %2808 = vmatpush1.bf16.msra.mxu0 %v2389
    %2809 = vmatprep.mubr.bf16.mxu0 %v2733
    %2810 = vmatmul.mubr.bf16.gmra.mrb[0].mxu0 %v2732
    %v2811 = vpop.f32.mrb[0].mxu0
    %v2812 = vadd.f32 %v2745, %v2811
    %v2813 = vpop.f32.mrb[0].mxu0
    %v2814 = vadd.f32 %v2749, %v2813
    %v2815 = vpop.f32.mrb[0].mxu0
    %v2816 = vpop.f32.mrb[0].mxu0
    %2817 = vdwg.mxu0
    %2818 = vmatprep.subr.bf16.mxu0 %v2397
    %2819 = vmatpush1.bf16.msra.mxu0 %v2396
    %2820 = vmatprep.subr.bf16.mxu0 %v2404
    %2821 = vmatpush1.bf16.msra.mxu0 %v2403
    %2822 = vmatprep.subr.bf16.mxu0 %v2411
    %2823 = vmatpush1.bf16.msra.mxu0 %v2410
    %2824 = vmatprep.subr.bf16.mxu0 %v2418
    %2825 = vmatpush1.bf16.msra.mxu0 %v2417
    %2826 = vmatprep.subr.bf16.mxu0 %v2425
    %2827 = vmatpush1.bf16.msra.mxu0 %v2424
    %2828 = vmatprep.subr.bf16.mxu0 %v2432
    %2829 = vmatpush1.bf16.msra.mxu0 %v2431
    %2830 = vmatprep.subr.bf16.mxu0 %v2439
    %2831 = vmatpush1.bf16.msra.mxu0 %v2438
    %2832 = vmatprep.subr.bf16.mxu0 %v2446
    %2833 = vmatpush1.bf16.msra.mxu0 %v2445
    %2834 = vmatprep.subr.bf16.mxu0 %v2453
    %2835 = vmatpush1.bf16.msra.mxu0 %v2452
    %2836 = vmatprep.subr.bf16.mxu0 %v2460
    %2837 = vmatpush1.bf16.msra.mxu0 %v2459
    %2838 = vmatprep.subr.bf16.mxu0 %v2467
    %2839 = vmatpush1.bf16.msra.mxu0 %v2466
    %2840 = vmatprep.subr.bf16.mxu0 %v2474
    %2841 = vmatpush1.bf16.msra.mxu0 %v2473
    %2842 = vmatprep.subr.bf16.mxu0 %v2481
    %2843 = vmatpush1.bf16.msra.mxu0 %v2480
    %2844 = vmatprep.subr.bf16.mxu0 %v2488
    %2845 = vmatpush1.bf16.msra.mxu0 %v2487
    %2846 = vmatprep.subr.bf16.mxu0 %v2495
    %2847 = vmatpush1.bf16.msra.mxu0 %v2494
    %2848 = vmatprep.subr.bf16.mxu0 %v2502
    %2849 = vmatpush1.bf16.msra.mxu0 %v2501
    %2850 = vmatprep.mubr.bf16.mxu0 %v2735
    %2851 = vmatmul.mubr.bf16.gmra.mrb[0].mxu0 %v2734
    %v2852 = vpop.f32.mrb[0].mxu0
    %v2853 = vadd.f32 %v2812, %v2852
    %v2854 = vpop.f32.mrb[0].mxu0
    %v2855 = vadd.f32 %v2814, %v2854
    %v2856 = vpop.f32.mrb[0].mxu0
    %v2857 = vpop.f32.mrb[0].mxu0
    %2858 = vdwg.mxu0
    %2859 = vmatprep.subr.bf16.mxu0 %v2509
    %2860 = vmatpush1.bf16.msra.mxu0 %v2508
    %2861 = vmatprep.subr.bf16.mxu0 %v2516
    %2862 = vmatpush1.bf16.msra.mxu0 %v2515
    %2863 = vmatprep.subr.bf16.mxu0 %v2523
    %2864 = vmatpush1.bf16.msra.mxu0 %v2522
    %2865 = vmatprep.subr.bf16.mxu0 %v2530
    %2866 = vmatpush1.bf16.msra.mxu0 %v2529
    %2867 = vmatprep.subr.bf16.mxu0 %v2537
    %2868 = vmatpush1.bf16.msra.mxu0 %v2536
    %2869 = vmatprep.subr.bf16.mxu0 %v2544
    %2870 = vmatpush1.bf16.msra.mxu0 %v2543
    %2871 = vmatprep.subr.bf16.mxu0 %v2551
    %2872 = vmatpush1.bf16.msra.mxu0 %v2550
    %2873 = vmatprep.subr.bf16.mxu0 %v2558
    %2874 = vmatpush1.bf16.msra.mxu0 %v2557
    %2875 = vmatprep.subr.bf16.mxu0 %v2565
    %2876 = vmatpush1.bf16.msra.mxu0 %v2564
    %2877 = vmatprep.subr.bf16.mxu0 %v2572
    %2878 = vmatpush1.bf16.msra.mxu0 %v2571
    %2879 = vmatprep.subr.bf16.mxu0 %v2579
    %2880 = vmatpush1.bf16.msra.mxu0 %v2578
    %2881 = vmatprep.subr.bf16.mxu0 %v2586
    %2882 = vmatpush1.bf16.msra.mxu0 %v2585
    %2883 = vmatprep.subr.bf16.mxu0 %v2593
    %2884 = vmatpush1.bf16.msra.mxu0 %v2592
    %2885 = vmatprep.subr.bf16.mxu0 %v2600
    %2886 = vmatpush1.bf16.msra.mxu0 %v2599
    %2887 = vmatprep.subr.bf16.mxu0 %v2607
    %2888 = vmatpush1.bf16.msra.mxu0 %v2606
    %2889 = vmatprep.subr.bf16.mxu0 %v2614
    %2890 = vmatpush1.bf16.msra.mxu0 %v2613
    %2891 = vmatprep.mubr.bf16.mxu0 %v2737
    %2892 = vmatmul.mubr.bf16.gmra.mrb[0].mxu0 %v2736
    %v2893 = vpop.f32.mrb[0].mxu0
    %v2894 = vadd.f32 %v2853, %v2893
    %v2895 = vpop.f32.mrb[0].mxu0
    %v2896 = vadd.f32 %v2855, %v2895
    %v2897 = vpop.f32.mrb[0].mxu0
    %v2898 = vpop.f32.mrb[0].mxu0
    %2899 = vdwg.mxu0
    %2900 = vmatprep.subr.bf16.mxu0 %v2621
    %2901 = vmatpush1.bf16.msra.mxu0 %v2620
    %2902 = vmatprep.subr.bf16.mxu0 %v2628
    %2903 = vmatpush1.bf16.msra.mxu0 %v2627
    %2904 = vmatprep.subr.bf16.mxu0 %v2635
    %2905 = vmatpush1.bf16.msra.mxu0 %v2634
    %2906 = vmatprep.subr.bf16.mxu0 %v2642
    %2907 = vmatpush1.bf16.msra.mxu0 %v2641
    %2908 = vmatprep.subr.bf16.mxu0 %v2649
    %2909 = vmatpush1.bf16.msra.mxu0 %v2648
    %2910 = vmatprep.subr.bf16.mxu0 %v2656
    %2911 = vmatpush1.bf16.msra.mxu0 %v2655
    %2912 = vmatprep.subr.bf16.mxu0 %v2663
    %2913 = vmatpush1.bf16.msra.mxu0 %v2662
    %2914 = vmatprep.subr.bf16.mxu0 %v2670
    %2915 = vmatpush1.bf16.msra.mxu0 %v2669
    %2916 = vmatprep.subr.bf16.mxu0 %v2677
    %2917 = vmatpush1.bf16.msra.mxu0 %v2676
    %2918 = vmatprep.subr.bf16.mxu0 %v2684
    %2919 = vmatpush1.bf16.msra.mxu0 %v2683
    %2920 = vmatprep.subr.bf16.mxu0 %v2691
    %2921 = vmatpush1.bf16.msra.mxu0 %v2690
    %2922 = vmatprep.subr.bf16.mxu0 %v2698
    %2923 = vmatpush1.bf16.msra.mxu0 %v2697
    %2924 = vmatprep.subr.bf16.mxu0 %v2705
    %2925 = vmatpush1.bf16.msra.mxu0 %v2704
    %2926 = vmatprep.subr.bf16.mxu0 %v2712
    %2927 = vmatpush1.bf16.msra.mxu0 %v2711
    %2928 = vmatprep.subr.bf16.mxu0 %v2719
    %2929 = vmatpush1.bf16.msra.mxu0 %v2718
    %2930 = vmatprep.subr.bf16.mxu0 %v2726
    %2931 = vmatpush1.bf16.msra.mxu0 %v2725
    %2932 = vmatprep.mubr.bf16.mxu0 %v2739
    %2933 = vmatmul.mubr.bf16.gmra.mrb[0].mxu0 %v2738
    %v2934 = vpop.f32.mrb[0].mxu0
    %v2935 = vadd.f32 %v2894, %v2934
    %v2936 = vpop.f32.mrb[0].mxu0
    %v2937 = vadd.f32 %v2896, %v2936
    %v2938 = vpop.f32.mrb[0].mxu0
    %v2939 = vpop.f32.mrb[0].mxu0
    %2940 = vdwg.mxu0
    %2941 = vmatprep.subr.bf16.mxu0 %v2287
    %2942 = vmatpush1.bf16.msra.mxu0 %v2286
    %2943 = vmatprep.subr.bf16.mxu0 %v2294
    %2944 = vmatpush1.bf16.msra.mxu0 %v2293
    %2945 = vmatprep.subr.bf16.mxu0 %v2301
    %2946 = vmatpush1.bf16.msra.mxu0 %v2300
    %2947 = vmatprep.subr.bf16.mxu0 %v2308
    %2948 = vmatpush1.bf16.msra.mxu0 %v2307
    %2949 = vmatprep.subr.bf16.mxu0 %v2315
    %2950 = vmatpush1.bf16.msra.mxu0 %v2314
    %2951 = vmatprep.subr.bf16.mxu0 %v2322
    %2952 = vmatpush1.bf16.msra.mxu0 %v2321
    %2953 = vmatprep.subr.bf16.mxu0 %v2329
    %2954 = vmatpush1.bf16.msra.mxu0 %v2328
    %2955 = vmatprep.subr.bf16.mxu0 %v2336
    %2956 = vmatpush1.bf16.msra.mxu0 %v2335
    %2957 = vmatprep.subr.bf16.mxu0 %v2343
    %2958 = vmatpush1.bf16.msra.mxu0 %v2342
    %2959 = vmatprep.subr.bf16.mxu0 %v2350
    %2960 = vmatpush1.bf16.msra.mxu0 %v2349
    %2961 = vmatprep.subr.bf16.mxu0 %v2357
    %2962 = vmatpush1.bf16.msra.mxu0 %v2356
    %2963 = vmatprep.subr.bf16.mxu0 %v2364
    %2964 = vmatpush1.bf16.msra.mxu0 %v2363
    %2965 = vmatprep.subr.bf16.mxu0 %v2371
    %2966 = vmatpush1.bf16.msra.mxu0 %v2370
    %2967 = vmatprep.subr.bf16.mxu0 %v2378
    %2968 = vmatpush1.bf16.msra.mxu0 %v2377
    %2969 = vmatprep.subr.bf16.mxu0 %v2385
    %2970 = vmatpush1.bf16.msra.mxu0 %v2384
    %2971 = vmatprep.subr.bf16.mxu0 %v2392
    %2972 = vmatpush1.bf16.msra.mxu0 %v2391
    %2973 = vmatprep.mubr.bf16.mxu0 %v2733
    %2974 = vmatmul.mubr.bf16.gmra.mrb[0].mxu0 %v2732
    %v2975 = vpop.f32.mrb[0].mxu0
    %v2976 = vadd.f32 %v2753, %v2975
    %v2977 = vpop.f32.mrb[0].mxu0
    %v2978 = vadd.f32 %v2757, %v2977
    %v2979 = vpop.f32.mrb[0].mxu0
    %v2980 = vpop.f32.mrb[0].mxu0
    %2981 = vdwg.mxu0
    %2982 = vmatprep.subr.bf16.mxu0 %v2399
    %2983 = vmatpush1.bf16.msra.mxu0 %v2398
    %2984 = vmatprep.subr.bf16.mxu0 %v2406
    %2985 = vmatpush1.bf16.msra.mxu0 %v2405
    %2986 = vmatprep.subr.bf16.mxu0 %v2413
    %2987 = vmatpush1.bf16.msra.mxu0 %v2412
    %2988 = vmatprep.subr.bf16.mxu0 %v2420
    %2989 = vmatpush1.bf16.msra.mxu0 %v2419
    %2990 = vmatprep.subr.bf16.mxu0 %v2427
    %2991 = vmatpush1.bf16.msra.mxu0 %v2426
    %2992 = vmatprep.subr.bf16.mxu0 %v2434
    %2993 = vmatpush1.bf16.msra.mxu0 %v2433
    %2994 = vmatprep.subr.bf16.mxu0 %v2441
    %2995 = vmatpush1.bf16.msra.mxu0 %v2440
    %2996 = vmatprep.subr.bf16.mxu0 %v2448
    %2997 = vmatpush1.bf16.msra.mxu0 %v2447
    %2998 = vmatprep.subr.bf16.mxu0 %v2455
    %2999 = vmatpush1.bf16.msra.mxu0 %v2454
    %3000 = vmatprep.subr.bf16.mxu0 %v2462
    %3001 = vmatpush1.bf16.msra.mxu0 %v2461
    %3002 = vmatprep.subr.bf16.mxu0 %v2469
    %3003 = vmatpush1.bf16.msra.mxu0 %v2468
    %3004 = vmatprep.subr.bf16.mxu0 %v2476
    %3005 = vmatpush1.bf16.msra.mxu0 %v2475
    %3006 = vmatprep.subr.bf16.mxu0 %v2483
    %3007 = vmatpush1.bf16.msra.mxu0 %v2482
    %3008 = vmatprep.subr.bf16.mxu0 %v2490
    %3009 = vmatpush1.bf16.msra.mxu0 %v2489
    %3010 = vmatprep.subr.bf16.mxu0 %v2497
    %3011 = vmatpush1.bf16.msra.mxu0 %v2496
    %3012 = vmatprep.subr.bf16.mxu0 %v2504
    %3013 = vmatpush1.bf16.msra.mxu0 %v2503
    %3014 = vmatprep.mubr.bf16.mxu0 %v2735
    %3015 = vmatmul.mubr.bf16.gmra.mrb[0].mxu0 %v2734
    %v3016 = vpop.f32.mrb[0].mxu0
    %v3017 = vadd.f32 %v2976, %v3016
    %v3018 = vpop.f32.mrb[0].mxu0
    %v3019 = vadd.f32 %v2978, %v3018
    %v3020 = vpop.f32.mrb[0].mxu0
    %v3021 = vpop.f32.mrb[0].mxu0
    %3022 = vdwg.mxu0
    %3023 = vmatprep.subr.bf16.mxu0 %v2511
    %3024 = vmatpush1.bf16.msra.mxu0 %v2510
    %3025 = vmatprep.subr.bf16.mxu0 %v2518
    %3026 = vmatpush1.bf16.msra.mxu0 %v2517
    %3027 = vmatprep.subr.bf16.mxu0 %v2525
    %3028 = vmatpush1.bf16.msra.mxu0 %v2524
    %3029 = vmatprep.subr.bf16.mxu0 %v2532
    %3030 = vmatpush1.bf16.msra.mxu0 %v2531
    %3031 = vmatprep.subr.bf16.mxu0 %v2539
    %3032 = vmatpush1.bf16.msra.mxu0 %v2538
    %3033 = vmatprep.subr.bf16.mxu0 %v2546
    %3034 = vmatpush1.bf16.msra.mxu0 %v2545
    %3035 = vmatprep.subr.bf16.mxu0 %v2553
    %3036 = vmatpush1.bf16.msra.mxu0 %v2552
    %3037 = vmatprep.subr.bf16.mxu0 %v2560
    %3038 = vmatpush1.bf16.msra.mxu0 %v2559
    %3039 = vmatprep.subr.bf16.mxu0 %v2567
    %3040 = vmatpush1.bf16.msra.mxu0 %v2566
    %3041 = vmatprep.subr.bf16.mxu0 %v2574
    %3042 = vmatpush1.bf16.msra.mxu0 %v2573
    %3043 = vmatprep.subr.bf16.mxu0 %v2581
    %3044 = vmatpush1.bf16.msra.mxu0 %v2580
    %3045 = vmatprep.subr.bf16.mxu0 %v2588
    %3046 = vmatpush1.bf16.msra.mxu0 %v2587
    %3047 = vmatprep.subr.bf16.mxu0 %v2595
    %3048 = vmatpush1.bf16.msra.mxu0 %v2594
    %3049 = vmatprep.subr.bf16.mxu0 %v2602
    %3050 = vmatpush1.bf16.msra.mxu0 %v2601
    %3051 = vmatprep.subr.bf16.mxu0 %v2609
    %3052 = vmatpush1.bf16.msra.mxu0 %v2608
    %3053 = vmatprep.subr.bf16.mxu0 %v2616
    %3054 = vmatpush1.bf16.msra.mxu0 %v2615
    %3055 = vmatprep.mubr.bf16.mxu0 %v2737
    %3056 = vmatmul.mubr.bf16.gmra.mrb[0].mxu0 %v2736
    %v3057 = vpop.f32.mrb[0].mxu0
    %v3058 = vadd.f32 %v3017, %v3057
    %v3059 = vpop.f32.mrb[0].mxu0
    %v3060 = vadd.f32 %v3019, %v3059
    %v3061 = vpop.f32.mrb[0].mxu0
    %v3062 = vpop.f32.mrb[0].mxu0
    %3063 = vdwg.mxu0
    %3064 = vmatprep.subr.bf16.mxu0 %v2623
    %3065 = vmatpush1.bf16.msra.mxu0 %v2622
    %3066 = vmatprep.subr.bf16.mxu0 %v2630
    %3067 = vmatpush1.bf16.msra.mxu0 %v2629
    %3068 = vmatprep.subr.bf16.mxu0 %v2637
    %3069 = vmatpush1.bf16.msra.mxu0 %v2636
    %3070 = vmatprep.subr.bf16.mxu0 %v2644
    %3071 = vmatpush1.bf16.msra.mxu0 %v2643
    %3072 = vmatprep.subr.bf16.mxu0 %v2651
    %3073 = vmatpush1.bf16.msra.mxu0 %v2650
    %3074 = vmatprep.subr.bf16.mxu0 %v2658
    %3075 = vmatpush1.bf16.msra.mxu0 %v2657
    %3076 = vmatprep.subr.bf16.mxu0 %v2665
    %3077 = vmatpush1.bf16.msra.mxu0 %v2664
    %3078 = vmatprep.subr.bf16.mxu0 %v2672
    %3079 = vmatpush1.bf16.msra.mxu0 %v2671
    %3080 = vmatprep.subr.bf16.mxu0 %v2679
    %3081 = vmatpush1.bf16.msra.mxu0 %v2678
    %3082 = vmatprep.subr.bf16.mxu0 %v2686
    %3083 = vmatpush1.bf16.msra.mxu0 %v2685
    %3084 = vmatprep.subr.bf16.mxu0 %v2693
    %3085 = vmatpush1.bf16.msra.mxu0 %v2692
    %3086 = vmatprep.subr.bf16.mxu0 %v2700
    %3087 = vmatpush1.bf16.msra.mxu0 %v2699
    %3088 = vmatprep.subr.bf16.mxu0 %v2707
    %3089 = vmatpush1.bf16.msra.mxu0 %v2706
    %3090 = vmatprep.subr.bf16.mxu0 %v2714
    %3091 = vmatpush1.bf16.msra.mxu0 %v2713
    %3092 = vmatprep.subr.bf16.mxu0 %v2721
    %3093 = vmatpush1.bf16.msra.mxu0 %v2720
    %3094 = vmatprep.subr.bf16.mxu0 %v2728
    %3095 = vmatpush1.bf16.msra.mxu0 %v2727
    %3096 = vmatprep.mubr.bf16.mxu0 %v2739
    %3097 = vmatmul.mubr.bf16.gmra.mrb[0].mxu0 %v2738
    %v3098 = vpop.f32.mrb[0].mxu0
    %v3099 = vadd.f32 %v3058, %v3098
    %v3100 = vpop.f32.mrb[0].mxu0
    %v3101 = vadd.f32 %v3060, %v3100
    %v3102 = vpop.f32.mrb[0].mxu0
    %v3103 = vpop.f32.mrb[0].mxu0
    %3104 = vdwg.mxu0
    %3105 = vmatprep.subr.bf16.mxu0 %v2289
    %3106 = vmatpush1.bf16.msra.mxu0 %v2288
    %3107 = vmatprep.subr.bf16.mxu0 %v2296
    %3108 = vmatpush1.bf16.msra.mxu0 %v2295
    %3109 = vmatprep.subr.bf16.mxu0 %v2303
    %3110 = vmatpush1.bf16.msra.mxu0 %v2302
    %3111 = vmatprep.subr.bf16.mxu0 %v2310
    %3112 = vmatpush1.bf16.msra.mxu0 %v2309
    %3113 = vmatprep.subr.bf16.mxu0 %v2317
    %3114 = vmatpush1.bf16.msra.mxu0 %v2316
    %3115 = vmatprep.subr.bf16.mxu0 %v2324
    %3116 = vmatpush1.bf16.msra.mxu0 %v2323
    %3117 = vmatprep.subr.bf16.mxu0 %v2331
    %3118 = vmatpush1.bf16.msra.mxu0 %v2330
    %3119 = vmatprep.subr.bf16.mxu0 %v2338
    %3120 = vmatpush1.bf16.msra.mxu0 %v2337
    %3121 = vmatprep.subr.bf16.mxu0 %v2345
    %3122 = vmatpush1.bf16.msra.mxu0 %v2344
    %3123 = vmatprep.subr.bf16.mxu0 %v2352
    %3124 = vmatpush1.bf16.msra.mxu0 %v2351
    %3125 = vmatprep.subr.bf16.mxu0 %v2359
    %3126 = vmatpush1.bf16.msra.mxu0 %v2358
    %3127 = vmatprep.subr.bf16.mxu0 %v2366
    %3128 = vmatpush1.bf16.msra.mxu0 %v2365
    %3129 = vmatprep.subr.bf16.mxu0 %v2373
    %3130 = vmatpush1.bf16.msra.mxu0 %v2372
    %3131 = vmatprep.subr.bf16.mxu0 %v2380
    %3132 = vmatpush1.bf16.msra.mxu0 %v2379
    %3133 = vmatprep.subr.bf16.mxu0 %v2387
    %3134 = vmatpush1.bf16.msra.mxu0 %v2386
    %3135 = vmatprep.subr.bf16.mxu0 %v2394
    %3136 = vmatpush1.bf16.msra.mxu0 %v2393
    %3137 = vmatprep.mubr.bf16.mxu0 %v2733
    %3138 = vmatmul.mubr.bf16.gmra.mrb[0].mxu0 %v2732
    %v3139 = vpop.f32.mrb[0].mxu0
    %v3140 = vadd.f32 %v2761, %v3139
    %v3141 = vpop.f32.mrb[0].mxu0
    %v3142 = vadd.f32 %v2765, %v3141
    %v3143 = vpop.f32.mrb[0].mxu0
    %v3144 = vpop.f32.mrb[0].mxu0
    %3145 = vdwg.mxu0
    %3146 = vmatprep.subr.bf16.mxu0 %v2401
    %3147 = vmatpush1.bf16.msra.mxu0 %v2400
    %3148 = vmatprep.subr.bf16.mxu0 %v2408
    %3149 = vmatpush1.bf16.msra.mxu0 %v2407
    %3150 = vmatprep.subr.bf16.mxu0 %v2415
    %3151 = vmatpush1.bf16.msra.mxu0 %v2414
    %3152 = vmatprep.subr.bf16.mxu0 %v2422
    %3153 = vmatpush1.bf16.msra.mxu0 %v2421
    %3154 = vmatprep.subr.bf16.mxu0 %v2429
    %3155 = vmatpush1.bf16.msra.mxu0 %v2428
    %3156 = vmatprep.subr.bf16.mxu0 %v2436
    %3157 = vmatpush1.bf16.msra.mxu0 %v2435
    %3158 = vmatprep.subr.bf16.mxu0 %v2443
    %3159 = vmatpush1.bf16.msra.mxu0 %v2442
    %3160 = vmatprep.subr.bf16.mxu0 %v2450
    %3161 = vmatpush1.bf16.msra.mxu0 %v2449
    %3162 = vmatprep.subr.bf16.mxu0 %v2457
    %3163 = vmatpush1.bf16.msra.mxu0 %v2456
    %3164 = vmatprep.subr.bf16.mxu0 %v2464
    %3165 = vmatpush1.bf16.msra.mxu0 %v2463
    %3166 = vmatprep.subr.bf16.mxu0 %v2471
    %3167 = vmatpush1.bf16.msra.mxu0 %v2470
    %3168 = vmatprep.subr.bf16.mxu0 %v2478
    %3169 = vmatpush1.bf16.msra.mxu0 %v2477
    %3170 = vmatprep.subr.bf16.mxu0 %v2485
    %3171 = vmatpush1.bf16.msra.mxu0 %v2484
    %3172 = vmatprep.subr.bf16.mxu0 %v2492
    %3173 = vmatpush1.bf16.msra.mxu0 %v2491
    %3174 = vmatprep.subr.bf16.mxu0 %v2499
    %3175 = vmatpush1.bf16.msra.mxu0 %v2498
    %3176 = vmatprep.subr.bf16.mxu0 %v2506
    %3177 = vmatpush1.bf16.msra.mxu0 %v2505
    %3178 = vmatprep.mubr.bf16.mxu0 %v2735
    %3179 = vmatmul.mubr.bf16.gmra.mrb[0].mxu0 %v2734
    %v3180 = vpop.f32.mrb[0].mxu0
    %v3181 = vadd.f32 %v3140, %v3180
    %v3182 = vpop.f32.mrb[0].mxu0
    %v3183 = vadd.f32 %v3142, %v3182
    %v3184 = vpop.f32.mrb[0].mxu0
    %v3185 = vpop.f32.mrb[0].mxu0
    %3186 = vdwg.mxu0
    %3187 = vmatprep.subr.bf16.mxu0 %v2513
    %3188 = vmatpush1.bf16.msra.mxu0 %v2512
    %3189 = vmatprep.subr.bf16.mxu0 %v2520
    %3190 = vmatpush1.bf16.msra.mxu0 %v2519
    %3191 = vmatprep.subr.bf16.mxu0 %v2527
    %3192 = vmatpush1.bf16.msra.mxu0 %v2526
    %3193 = vmatprep.subr.bf16.mxu0 %v2534
    %3194 = vmatpush1.bf16.msra.mxu0 %v2533
    %3195 = vmatprep.subr.bf16.mxu0 %v2541
    %3196 = vmatpush1.bf16.msra.mxu0 %v2540
    %3197 = vmatprep.subr.bf16.mxu0 %v2548
    %3198 = vmatpush1.bf16.msra.mxu0 %v2547
    %3199 = vmatprep.subr.bf16.mxu0 %v2555
    %3200 = vmatpush1.bf16.msra.mxu0 %v2554
    %3201 = vmatprep.subr.bf16.mxu0 %v2562
    %3202 = vmatpush1.bf16.msra.mxu0 %v2561
    %3203 = vmatprep.subr.bf16.mxu0 %v2569
    %3204 = vmatpush1.bf16.msra.mxu0 %v2568
    %3205 = vmatprep.subr.bf16.mxu0 %v2576
    %3206 = vmatpush1.bf16.msra.mxu0 %v2575
    %3207 = vmatprep.subr.bf16.mxu0 %v2583
    %3208 = vmatpush1.bf16.msra.mxu0 %v2582
    %3209 = vmatprep.subr.bf16.mxu0 %v2590
    %3210 = vmatpush1.bf16.msra.mxu0 %v2589
    %3211 = vmatprep.subr.bf16.mxu0 %v2597
    %3212 = vmatpush1.bf16.msra.mxu0 %v2596
    %3213 = vmatprep.subr.bf16.mxu0 %v2604
    %3214 = vmatpush1.bf16.msra.mxu0 %v2603
    %3215 = vmatprep.subr.bf16.mxu0 %v2611
    %3216 = vmatpush1.bf16.msra.mxu0 %v2610
    %3217 = vmatprep.subr.bf16.mxu0 %v2618
    %3218 = vmatpush1.bf16.msra.mxu0 %v2617
    %3219 = vmatprep.mubr.bf16.mxu0 %v2737
    %3220 = vmatmul.mubr.bf16.gmra.mrb[0].mxu0 %v2736
    %v3221 = vpop.f32.mrb[0].mxu0
    %v3222 = vadd.f32 %v3181, %v3221
    %v3223 = vpop.f32.mrb[0].mxu0
    %v3224 = vadd.f32 %v3183, %v3223
    %v3225 = vpop.f32.mrb[0].mxu0
    %v3226 = vpop.f32.mrb[0].mxu0
    %3227 = vdwg.mxu0
    %3228 = vmatprep.subr.bf16.mxu0 %v2625
    %3229 = vmatpush1.bf16.msra.mxu0 %v2624
    %3230 = vmatprep.subr.bf16.mxu0 %v2632
    %3231 = vmatpush1.bf16.msra.mxu0 %v2631
    %3232 = vmatprep.subr.bf16.mxu0 %v2639
    %3233 = vmatpush1.bf16.msra.mxu0 %v2638
    %3234 = vmatprep.subr.bf16.mxu0 %v2646
    %3235 = vmatpush1.bf16.msra.mxu0 %v2645
    %3236 = vmatprep.subr.bf16.mxu0 %v2653
    %3237 = vmatpush1.bf16.msra.mxu0 %v2652
    %3238 = vmatprep.subr.bf16.mxu0 %v2660
    %3239 = vmatpush1.bf16.msra.mxu0 %v2659
    %3240 = vmatprep.subr.bf16.mxu0 %v2667
    %3241 = vmatpush1.bf16.msra.mxu0 %v2666
    %3242 = vmatprep.subr.bf16.mxu0 %v2674
    %3243 = vmatpush1.bf16.msra.mxu0 %v2673
    %3244 = vmatprep.subr.bf16.mxu0 %v2681
    %3245 = vmatpush1.bf16.msra.mxu0 %v2680
    %3246 = vmatprep.subr.bf16.mxu0 %v2688
    %3247 = vmatpush1.bf16.msra.mxu0 %v2687
    %3248 = vmatprep.subr.bf16.mxu0 %v2695
    %3249 = vmatpush1.bf16.msra.mxu0 %v2694
    %3250 = vmatprep.subr.bf16.mxu0 %v2702
    %3251 = vmatpush1.bf16.msra.mxu0 %v2701
    %3252 = vmatprep.subr.bf16.mxu0 %v2709
    %3253 = vmatpush1.bf16.msra.mxu0 %v2708
    %3254 = vmatprep.subr.bf16.mxu0 %v2716
    %3255 = vmatpush1.bf16.msra.mxu0 %v2715
    %3256 = vmatprep.subr.bf16.mxu0 %v2723
    %3257 = vmatpush1.bf16.msra.mxu0 %v2722
    %3258 = vmatprep.subr.bf16.mxu0 %v2730
    %3259 = vmatpush1.bf16.msra.mxu0 %v2729
    %3260 = vmatprep.mubr.bf16.mxu0 %v2739
    %3261 = vmatmul.mubr.bf16.gmra.mrb[0].mxu0 %v2738
    %v3262 = vpop.f32.mrb[0].mxu0
    %v3263 = vadd.f32 %v3222, %v3262
    %v3264 = vpop.f32.mrb[0].mxu0
    %v3265 = vadd.f32 %v3224, %v3264
    %v3266 = vpop.f32.mrb[0].mxu0
    %v3267 = vpop.f32.mrb[0].mxu0
    %3268 = vdwg.mxu0
    %3269 = vmatprep.subr.bf16.mxu0 0
    %3270 = vmatpush1.bf16.msra.mxu0 %v2290
    %3271 = vmatprep.subr.bf16.mxu0 0
    %3272 = vmatpush1.bf16.msra.mxu0 %v2297
    %3273 = vmatprep.subr.bf16.mxu0 0
    %3274 = vmatpush1.bf16.msra.mxu0 %v2304
    %3275 = vmatprep.subr.bf16.mxu0 0
    %3276 = vmatpush1.bf16.msra.mxu0 %v2311
    %3277 = vmatprep.subr.bf16.mxu0 0
    %3278 = vmatpush1.bf16.msra.mxu0 %v2318
    %3279 = vmatprep.subr.bf16.mxu0 0
    %3280 = vmatpush1.bf16.msra.mxu0 %v2325
    %3281 = vmatprep.subr.bf16.mxu0 0
    %3282 = vmatpush1.bf16.msra.mxu0 %v2332
    %3283 = vmatprep.subr.bf16.mxu0 0
    %3284 = vmatpush1.bf16.msra.mxu0 %v2339
    %3285 = vmatprep.subr.bf16.mxu0 0
    %3286 = vmatpush1.bf16.msra.mxu0 %v2346
    %3287 = vmatprep.subr.bf16.mxu0 0
    %3288 = vmatpush1.bf16.msra.mxu0 %v2353
    %3289 = vmatprep.subr.bf16.mxu0 0
    %3290 = vmatpush1.bf16.msra.mxu0 %v2360
    %3291 = vmatprep.subr.bf16.mxu0 0
    %3292 = vmatpush1.bf16.msra.mxu0 %v2367
    %3293 = vmatprep.subr.bf16.mxu0 0
    %3294 = vmatpush1.bf16.msra.mxu0 %v2374
    %3295 = vmatprep.subr.bf16.mxu0 0
    %3296 = vmatpush1.bf16.msra.mxu0 %v2381
    %3297 = vmatprep.subr.bf16.mxu0 0
    %3298 = vmatpush1.bf16.msra.mxu0 %v2388
    %3299 = vmatprep.subr.bf16.mxu0 0
    %3300 = vmatpush1.bf16.msra.mxu0 %v2395
    %3301 = vmatprep.mubr.bf16.mxu0 %v2733
    %3302 = vmatmul.mubr.bf16.gmra.mrb[0].mxu0 %v2732
    %v3303 = vpop.f32.mrb[0].mxu0
    %v3304 = vadd.f32 %v2769, %v3303
    %v3305 = vpop.f32.mrb[0].mxu0
    %v3306 = vpop.f32.mrb[0].mxu0
    %v3307 = vpop.f32.mrb[0].mxu0
    %3308 = vdwg.mxu0
    %3309 = vmatprep.subr.bf16.mxu0 0
    %3310 = vmatpush1.bf16.msra.mxu0 %v2402
    %3311 = vmatprep.subr.bf16.mxu0 0
    %3312 = vmatpush1.bf16.msra.mxu0 %v2409
    %3313 = vmatprep.subr.bf16.mxu0 0
    %3314 = vmatpush1.bf16.msra.mxu0 %v2416
    %3315 = vmatprep.subr.bf16.mxu0 0
    %3316 = vmatpush1.bf16.msra.mxu0 %v2423
    %3317 = vmatprep.subr.bf16.mxu0 0
    %3318 = vmatpush1.bf16.msra.mxu0 %v2430
    %3319 = vmatprep.subr.bf16.mxu0 0
    %3320 = vmatpush1.bf16.msra.mxu0 %v2437
    %3321 = vmatprep.subr.bf16.mxu0 0
    %3322 = vmatpush1.bf16.msra.mxu0 %v2444
    %3323 = vmatprep.subr.bf16.mxu0 0
    %3324 = vmatpush1.bf16.msra.mxu0 %v2451
    %3325 = vmatprep.subr.bf16.mxu0 0
    %3326 = vmatpush1.bf16.msra.mxu0 %v2458
    %3327 = vmatprep.subr.bf16.mxu0 0
    %3328 = vmatpush1.bf16.msra.mxu0 %v2465
    %3329 = vmatprep.subr.bf16.mxu0 0
    %3330 = vmatpush1.bf16.msra.mxu0 %v2472
    %3331 = vmatprep.subr.bf16.mxu0 0
    %3332 = vmatpush1.bf16.msra.mxu0 %v2479
    %3333 = vmatprep.subr.bf16.mxu0 0
    %3334 = vmatpush1.bf16.msra.mxu0 %v2486
    %3335 = vmatprep.subr.bf16.mxu0 0
    %3336 = vmatpush1.bf16.msra.mxu0 %v2493
    %3337 = vmatprep.subr.bf16.mxu0 0
    %3338 = vmatpush1.bf16.msra.mxu0 %v2500
    %3339 = vmatprep.subr.bf16.mxu0 0
    %3340 = vmatpush1.bf16.msra.mxu0 %v2507
    %3341 = vmatprep.mubr.bf16.mxu0 %v2735
    %3342 = vmatmul.mubr.bf16.gmra.mrb[0].mxu0 %v2734
    %v3343 = vpop.f32.mrb[0].mxu0
    %v3344 = vadd.f32 %v3304, %v3343
    %v3345 = vpop.f32.mrb[0].mxu0
    %v3346 = vpop.f32.mrb[0].mxu0
    %v3347 = vpop.f32.mrb[0].mxu0
    %3348 = vdwg.mxu0
    %3349 = vmatprep.subr.bf16.mxu0 0
    %3350 = vmatpush1.bf16.msra.mxu0 %v2514
    %3351 = vmatprep.subr.bf16.mxu0 0
    %3352 = vmatpush1.bf16.msra.mxu0 %v2521
    %3353 = vmatprep.subr.bf16.mxu0 0
    %3354 = vmatpush1.bf16.msra.mxu0 %v2528
    %3355 = vmatprep.subr.bf16.mxu0 0
    %3356 = vmatpush1.bf16.msra.mxu0 %v2535
    %3357 = vmatprep.subr.bf16.mxu0 0
    %3358 = vmatpush1.bf16.msra.mxu0 %v2542
    %3359 = vmatprep.subr.bf16.mxu0 0
    %3360 = vmatpush1.bf16.msra.mxu0 %v2549
    %3361 = vmatprep.subr.bf16.mxu0 0
    %3362 = vmatpush1.bf16.msra.mxu0 %v2556
    %3363 = vmatprep.subr.bf16.mxu0 0
    %3364 = vmatpush1.bf16.msra.mxu0 %v2563
    %3365 = vmatprep.subr.bf16.mxu0 0
    %3366 = vmatpush1.bf16.msra.mxu0 %v2570
    %3367 = vmatprep.subr.bf16.mxu0 0
    %3368 = vmatpush1.bf16.msra.mxu0 %v2577
    %3369 = vmatprep.subr.bf16.mxu0 0
    %3370 = vmatpush1.bf16.msra.mxu0 %v2584
    %3371 = vmatprep.subr.bf16.mxu0 0
    %3372 = vmatpush1.bf16.msra.mxu0 %v2591
    %3373 = vmatprep.subr.bf16.mxu0 0
    %3374 = vmatpush1.bf16.msra.mxu0 %v2598
    %3375 = vmatprep.subr.bf16.mxu0 0
    %3376 = vmatpush1.bf16.msra.mxu0 %v2605
    %3377 = vmatprep.subr.bf16.mxu0 0
    %3378 = vmatpush1.bf16.msra.mxu0 %v2612
    %3379 = vmatprep.subr.bf16.mxu0 0
    %3380 = vmatpush1.bf16.msra.mxu0 %v2619
    %3381 = vmatprep.mubr.bf16.mxu0 %v2737
    %3382 = vmatmul.mubr.bf16.gmra.mrb[0].mxu0 %v2736
    %v3383 = vpop.f32.mrb[0].mxu0
    %v3384 = vadd.f32 %v3344, %v3383
    %v3385 = vpop.f32.mrb[0].mxu0
    %v3386 = vpop.f32.mrb[0].mxu0
    %v3387 = vpop.f32.mrb[0].mxu0
    %3388 = vdwg.mxu0
    %3389 = vmatprep.subr.bf16.mxu0 0
    %3390 = vmatpush1.bf16.msra.mxu0 %v2626
    %3391 = vmatprep.subr.bf16.mxu0 0
    %3392 = vmatpush1.bf16.msra.mxu0 %v2633
    %3393 = vmatprep.subr.bf16.mxu0 0
    %3394 = vmatpush1.bf16.msra.mxu0 %v2640
    %3395 = vmatprep.subr.bf16.mxu0 0
    %3396 = vmatpush1.bf16.msra.mxu0 %v2647
    %3397 = vmatprep.subr.bf16.mxu0 0
    %3398 = vmatpush1.bf16.msra.mxu0 %v2654
    %3399 = vmatprep.subr.bf16.mxu0 0
    %3400 = vmatpush1.bf16.msra.mxu0 %v2661
    %3401 = vmatprep.subr.bf16.mxu0 0
    %3402 = vmatpush1.bf16.msra.mxu0 %v2668
    %3403 = vmatprep.subr.bf16.mxu0 0
    %3404 = vmatpush1.bf16.msra.mxu0 %v2675
    %3405 = vmatprep.subr.bf16.mxu0 0
    %3406 = vmatpush1.bf16.msra.mxu0 %v2682
    %3407 = vmatprep.subr.bf16.mxu0 0
    %3408 = vmatpush1.bf16.msra.mxu0 %v2689
    %3409 = vmatprep.subr.bf16.mxu0 0
    %3410 = vmatpush1.bf16.msra.mxu0 %v2696
    %3411 = vmatprep.subr.bf16.mxu0 0
    %3412 = vmatpush1.bf16.msra.mxu0 %v2703
    %3413 = vmatprep.subr.bf16.mxu0 0
    %3414 = vmatpush1.bf16.msra.mxu0 %v2710
    %3415 = vmatprep.subr.bf16.mxu0 0
    %3416 = vmatpush1.bf16.msra.mxu0 %v2717
    %3417 = vmatprep.subr.bf16.mxu0 0
    %3418 = vmatpush1.bf16.msra.mxu0 %v2724
    %3419 = vmatprep.subr.bf16.mxu0 0
    %3420 = vmatpush1.bf16.msra.mxu0 %v2731
    %3421 = vmatprep.mubr.bf16.mxu0 %v2739
    %3422 = vmatmul.mubr.bf16.gmra.mrb[0].mxu0 %v2738
    %v3423 = vpop.f32.mrb[0].mxu0
    %v3424 = vadd.f32 %v3384, %v3423
    %v3425 = vpop.f32.mrb[0].mxu0
    %v3426 = vpop.f32.mrb[0].mxu0
    %v3427 = vpop.f32.mrb[0].mxu0
    %3428 = vdwg.mxu0
    %v3429 = vtanh.pop %v2935
    %v3430 = vtanh.pop %v2937
    %v3431 = vtanh.pop %v3099
    %v3432 = vtanh.pop %v3101
    %v3433 = vtanh.pop %v3263
    %v3434 = vtanh.pop %v3265
    %v3435 = vtanh.pop %v3424
    %3436 = vst [vmem:[#allocation26] sm:$0xff] %v3429
    %3437 = vst [vmem:[#allocation26 + $0x8] sm:$0xff] %v3430
    %3438 = vst [vmem:[#allocation26 + $0x10] sm:$0xff] %v3431
    %3439 = vst [vmem:[#allocation26 + $0x18] sm:$0xff] %v3432
    %3440 = vst [vmem:[#allocation26 + $0x20] sm:$0xff] %v3433
    %3441 = vst [vmem:[#allocation26 + $0x28] sm:$0xff] %v3434
    %3442 = vst [vmem:[#allocation26 + $0x30] sm:$0xff] %v3435
    // Predicated region
    $region106: #{tpu_custom_call.1} parent=1 // pred_check
      _
    $region107: #{tpu_custom_call.1} parent=1 // pred_check_branch
      %3444 = sbr.rel (0) target = $region109
    $region108: #{tpu_custom_call.1} parent=1 // pred_region
      %s3446 = ssub.s32 896, 896
      %3447 = vsyncadd [#allocation7], %s3446
      %s3449 = sshll.u32 [#allocation26], 4
      %s3450 = int_to_ptr.vmem [resolvable:$true] %s3449
      %3452 = dma.vmem_to_hbm [thread:$0]  %s3450, 896, %s15, [#allocation7]
    $region109: #{tpu_custom_call.1} parent=1 // pred_fallthru
      _
    // Predicated region
    $region110: #{tpu_custom_call.1} parent=1 // pred_check
      _
    $region111: #{tpu_custom_call.1} parent=1 // pred_check_branch
      %3454 = sbr.rel (0) target = $region113
    $region112: #{tpu_custom_call.1} parent=1 // pred_region
      %3455 = dma.done [#allocation7], 896
    $region113: #{tpu_custom_call.1} parent=1 // pred_fallthru
      _
    %3456 = vsyncpa [#allocation6], 1
    %3457 = vsyncpa [#allocation9], 1
    %3458 = vsyncpa [#allocation12], 1
    %3459 = vsyncpa [#allocation15], 1
    %3460 = vsyncpa [#allocation18], 1
    %3461 = vsyncpa [#allocation21], 1
    %3462 = vsyncpa [#allocation24], 1
    %3463 = vsyncpa [#allocation7], 1
  %3464 = vsyncmov [#allocation4]
  %s3465 = vpop.sfrf %3464
  %p3466 = scmp.eq.s32.totalorder %s3465, 0
  %p3467 = pneg %p3466
  %3469 = shalt.err (%p3467)
  %s3470 = scalar_lea.sflag [#allocation4], 1
  %3471 = vsyncmov %s3470
  %s3472 = vpop.sfrf %3471
  %p3473 = scmp.eq.s32.totalorder %s3472, 0
  %p3474 = pneg %p3473
  %3476 = shalt.err (%p3474)

</llo_original>
